<compile_context>
chip_gen: v5e
topology: v5e:2x2
jax: 0.10.0
libtpu: 0.0.40
codegen_flags: <defaults>
</compile_context>

<pallas_src>
import jax
import jax.numpy as jnp
from jax.experimental import pallas as pl
from jax.experimental.pallas import tpu as pltpu

# ---- module hyperparameters (defaults of the PyTorch module) ----------------
EMBEDDING_SIZE = 32
GRU_SIZE = 32
ATTENTION = True
PAD_TOKEN = 0
NUM_EMBEDDINGS = 50


# ========================= fused whole-model kernel ==========================
def _fused_kernel(lens_ref, x_ref,
                  wih0_ref, whh0_ref, bgx0_ref, bhn0_ref,
                  wih1_ref, whh1_ref, bgx1_ref, bhn1_ref,
                  watt_ref, wcls_ref, bcls_ref,
                  y_ref,
                  gx_scr, a0_scr, a1_scr):
    """Whole GRUAttention forward for one batch tile.

    lens_ref: (Bt, 1)  int32 sequence lengths
    x_ref:    (Bt-tile of (T, Bp, E)) time-major embeddings
    wih*:     (Din, 6H) fused input weights, lanes [r_f r_b | z_f z_b | n_f n_b]
    whh*:     (2H, 6H)  block-diagonal recurrent weights over packed [h_f | h_b]
    bgx*:     (1, 6H)   biases folded into the hoisted projection
                        (r/z: b_ih+b_hh pre-summed; n: b_ih only)
    bhn*:     (1, 2H)   n-gate hidden bias (scaled by r inside the cell)
    watt:     (1, 2H)   attention weight (bias dropped: cancels in softmax)
    wcls:     (2H, 1)   classifier weight; bcls (1,1) f32 scalar in SMEM
    y_ref:    (Bt, 1)
    """
    T, Bt, _ = x_ref.shape
    H2 = whh0_ref.shape[0]          # 2H packed state width
    H = H2 // 2
    H6 = 3 * H2                     # fused gate width

    lens = lens_ref[...]            # (Bt, 1) int32

    # Lane-selector constants, hoisted out of the unrolled loops.
    lane6 = jax.lax.broadcasted_iota(jnp.int32, (1, H6), 1)
    fwd_gate_lane = (lane6 % H2) < H            # forward-direction gate lanes
    lane2 = jax.lax.broadcasted_iota(jnp.int32, (1, H2), 1)
    fwd_state_lane = lane2 < H                  # forward-direction state lanes

    def bidir_layer(x_ref_l, wih_ref, whh_ref, bgx_ref, bhn_ref, out_ref):
        din = x_ref_l.shape[-1]
        # Hoisted input projection: ONE wide MXU matmul for all gates+dirs.
        x2d = x_ref_l[...].reshape(T * Bt, din)
        gx = jnp.dot(x2d, wih_ref[...],
                     preferred_element_type=jnp.float32) + bgx_ref[...]
        gx_scr[...] = gx.reshape(T, Bt, H6)

        whh = whh_ref[...]                      # (2H, 6H) block-diagonal
        bhn = bhn_ref[...]                      # (1, 2H)

        # Packed recurrent state: fwd dir in lanes [:H], bwd dir in [H:2H].
        h = jnp.zeros((Bt, H2), jnp.float32)

        # Fully unrolled time loop: step i advances forward at time tf=i and
        # backward at time tb=T-1-i in the SAME packed vregs.
        for i in range(T):
            tf, tb = i, T - 1 - i
            # Fused gate inputs: fwd lanes from time tf, bwd lanes from tb.
            g = jnp.where(fwd_gate_lane, gx_scr[tf], gx_scr[tb])       # (Bt, 6H)
            gh = jnp.dot(h, whh, preferred_element_type=jnp.float32)   # (Bt, 6H)
            rz = jax.nn.sigmoid(g[:, :2 * H2] + gh[:, :2 * H2])        # 128 lanes
            r = rz[:, :H2]
            z = rz[:, H2:]
            n = jnp.tanh(g[:, 2 * H2:] + r * (gh[:, 2 * H2:] + bhn))
            h_new = (1.0 - z) * n + z * h
            # Packed-sequence masking: hold state / zero output at t >= length.
            tvec = jnp.where(fwd_state_lane, tf, tb)                   # (1, 2H)
            valid = tvec < lens                                        # (Bt, 2H) bool
            h = jnp.where(valid, h_new, h)
            out = jnp.where(valid, h_new, 0.0)
            # Direct half-row stores into the lane-dense (T, Bt, 2H) slab.
            out_ref[tf, :, :H] = out[:, :H]
            out_ref[tb, :, H:] = out[:, H:]

    bidir_layer(x_ref, wih0_ref, whh0_ref, bgx0_ref, bhn0_ref, a0_scr)
    bidir_layer(a0_scr, wih1_ref, whh1_ref, bgx1_ref, bhn1_ref, a1_scr)

    # ---- attention over the time axis + classifier ---------------------------
    a1 = a1_scr[...]                                        # (T, Bt, 2H)
    wa = watt_ref[...]                                      # (1, 2H)
    # b_att adds the same constant to every time step's logit -> cancels in the
    # softmax over time, so it is dropped entirely (dead compute + dead DMA).
    logits = jnp.sum(a1 * wa[None, :, :], axis=-1, keepdims=True)   # (T, Bt, 1)
    m = jnp.max(logits, axis=0, keepdims=True)
    e = jnp.exp(logits - m)
    probs = e / jnp.sum(e, axis=0, keepdims=True)           # softmax over time
    ctx = jnp.sum(a1 * probs, axis=0)                       # (Bt, 2H)
    y_ref[...] = (jnp.dot(ctx, wcls_ref[...], preferred_element_type=jnp.float32)
                  + bcls_ref[0, 0])


# =============================== parameters ==================================
def _gru_layer_init(key, in_dim, hidden):
    """Bidirectional GRU layer parameters packed in the fused kernel layout."""
    kf, kb = jax.random.split(key)
    H = hidden

    def one_dir(k):
        k = jax.random.split(k, 4)
        bound = 1.0 / (H ** 0.5)
        wih = jax.random.uniform(k[0], (3 * H, in_dim), jnp.float32, -bound, bound)
        whh = jax.random.uniform(k[1], (3 * H, H), jnp.float32, -bound, bound)
        bih = jax.random.uniform(k[2], (3 * H,), jnp.float32, -bound, bound)
        bhh = jax.random.uniform(k[3], (3 * H,), jnp.float32, -bound, bound)
        return wih, whh, bih, bhh

    wih_f, whh_f, bih_f, bhh_f = one_dir(kf)
    wih_b, whh_b, bih_b, bhh_b = one_dir(kb)

    wih_cols, bgx_parts = [], []
    whh_block = jnp.zeros((2 * H, 6 * H), jnp.float32)
    for g in range(3):                      # PyTorch gate order (r, z, n)
        sl = slice(g * H, (g + 1) * H)
        wih_cols += [wih_f[sl].T, wih_b[sl].T]
        if g < 2:                           # r, z: pre-sum input + hidden biases
            bgx_parts += [bih_f[sl] + bhh_f[sl], bih_b[sl] + bhh_b[sl]]
        else:                               # n: hidden bias applied inside cell
            bgx_parts += [bih_f[sl], bih_b[sl]]
        whh_block = whh_block.at[:H, g * 2 * H:g * 2 * H + H].set(whh_f[sl].T)
        whh_block = whh_block.at[H:, g * 2 * H + H:(g + 1) * 2 * H].set(whh_b[sl].T)

    wih_fused = jnp.concatenate(wih_cols, axis=1)                  # (in_dim, 6H)
    bgx = jnp.concatenate(bgx_parts).reshape(1, 6 * H)             # (1, 6H)
    bhn = jnp.concatenate([bhh_f[2 * H:], bhh_b[2 * H:]]).reshape(1, 2 * H)
    return dict(wih=wih_fused, whh=whh_block, bgx=bgx, bhn=bhn)


def _linear_init(key, in_dim, out_dim):
    k1, k2 = jax.random.split(key)
    bound = 1.0 / (in_dim ** 0.5)
    w = jax.random.uniform(k1, (out_dim, in_dim), jnp.float32, -bound, bound)
    b = jax.random.uniform(k2, (out_dim,), jnp.float32, -bound, bound)
    return w, b


def init_params(key):
    ks = jax.random.split(key, 5)
    E, H = EMBEDDING_SIZE, GRU_SIZE
    emb = jax.random.normal(ks[0], (NUM_EMBEDDINGS, E), jnp.float32)
    emb = emb.at[PAD_TOKEN].set(0.0)                    # padding_idx row is zero
    l0 = _gru_layer_init(ks[1], E, H)
    l1 = _gru_layer_init(ks[2], 2 * H, H)
    w_att, _b_att = _linear_init(ks[3], 2 * H, 1)       # b_att cancels in softmax
    w_cls, b_cls = _linear_init(ks[4], 2 * H, 1)
    return dict(embedding=emb, l0=l0, l1=l1,
                w_att=w_att,                            # (1, 2H)
                w_cls=w_cls.T,                          # (2H, 1)
                b_cls=b_cls.reshape(1, 1))              # (1, 1) SMEM scalar


# ================================ forward ====================================
def _rep_spec(shape):
    nd = len(shape)
    return pl.BlockSpec(shape, lambda b, _nd=nd: (0,) * _nd)


@jax.jit
def gru_attention_forward(params, x_ids, lengths):
    """x_ids: (B, T) int32 token ids; lengths: (B,) int32. Returns (B, 1) f32."""
    B, T = x_ids.shape
    H = GRU_SIZE
    H2, H6 = 2 * H, 6 * H
    E = params["embedding"].shape[1]

    # Batch tile: whole (sublane-padded) batch when small, 128-row tiles when
    # large so the grid pipelines DMA and shards across TensorCores (v7x).
    BT = min(128, max(8, ((B + 7) // 8) * 8))
    Bp = ((B + BT - 1) // BT) * BT
    pad = Bp - B

    x_p = jnp.pad(x_ids, ((0, pad), (0, 0)), constant_values=PAD_TOKEN)
    len_p = jnp.pad(lengths.astype(jnp.int32), ((0, pad),), constant_values=0)

    # Embedding gather (glue) in plain JAX, emitted directly in time-major layout.
    emb = jnp.take(params["embedding"], x_p.T, axis=0)      # (T, Bp, E)
    lens_col = len_p.reshape(Bp, 1)                         # (Bp, 1) int32

    l0, l1 = params["l0"], params["l1"]
    grid = (Bp // BT,)

    y = pl.pallas_call(
        _fused_kernel,
        out_shape=jax.ShapeDtypeStruct((Bp, 1), jnp.float32),
        grid=grid,
        in_specs=[
            pl.BlockSpec((BT, 1), lambda b: (b, 0)),             # lengths
            pl.BlockSpec((T, BT, E), lambda b: (0, b, 0)),       # embeddings
            _rep_spec(l0["wih"].shape), _rep_spec(l0["whh"].shape),
            _rep_spec(l0["bgx"].shape), _rep_spec(l0["bhn"].shape),
            _rep_spec(l1["wih"].shape), _rep_spec(l1["whh"].shape),
            _rep_spec(l1["bgx"].shape), _rep_spec(l1["bhn"].shape),
            _rep_spec(params["w_att"].shape), _rep_spec(params["w_cls"].shape),
            pl.BlockSpec(memory_space=pltpu.MemorySpace.SMEM),   # classifier bias
        ],
        out_specs=pl.BlockSpec((BT, 1), lambda b: (b, 0)),
        scratch_shapes=[
            pltpu.VMEM((T, BT, H6), jnp.float32),   # fused gate projections (reused per layer)
            pltpu.VMEM((T, BT, H2), jnp.float32),   # layer-0 output slab
            pltpu.VMEM((T, BT, H2), jnp.float32),   # layer-1 output slab
        ],
        compiler_params=pltpu.CompilerParams(
            dimension_semantics=("parallel",)),
    )(lens_col, emb,
      l0["wih"], l0["whh"], l0["bgx"], l0["bhn"],
      l1["wih"], l1["whh"], l1["bgx"], l1["bhn"],
      params["w_att"], params["w_cls"], params["b_cls"])
    return y[:B]


if __name__ == "__main__":
    key = jax.random.PRNGKey(0)
    params = init_params(key)

    B, T = 2, 8
    lengths = jnp.array([T, 5], dtype=jnp.int32)            # sorted desc, max == T
    kx = jax.random.PRNGKey(1)
    x_ids = jax.random.randint(kx, (B, T), 1, NUM_EMBEDDINGS, dtype=jnp.int32)
    # pad positions beyond each sequence length with PAD_TOKEN
    t_idx = jnp.arange(T)[None, :]
    x_ids = jnp.where(t_idx < lengths[:, None], x_ids, PAD_TOKEN)

    y = gru_attention_forward(params, x_ids, lengths)
    jax.block_until_ready(y)
    assert y.shape == (B, 1) and y.dtype == jnp.float32
    print("KERNEL_OK")
</pallas_src>

<mosaic_0001>
module attributes {stable_mosaic.version = 11 : i64} {
  func.func @_fused_kernel(%arg0: i32, %arg1: memref<8x1xi32, #tpu.memory_space<vmem>>, %arg2: memref<8x8x32xf32, #tpu.memory_space<vmem>>, %arg3: memref<32x192xf32, #tpu.memory_space<vmem>>, %arg4: memref<64x192xf32, #tpu.memory_space<vmem>>, %arg5: memref<1x192xf32, #tpu.memory_space<vmem>>, %arg6: memref<1x64xf32, #tpu.memory_space<vmem>>, %arg7: memref<64x192xf32, #tpu.memory_space<vmem>>, %arg8: memref<64x192xf32, #tpu.memory_space<vmem>>, %arg9: memref<1x192xf32, #tpu.memory_space<vmem>>, %arg10: memref<1x64xf32, #tpu.memory_space<vmem>>, %arg11: memref<1x64xf32, #tpu.memory_space<vmem>>, %arg12: memref<64x1xf32, #tpu.memory_space<vmem>>, %arg13: memref<1x1xf32, #tpu.memory_space<smem>>, %arg14: memref<8x1xf32, #tpu.memory_space<vmem>>, %arg15: memref<8x8x192xf32, #tpu.memory_space<vmem>>, %arg16: memref<8x8x64xf32, #tpu.memory_space<vmem>>, %arg17: memref<8x8x64xf32, #tpu.memory_space<vmem>>) attributes {dimension_semantics = [#tpu.dimension_semantics<parallel>], iteration_bounds = array<i64: 1>, scalar_prefetch = 0 : i64, scratch_operands = 3 : i64, tpu.core_type = #tpu.core_type<tc>, window_params = [{transform_indices = @transform_0, window_bounds = array<i64: 8, 1>}, {transform_indices = @transform_1, window_bounds = array<i64: 8, 8, 32>}, {pipeline_mode = #tpu.pipeline_mode<synchronous>, transform_indices = @transform_2, window_bounds = array<i64: 32, 192>}, {pipeline_mode = #tpu.pipeline_mode<synchronous>, transform_indices = @transform_3, window_bounds = array<i64: 64, 192>}, {pipeline_mode = #tpu.pipeline_mode<synchronous>, transform_indices = @transform_4, window_bounds = array<i64: 1, 192>}, {pipeline_mode = #tpu.pipeline_mode<synchronous>, transform_indices = @transform_5, window_bounds = array<i64: 1, 64>}, {pipeline_mode = #tpu.pipeline_mode<synchronous>, transform_indices = @transform_6, window_bounds = array<i64: 64, 192>}, {pipeline_mode = #tpu.pipeline_mode<synchronous>, transform_indices = @transform_7, window_bounds = array<i64: 64, 192>}, {pipeline_mode = #tpu.pipeline_mode<synchronous>, transform_indices = @transform_8, window_bounds = array<i64: 1, 192>}, {pipeline_mode = #tpu.pipeline_mode<synchronous>, transform_indices = @transform_9, window_bounds = array<i64: 1, 64>}, {pipeline_mode = #tpu.pipeline_mode<synchronous>, transform_indices = @transform_10, window_bounds = array<i64: 1, 64>}, {pipeline_mode = #tpu.pipeline_mode<synchronous>, transform_indices = @transform_11, window_bounds = array<i64: 64, 1>}, {transform_indices = @transform_12, window_bounds = array<i64: 1, 1>}, {transform_indices = @transform_13, window_bounds = array<i64: 8, 1>}]} {
    %c0 = arith.constant 0 : index
    %c0_0 = arith.constant 0 : index
    %0 = vector.load %arg1[%c0, %c0_0] : memref<8x1xi32, #tpu.memory_space<vmem>>, vector<8x1xi32>
    %1 = tpu.iota {dimensions = array<i32: 1>} : vector<1x192xi32>
    %c64_i32 = arith.constant 64 : i32
    %c0_i32 = arith.constant 0 : i32
    %2 = arith.cmpi eq, %c64_i32, %c0_i32 : i32
    %c1_i32 = arith.constant 1 : i32
    %3 = arith.select %2, %c1_i32, %c64_i32 : i32
    %4 = vector.broadcast %3 : i32 to vector<1x192xi32>
    %5 = arith.remsi %1, %4 : vector<1x192xi32>
    %c0_i32_1 = arith.constant 0 : i32
    %6 = vector.broadcast %c0_i32_1 : i32 to vector<1x192xi32>
    %7 = arith.cmpi ne, %5, %6 : vector<1x192xi32>
    %c0_i32_2 = arith.constant 0 : i32
    %8 = vector.broadcast %c0_i32_2 : i32 to vector<1x192xi32>
    %9 = arith.cmpi slt, %5, %8 : vector<1x192xi32>
    %c0_i32_3 = arith.constant 0 : i32
    %10 = arith.cmpi slt, %3, %c0_i32_3 : i32
    %11 = vector.broadcast %10 : i1 to vector<1x192xi1>
    %12 = vector.broadcast %11 : vector<1x192xi1> to vector<1x192xi1>
    %13 = arith.xori %9, %12 : vector<1x192xi1>
    %14 = arith.andi %13, %7 : vector<1x192xi1>
    %15 = vector.broadcast %3 : i32 to vector<1x192xi32>
    %16 = arith.addi %5, %15 : vector<1x192xi32>
    %17 = arith.select %14, %16, %5 : vector<1x192xi1>, vector<1x192xi32>
    %c32_i32 = arith.constant 32 : i32
    %18 = vector.broadcast %c32_i32 : i32 to vector<1x192xi32>
    %19 = arith.cmpi slt, %17, %18 : vector<1x192xi32>
    %20 = tpu.iota {dimensions = array<i32: 1>} : vector<1x64xi32>
    %c32_i32_4 = arith.constant 32 : i32
    %21 = vector.broadcast %c32_i32_4 : i32 to vector<1x64xi32>
    %22 = arith.cmpi slt, %20, %21 : vector<1x64xi32>
    %c0_5 = arith.constant 0 : index
    %c0_6 = arith.constant 0 : index
    %c0_7 = arith.constant 0 : index
    %23 = vector.load %arg2[%c0_5, %c0_6, %c0_7] : memref<8x8x32xf32, #tpu.memory_space<vmem>>, vector<8x8x32xf32>
    %24 = vector.shape_cast %23 : vector<8x8x32xf32> to vector<64x32xf32>
    %c0_8 = arith.constant 0 : index
    %c0_9 = arith.constant 0 : index
    %25 = vector.load %arg3[%c0_8, %c0_9] : memref<32x192xf32, #tpu.memory_space<vmem>>, vector<32x192xf32>
    %cst = arith.constant dense<0.000000e+00> : vector<64x192xf32>
    %26 = tpu.matmul %24, %25, %cst {dimension_numbers = #tpu.dot_dimension_numbers<[1], [0], [0], [1], [0, 0, 1, 1], [], []>} : vector<64x32xf32>, vector<32x192xf32>, vector<64x192xf32> -> vector<64x192xf32>
    %c0_10 = arith.constant 0 : index
    %c0_11 = arith.constant 0 : index
    %27 = vector.load %arg5[%c0_10, %c0_11] : memref<1x192xf32, #tpu.memory_space<vmem>>, vector<1x192xf32>
    %28 = vector.broadcast %27 : vector<1x192xf32> to vector<64x192xf32>
    %29 = arith.addf %26, %28 : vector<64x192xf32>
    %30 = vector.shape_cast %29 : vector<64x192xf32> to vector<8x8x192xf32>
    %c0_12 = arith.constant 0 : index
    %c0_13 = arith.constant 0 : index
    %c0_14 = arith.constant 0 : index
    %31 = vector.load %arg15[%c0_12, %c0_13, %c0_14] : memref<8x8x192xf32, #tpu.memory_space<vmem>>, vector<8x8x192xf32>
    tpu.vector_store %arg15[%c0_12, %c0_13, %c0_14], %30 {strides = array<i32>} : memref<8x8x192xf32, #tpu.memory_space<vmem>>, vector<8x8x192xf32>,
    %c0_15 = arith.constant 0 : index
    %c0_16 = arith.constant 0 : index
    %32 = vector.load %arg4[%c0_15, %c0_16] : memref<64x192xf32, #tpu.memory_space<vmem>>, vector<64x192xf32>
    %c0_17 = arith.constant 0 : index
    %c0_18 = arith.constant 0 : index
    %33 = vector.load %arg6[%c0_17, %c0_18] : memref<1x64xf32, #tpu.memory_space<vmem>>, vector<1x64xf32>
    %cst_19 = arith.constant 0.000000e+00 : f32
    %34 = vector.broadcast %cst_19 : f32 to vector<8x64xf32>
    %c0_20 = arith.constant 0 : index
    %c0_21 = arith.constant 0 : index
    %c0_22 = arith.constant 0 : index
    %35 = vector.load %arg15[%c0_20, %c0_21, %c0_22] : memref<8x8x192xf32, #tpu.memory_space<vmem>>, vector<1x8x192xf32>
    %36 = vector.shape_cast %35 : vector<1x8x192xf32> to vector<8x192xf32>
    %c7 = arith.constant 7 : index
    %c0_23 = arith.constant 0 : index
    %c0_24 = arith.constant 0 : index
    %37 = vector.load %arg15[%c7, %c0_23, %c0_24] : memref<8x8x192xf32, #tpu.memory_space<vmem>>, vector<1x8x192xf32>
    %38 = vector.shape_cast %37 : vector<1x8x192xf32> to vector<8x192xf32>
    %39 = vector.shape_cast %19 : vector<1x192xi1> to vector<1x192xi1>
    %40 = vector.broadcast %39 : vector<1x192xi1> to vector<8x192xi1>
    %41 = arith.select %40, %36, %38 : vector<8x192xi1>, vector<8x192xf32>
    %cst_25 = arith.constant dense<0.000000e+00> : vector<8x192xf32>
    %42 = tpu.matmul %34, %32, %cst_25 {dimension_numbers = #tpu.dot_dimension_numbers<[1], [0], [0], [1], [0, 0, 1, 1], [], []>} : vector<8x64xf32>, vector<64x192xf32>, vector<8x192xf32> -> vector<8x192xf32>
    %43 = vector.extract_strided_slice %41 {offsets = [0, 0], sizes = [8, 128], strides = [1, 1]} : vector<8x192xf32> to vector<8x128xf32>
    %44 = vector.extract_strided_slice %42 {offsets = [0, 0], sizes = [8, 128], strides = [1, 1]} : vector<8x192xf32> to vector<8x128xf32>
    %45 = arith.addf %43, %44 : vector<8x128xf32>
    %46 = arith.negf %45 : vector<8x128xf32>
    %47 = math.exp %46 : vector<8x128xf32>
    %cst_26 = arith.constant 1.000000e+00 : f32
    %48 = vector.broadcast %cst_26 : f32 to vector<8x128xf32>
    %49 = arith.addf %48, %47 : vector<8x128xf32>
    %50 = arith.divf %48, %49 : vector<8x128xf32>
    %51 = vector.extract_strided_slice %50 {offsets = [0, 0], sizes = [8, 64], strides = [1, 1]} : vector<8x128xf32> to vector<8x64xf32>
    %52 = vector.extract_strided_slice %50 {offsets = [0, 64], sizes = [8, 64], strides = [1, 1]} : vector<8x128xf32> to vector<8x64xf32>
    %53 = vector.extract_strided_slice %41 {offsets = [0, 128], sizes = [8, 64], strides = [1, 1]} : vector<8x192xf32> to vector<8x64xf32>
    %54 = vector.extract_strided_slice %42 {offsets = [0, 128], sizes = [8, 64], strides = [1, 1]} : vector<8x192xf32> to vector<8x64xf32>
    %55 = vector.broadcast %33 : vector<1x64xf32> to vector<8x64xf32>
    %56 = arith.addf %54, %55 : vector<8x64xf32>
    %57 = arith.mulf %51, %56 : vector<8x64xf32>
    %58 = arith.addf %53, %57 : vector<8x64xf32>
    %59 = math.tanh %58 : vector<8x64xf32>
    %cst_27 = arith.constant 1.000000e+00 : f32
    %60 = vector.broadcast %cst_27 : f32 to vector<8x64xf32>
    %61 = arith.subf %60, %52 : vector<8x64xf32>
    %62 = arith.mulf %61, %59 : vector<8x64xf32>
    %63 = arith.mulf %52, %34 : vector<8x64xf32>
    %64 = arith.addf %62, %63 : vector<8x64xf32>
    %c0_i32_28 = arith.constant 0 : i32
    %c7_i32 = arith.constant 7 : i32
    %65 = vector.broadcast %c0_i32_28 : i32 to vector<1x64xi32>
    %66 = vector.broadcast %c7_i32 : i32 to vector<1x64xi32>
    %67 = arith.select %22, %65, %66 : vector<1x64xi1>, vector<1x64xi32>
    %68 = vector.broadcast %67 : vector<1x64xi32> to vector<8x64xi32>
    %69 = vector.broadcast %0 : vector<8x1xi32> to vector<8x64xi32>
    %70 = arith.cmpi slt, %68, %69 : vector<8x64xi32>
    %71 = arith.select %70, %64, %34 : vector<8x64xi1>, vector<8x64xf32>
    %cst_29 = arith.constant 0.000000e+00 : f32
    %72 = vector.broadcast %cst_29 : f32 to vector<8x64xf32>
    %73 = arith.select %70, %64, %72 : vector<8x64xi1>, vector<8x64xf32>
    %74 = vector.extract_strided_slice %73 {offsets = [0, 0], sizes = [8, 32], strides = [1, 1]} : vector<8x64xf32> to vector<8x32xf32>
    %c0_30 = arith.constant 0 : index
    %c0_31 = arith.constant 0 : index
    %c0_32 = arith.constant 0 : index
    %75 = vector.load %arg16[%c0_30, %c0_31, %c0_32] : memref<8x8x64xf32, #tpu.memory_space<vmem>>, vector<1x8x32xf32>
    %76 = vector.shape_cast %75 : vector<1x8x32xf32> to vector<8x32xf32>
    %77 = vector.shape_cast %74 : vector<8x32xf32> to vector<1x8x32xf32>
    tpu.vector_store %arg16[%c0_30, %c0_31, %c0_32], %77 {strides = array<i32>} : memref<8x8x64xf32, #tpu.memory_space<vmem>>, vector<1x8x32xf32>,
    %78 = vector.extract_strided_slice %73 {offsets = [0, 32], sizes = [8, 32], strides = [1, 1]} : vector<8x64xf32> to vector<8x32xf32>
    %c7_33 = arith.constant 7 : index
    %c0_34 = arith.constant 0 : index
    %c32 = arith.constant 32 : index
    %79 = vector.load %arg16[%c7_33, %c0_34, %c32] : memref<8x8x64xf32, #tpu.memory_space<vmem>>, vector<1x8x32xf32>
    %80 = vector.shape_cast %79 : vector<1x8x32xf32> to vector<8x32xf32>
    %81 = vector.shape_cast %78 : vector<8x32xf32> to vector<1x8x32xf32>
    tpu.vector_store %arg16[%c7_33, %c0_34, %c32], %81 {strides = array<i32>} : memref<8x8x64xf32, #tpu.memory_space<vmem>>, vector<1x8x32xf32>,
    %c1 = arith.constant 1 : index
    %c0_35 = arith.constant 0 : index
    %c0_36 = arith.constant 0 : index
    %82 = vector.load %arg15[%c1, %c0_35, %c0_36] : memref<8x8x192xf32, #tpu.memory_space<vmem>>, vector<1x8x192xf32>
    %83 = vector.shape_cast %82 : vector<1x8x192xf32> to vector<8x192xf32>
    %c6 = arith.constant 6 : index
    %c0_37 = arith.constant 0 : index
    %c0_38 = arith.constant 0 : index
    %84 = vector.load %arg15[%c6, %c0_37, %c0_38] : memref<8x8x192xf32, #tpu.memory_space<vmem>>, vector<1x8x192xf32>
    %85 = vector.shape_cast %84 : vector<1x8x192xf32> to vector<8x192xf32>
    %86 = vector.shape_cast %19 : vector<1x192xi1> to vector<1x192xi1>
    %87 = vector.broadcast %86 : vector<1x192xi1> to vector<8x192xi1>
    %88 = arith.select %87, %83, %85 : vector<8x192xi1>, vector<8x192xf32>
    %cst_39 = arith.constant dense<0.000000e+00> : vector<8x192xf32>
    %89 = tpu.matmul %71, %32, %cst_39 {dimension_numbers = #tpu.dot_dimension_numbers<[1], [0], [0], [1], [0, 0, 1, 1], [], []>} : vector<8x64xf32>, vector<64x192xf32>, vector<8x192xf32> -> vector<8x192xf32>
    %90 = vector.extract_strided_slice %88 {offsets = [0, 0], sizes = [8, 128], strides = [1, 1]} : vector<8x192xf32> to vector<8x128xf32>
    %91 = vector.extract_strided_slice %89 {offsets = [0, 0], sizes = [8, 128], strides = [1, 1]} : vector<8x192xf32> to vector<8x128xf32>
    %92 = arith.addf %90, %91 : vector<8x128xf32>
    %93 = arith.negf %92 : vector<8x128xf32>
    %94 = math.exp %93 : vector<8x128xf32>
    %cst_40 = arith.constant 1.000000e+00 : f32
    %95 = vector.broadcast %cst_40 : f32 to vector<8x128xf32>
    %96 = arith.addf %95, %94 : vector<8x128xf32>
    %97 = arith.divf %95, %96 : vector<8x128xf32>
    %98 = vector.extract_strided_slice %97 {offsets = [0, 0], sizes = [8, 64], strides = [1, 1]} : vector<8x128xf32> to vector<8x64xf32>
    %99 = vector.extract_strided_slice %97 {offsets = [0, 64], sizes = [8, 64], strides = [1, 1]} : vector<8x128xf32> to vector<8x64xf32>
    %100 = vector.extract_strided_slice %88 {offsets = [0, 128], sizes = [8, 64], strides = [1, 1]} : vector<8x192xf32> to vector<8x64xf32>
    %101 = vector.extract_strided_slice %89 {offsets = [0, 128], sizes = [8, 64], strides = [1, 1]} : vector<8x192xf32> to vector<8x64xf32>
    %102 = vector.broadcast %33 : vector<1x64xf32> to vector<8x64xf32>
    %103 = arith.addf %101, %102 : vector<8x64xf32>
    %104 = arith.mulf %98, %103 : vector<8x64xf32>
    %105 = arith.addf %100, %104 : vector<8x64xf32>
    %106 = math.tanh %105 : vector<8x64xf32>
    %cst_41 = arith.constant 1.000000e+00 : f32
    %107 = vector.broadcast %cst_41 : f32 to vector<8x64xf32>
    %108 = arith.subf %107, %99 : vector<8x64xf32>
    %109 = arith.mulf %108, %106 : vector<8x64xf32>
    %110 = arith.mulf %99, %71 : vector<8x64xf32>
    %111 = arith.addf %109, %110 : vector<8x64xf32>
    %c1_i32_42 = arith.constant 1 : i32
    %c6_i32 = arith.constant 6 : i32
    %112 = vector.broadcast %c1_i32_42 : i32 to vector<1x64xi32>
    %113 = vector.broadcast %c6_i32 : i32 to vector<1x64xi32>
    %114 = arith.select %22, %112, %113 : vector<1x64xi1>, vector<1x64xi32>
    %115 = vector.broadcast %114 : vector<1x64xi32> to vector<8x64xi32>
    %116 = vector.broadcast %0 : vector<8x1xi32> to vector<8x64xi32>
    %117 = arith.cmpi slt, %115, %116 : vector<8x64xi32>
    %118 = arith.select %117, %111, %71 : vector<8x64xi1>, vector<8x64xf32>
    %cst_43 = arith.constant 0.000000e+00 : f32
    %119 = vector.broadcast %cst_43 : f32 to vector<8x64xf32>
    %120 = arith.select %117, %111, %119 : vector<8x64xi1>, vector<8x64xf32>
    %121 = vector.extract_strided_slice %120 {offsets = [0, 0], sizes = [8, 32], strides = [1, 1]} : vector<8x64xf32> to vector<8x32xf32>
    %c1_44 = arith.constant 1 : index
    %c0_45 = arith.constant 0 : index
    %c0_46 = arith.constant 0 : index
    %122 = vector.load %arg16[%c1_44, %c0_45, %c0_46] : memref<8x8x64xf32, #tpu.memory_space<vmem>>, vector<1x8x32xf32>
    %123 = vector.shape_cast %122 : vector<1x8x32xf32> to vector<8x32xf32>
    %124 = vector.shape_cast %121 : vector<8x32xf32> to vector<1x8x32xf32>
    tpu.vector_store %arg16[%c1_44, %c0_45, %c0_46], %124 {strides = array<i32>} : memref<8x8x64xf32, #tpu.memory_space<vmem>>, vector<1x8x32xf32>,
    %125 = vector.extract_strided_slice %120 {offsets = [0, 32], sizes = [8, 32], strides = [1, 1]} : vector<8x64xf32> to vector<8x32xf32>
    %c6_47 = arith.constant 6 : index
    %c0_48 = arith.constant 0 : index
    %c32_49 = arith.constant 32 : index
    %126 = vector.load %arg16[%c6_47, %c0_48, %c32_49] : memref<8x8x64xf32, #tpu.memory_space<vmem>>, vector<1x8x32xf32>
    %127 = vector.shape_cast %126 : vector<1x8x32xf32> to vector<8x32xf32>
    %128 = vector.shape_cast %125 : vector<8x32xf32> to vector<1x8x32xf32>
    tpu.vector_store %arg16[%c6_47, %c0_48, %c32_49], %128 {strides = array<i32>} : memref<8x8x64xf32, #tpu.memory_space<vmem>>, vector<1x8x32xf32>,
    %c2 = arith.constant 2 : index
    %c0_50 = arith.constant 0 : index
    %c0_51 = arith.constant 0 : index
    %129 = vector.load %arg15[%c2, %c0_50, %c0_51] : memref<8x8x192xf32, #tpu.memory_space<vmem>>, vector<1x8x192xf32>
    %130 = vector.shape_cast %129 : vector<1x8x192xf32> to vector<8x192xf32>
    %c5 = arith.constant 5 : index
    %c0_52 = arith.constant 0 : index
    %c0_53 = arith.constant 0 : index
    %131 = vector.load %arg15[%c5, %c0_52, %c0_53] : memref<8x8x192xf32, #tpu.memory_space<vmem>>, vector<1x8x192xf32>
    %132 = vector.shape_cast %131 : vector<1x8x192xf32> to vector<8x192xf32>
    %133 = vector.shape_cast %19 : vector<1x192xi1> to vector<1x192xi1>
    %134 = vector.broadcast %133 : vector<1x192xi1> to vector<8x192xi1>
    %135 = arith.select %134, %130, %132 : vector<8x192xi1>, vector<8x192xf32>
    %cst_54 = arith.constant dense<0.000000e+00> : vector<8x192xf32>
    %136 = tpu.matmul %118, %32, %cst_54 {dimension_numbers = #tpu.dot_dimension_numbers<[1], [0], [0], [1], [0, 0, 1, 1], [], []>} : vector<8x64xf32>, vector<64x192xf32>, vector<8x192xf32> -> vector<8x192xf32>
    %137 = vector.extract_strided_slice %135 {offsets = [0, 0], sizes = [8, 128], strides = [1, 1]} : vector<8x192xf32> to vector<8x128xf32>
    %138 = vector.extract_strided_slice %136 {offsets = [0, 0], sizes = [8, 128], strides = [1, 1]} : vector<8x192xf32> to vector<8x128xf32>
    %139 = arith.addf %137, %138 : vector<8x128xf32>
    %140 = arith.negf %139 : vector<8x128xf32>
    %141 = math.exp %140 : vector<8x128xf32>
    %cst_55 = arith.constant 1.000000e+00 : f32
    %142 = vector.broadcast %cst_55 : f32 to vector<8x128xf32>
    %143 = arith.addf %142, %141 : vector<8x128xf32>
    %144 = arith.divf %142, %143 : vector<8x128xf32>
    %145 = vector.extract_strided_slice %144 {offsets = [0, 0], sizes = [8, 64], strides = [1, 1]} : vector<8x128xf32> to vector<8x64xf32>
    %146 = vector.extract_strided_slice %144 {offsets = [0, 64], sizes = [8, 64], strides = [1, 1]} : vector<8x128xf32> to vector<8x64xf32>
    %147 = vector.extract_strided_slice %135 {offsets = [0, 128], sizes = [8, 64], strides = [1, 1]} : vector<8x192xf32> to vector<8x64xf32>
    %148 = vector.extract_strided_slice %136 {offsets = [0, 128], sizes = [8, 64], strides = [1, 1]} : vector<8x192xf32> to vector<8x64xf32>
    %149 = vector.broadcast %33 : vector<1x64xf32> to vector<8x64xf32>
    %150 = arith.addf %148, %149 : vector<8x64xf32>
    %151 = arith.mulf %145, %150 : vector<8x64xf32>
    %152 = arith.addf %147, %151 : vector<8x64xf32>
    %153 = math.tanh %152 : vector<8x64xf32>
    %cst_56 = arith.constant 1.000000e+00 : f32
    %154 = vector.broadcast %cst_56 : f32 to vector<8x64xf32>
    %155 = arith.subf %154, %146 : vector<8x64xf32>
    %156 = arith.mulf %155, %153 : vector<8x64xf32>
    %157 = arith.mulf %146, %118 : vector<8x64xf32>
    %158 = arith.addf %156, %157 : vector<8x64xf32>
    %c2_i32 = arith.constant 2 : i32
    %c5_i32 = arith.constant 5 : i32
    %159 = vector.broadcast %c2_i32 : i32 to vector<1x64xi32>
    %160 = vector.broadcast %c5_i32 : i32 to vector<1x64xi32>
    %161 = arith.select %22, %159, %160 : vector<1x64xi1>, vector<1x64xi32>
    %162 = vector.broadcast %161 : vector<1x64xi32> to vector<8x64xi32>
    %163 = vector.broadcast %0 : vector<8x1xi32> to vector<8x64xi32>
    %164 = arith.cmpi slt, %162, %163 : vector<8x64xi32>
    %165 = arith.select %164, %158, %118 : vector<8x64xi1>, vector<8x64xf32>
    %cst_57 = arith.constant 0.000000e+00 : f32
    %166 = vector.broadcast %cst_57 : f32 to vector<8x64xf32>
    %167 = arith.select %164, %158, %166 : vector<8x64xi1>, vector<8x64xf32>
    %168 = vector.extract_strided_slice %167 {offsets = [0, 0], sizes = [8, 32], strides = [1, 1]} : vector<8x64xf32> to vector<8x32xf32>
    %c2_58 = arith.constant 2 : index
    %c0_59 = arith.constant 0 : index
    %c0_60 = arith.constant 0 : index
    %169 = vector.load %arg16[%c2_58, %c0_59, %c0_60] : memref<8x8x64xf32, #tpu.memory_space<vmem>>, vector<1x8x32xf32>
    %170 = vector.shape_cast %169 : vector<1x8x32xf32> to vector<8x32xf32>
    %171 = vector.shape_cast %168 : vector<8x32xf32> to vector<1x8x32xf32>
    tpu.vector_store %arg16[%c2_58, %c0_59, %c0_60], %171 {strides = array<i32>} : memref<8x8x64xf32, #tpu.memory_space<vmem>>, vector<1x8x32xf32>,
    %172 = vector.extract_strided_slice %167 {offsets = [0, 32], sizes = [8, 32], strides = [1, 1]} : vector<8x64xf32> to vector<8x32xf32>
    %c5_61 = arith.constant 5 : index
    %c0_62 = arith.constant 0 : index
    %c32_63 = arith.constant 32 : index
    %173 = vector.load %arg16[%c5_61, %c0_62, %c32_63] : memref<8x8x64xf32, #tpu.memory_space<vmem>>, vector<1x8x32xf32>
    %174 = vector.shape_cast %173 : vector<1x8x32xf32> to vector<8x32xf32>
    %175 = vector.shape_cast %172 : vector<8x32xf32> to vector<1x8x32xf32>
    tpu.vector_store %arg16[%c5_61, %c0_62, %c32_63], %175 {strides = array<i32>} : memref<8x8x64xf32, #tpu.memory_space<vmem>>, vector<1x8x32xf32>,
    %c3 = arith.constant 3 : index
    %c0_64 = arith.constant 0 : index
    %c0_65 = arith.constant 0 : index
    %176 = vector.load %arg15[%c3, %c0_64, %c0_65] : memref<8x8x192xf32, #tpu.memory_space<vmem>>, vector<1x8x192xf32>
    %177 = vector.shape_cast %176 : vector<1x8x192xf32> to vector<8x192xf32>
    %c4 = arith.constant 4 : index
    %c0_66 = arith.constant 0 : index
    %c0_67 = arith.constant 0 : index
    %178 = vector.load %arg15[%c4, %c0_66, %c0_67] : memref<8x8x192xf32, #tpu.memory_space<vmem>>, vector<1x8x192xf32>
    %179 = vector.shape_cast %178 : vector<1x8x192xf32> to vector<8x192xf32>
    %180 = vector.shape_cast %19 : vector<1x192xi1> to vector<1x192xi1>
    %181 = vector.broadcast %180 : vector<1x192xi1> to vector<8x192xi1>
    %182 = arith.select %181, %177, %179 : vector<8x192xi1>, vector<8x192xf32>
    %cst_68 = arith.constant dense<0.000000e+00> : vector<8x192xf32>
    %183 = tpu.matmul %165, %32, %cst_68 {dimension_numbers = #tpu.dot_dimension_numbers<[1], [0], [0], [1], [0, 0, 1, 1], [], []>} : vector<8x64xf32>, vector<64x192xf32>, vector<8x192xf32> -> vector<8x192xf32>
    %184 = vector.extract_strided_slice %182 {offsets = [0, 0], sizes = [8, 128], strides = [1, 1]} : vector<8x192xf32> to vector<8x128xf32>
    %185 = vector.extract_strided_slice %183 {offsets = [0, 0], sizes = [8, 128], strides = [1, 1]} : vector<8x192xf32> to vector<8x128xf32>
    %186 = arith.addf %184, %185 : vector<8x128xf32>
    %187 = arith.negf %186 : vector<8x128xf32>
    %188 = math.exp %187 : vector<8x128xf32>
    %cst_69 = arith.constant 1.000000e+00 : f32
    %189 = vector.broadcast %cst_69 : f32 to vector<8x128xf32>
    %190 = arith.addf %189, %188 : vector<8x128xf32>
    %191 = arith.divf %189, %190 : vector<8x128xf32>
    %192 = vector.extract_strided_slice %191 {offsets = [0, 0], sizes = [8, 64], strides = [1, 1]} : vector<8x128xf32> to vector<8x64xf32>
    %193 = vector.extract_strided_slice %191 {offsets = [0, 64], sizes = [8, 64], strides = [1, 1]} : vector<8x128xf32> to vector<8x64xf32>
    %194 = vector.extract_strided_slice %182 {offsets = [0, 128], sizes = [8, 64], strides = [1, 1]} : vector<8x192xf32> to vector<8x64xf32>
    %195 = vector.extract_strided_slice %183 {offsets = [0, 128], sizes = [8, 64], strides = [1, 1]} : vector<8x192xf32> to vector<8x64xf32>
    %196 = vector.broadcast %33 : vector<1x64xf32> to vector<8x64xf32>
    %197 = arith.addf %195, %196 : vector<8x64xf32>
    %198 = arith.mulf %192, %197 : vector<8x64xf32>
    %199 = arith.addf %194, %198 : vector<8x64xf32>
    %200 = math.tanh %199 : vector<8x64xf32>
    %cst_70 = arith.constant 1.000000e+00 : f32
    %201 = vector.broadcast %cst_70 : f32 to vector<8x64xf32>
    %202 = arith.subf %201, %193 : vector<8x64xf32>
    %203 = arith.mulf %202, %200 : vector<8x64xf32>
    %204 = arith.mulf %193, %165 : vector<8x64xf32>
    %205 = arith.addf %203, %204 : vector<8x64xf32>
    %c3_i32 = arith.constant 3 : i32
    %c4_i32 = arith.constant 4 : i32
    %206 = vector.broadcast %c3_i32 : i32 to vector<1x64xi32>
    %207 = vector.broadcast %c4_i32 : i32 to vector<1x64xi32>
    %208 = arith.select %22, %206, %207 : vector<1x64xi1>, vector<1x64xi32>
    %209 = vector.broadcast %208 : vector<1x64xi32> to vector<8x64xi32>
    %210 = vector.broadcast %0 : vector<8x1xi32> to vector<8x64xi32>
    %211 = arith.cmpi slt, %209, %210 : vector<8x64xi32>
    %212 = arith.select %211, %205, %165 : vector<8x64xi1>, vector<8x64xf32>
    %cst_71 = arith.constant 0.000000e+00 : f32
    %213 = vector.broadcast %cst_71 : f32 to vector<8x64xf32>
    %214 = arith.select %211, %205, %213 : vector<8x64xi1>, vector<8x64xf32>
    %215 = vector.extract_strided_slice %214 {offsets = [0, 0], sizes = [8, 32], strides = [1, 1]} : vector<8x64xf32> to vector<8x32xf32>
    %c3_72 = arith.constant 3 : index
    %c0_73 = arith.constant 0 : index
    %c0_74 = arith.constant 0 : index
    %216 = vector.load %arg16[%c3_72, %c0_73, %c0_74] : memref<8x8x64xf32, #tpu.memory_space<vmem>>, vector<1x8x32xf32>
    %217 = vector.shape_cast %216 : vector<1x8x32xf32> to vector<8x32xf32>
    %218 = vector.shape_cast %215 : vector<8x32xf32> to vector<1x8x32xf32>
    tpu.vector_store %arg16[%c3_72, %c0_73, %c0_74], %218 {strides = array<i32>} : memref<8x8x64xf32, #tpu.memory_space<vmem>>, vector<1x8x32xf32>,
    %219 = vector.extract_strided_slice %214 {offsets = [0, 32], sizes = [8, 32], strides = [1, 1]} : vector<8x64xf32> to vector<8x32xf32>
    %c4_75 = arith.constant 4 : index
    %c0_76 = arith.constant 0 : index
    %c32_77 = arith.constant 32 : index
    %220 = vector.load %arg16[%c4_75, %c0_76, %c32_77] : memref<8x8x64xf32, #tpu.memory_space<vmem>>, vector<1x8x32xf32>
    %221 = vector.shape_cast %220 : vector<1x8x32xf32> to vector<8x32xf32>
    %222 = vector.shape_cast %219 : vector<8x32xf32> to vector<1x8x32xf32>
    tpu.vector_store %arg16[%c4_75, %c0_76, %c32_77], %222 {strides = array<i32>} : memref<8x8x64xf32, #tpu.memory_space<vmem>>, vector<1x8x32xf32>,
    %c4_78 = arith.constant 4 : index
    %c0_79 = arith.constant 0 : index
    %c0_80 = arith.constant 0 : index
    %223 = vector.load %arg15[%c4_78, %c0_79, %c0_80] : memref<8x8x192xf32, #tpu.memory_space<vmem>>, vector<1x8x192xf32>
    %224 = vector.shape_cast %223 : vector<1x8x192xf32> to vector<8x192xf32>
    %c3_81 = arith.constant 3 : index
    %c0_82 = arith.constant 0 : index
    %c0_83 = arith.constant 0 : index
    %225 = vector.load %arg15[%c3_81, %c0_82, %c0_83] : memref<8x8x192xf32, #tpu.memory_space<vmem>>, vector<1x8x192xf32>
    %226 = vector.shape_cast %225 : vector<1x8x192xf32> to vector<8x192xf32>
    %227 = vector.shape_cast %19 : vector<1x192xi1> to vector<1x192xi1>
    %228 = vector.broadcast %227 : vector<1x192xi1> to vector<8x192xi1>
    %229 = arith.select %228, %224, %226 : vector<8x192xi1>, vector<8x192xf32>
    %cst_84 = arith.constant dense<0.000000e+00> : vector<8x192xf32>
    %230 = tpu.matmul %212, %32, %cst_84 {dimension_numbers = #tpu.dot_dimension_numbers<[1], [0], [0], [1], [0, 0, 1, 1], [], []>} : vector<8x64xf32>, vector<64x192xf32>, vector<8x192xf32> -> vector<8x192xf32>
    %231 = vector.extract_strided_slice %229 {offsets = [0, 0], sizes = [8, 128], strides = [1, 1]} : vector<8x192xf32> to vector<8x128xf32>
    %232 = vector.extract_strided_slice %230 {offsets = [0, 0], sizes = [8, 128], strides = [1, 1]} : vector<8x192xf32> to vector<8x128xf32>
    %233 = arith.addf %231, %232 : vector<8x128xf32>
    %234 = arith.negf %233 : vector<8x128xf32>
    %235 = math.exp %234 : vector<8x128xf32>
    %cst_85 = arith.constant 1.000000e+00 : f32
    %236 = vector.broadcast %cst_85 : f32 to vector<8x128xf32>
    %237 = arith.addf %236, %235 : vector<8x128xf32>
    %238 = arith.divf %236, %237 : vector<8x128xf32>
    %239 = vector.extract_strided_slice %238 {offsets = [0, 0], sizes = [8, 64], strides = [1, 1]} : vector<8x128xf32> to vector<8x64xf32>
    %240 = vector.extract_strided_slice %238 {offsets = [0, 64], sizes = [8, 64], strides = [1, 1]} : vector<8x128xf32> to vector<8x64xf32>
    %241 = vector.extract_strided_slice %229 {offsets = [0, 128], sizes = [8, 64], strides = [1, 1]} : vector<8x192xf32> to vector<8x64xf32>
    %242 = vector.extract_strided_slice %230 {offsets = [0, 128], sizes = [8, 64], strides = [1, 1]} : vector<8x192xf32> to vector<8x64xf32>
    %243 = vector.broadcast %33 : vector<1x64xf32> to vector<8x64xf32>
    %244 = arith.addf %242, %243 : vector<8x64xf32>
    %245 = arith.mulf %239, %244 : vector<8x64xf32>
    %246 = arith.addf %241, %245 : vector<8x64xf32>
    %247 = math.tanh %246 : vector<8x64xf32>
    %cst_86 = arith.constant 1.000000e+00 : f32
    %248 = vector.broadcast %cst_86 : f32 to vector<8x64xf32>
    %249 = arith.subf %248, %240 : vector<8x64xf32>
    %250 = arith.mulf %249, %247 : vector<8x64xf32>
    %251 = arith.mulf %240, %212 : vector<8x64xf32>
    %252 = arith.addf %250, %251 : vector<8x64xf32>
    %c4_i32_87 = arith.constant 4 : i32
    %c3_i32_88 = arith.constant 3 : i32
    %253 = vector.broadcast %c4_i32_87 : i32 to vector<1x64xi32>
    %254 = vector.broadcast %c3_i32_88 : i32 to vector<1x64xi32>
    %255 = arith.select %22, %253, %254 : vector<1x64xi1>, vector<1x64xi32>
    %256 = vector.broadcast %255 : vector<1x64xi32> to vector<8x64xi32>
    %257 = vector.broadcast %0 : vector<8x1xi32> to vector<8x64xi32>
    %258 = arith.cmpi slt, %256, %257 : vector<8x64xi32>
    %259 = arith.select %258, %252, %212 : vector<8x64xi1>, vector<8x64xf32>
    %cst_89 = arith.constant 0.000000e+00 : f32
    %260 = vector.broadcast %cst_89 : f32 to vector<8x64xf32>
    %261 = arith.select %258, %252, %260 : vector<8x64xi1>, vector<8x64xf32>
    %262 = vector.extract_strided_slice %261 {offsets = [0, 0], sizes = [8, 32], strides = [1, 1]} : vector<8x64xf32> to vector<8x32xf32>
    %c4_90 = arith.constant 4 : index
    %c0_91 = arith.constant 0 : index
    %c0_92 = arith.constant 0 : index
    %263 = vector.load %arg16[%c4_90, %c0_91, %c0_92] : memref<8x8x64xf32, #tpu.memory_space<vmem>>, vector<1x8x32xf32>
    %264 = vector.shape_cast %263 : vector<1x8x32xf32> to vector<8x32xf32>
    %265 = vector.shape_cast %262 : vector<8x32xf32> to vector<1x8x32xf32>
    tpu.vector_store %arg16[%c4_90, %c0_91, %c0_92], %265 {strides = array<i32>} : memref<8x8x64xf32, #tpu.memory_space<vmem>>, vector<1x8x32xf32>,
    %266 = vector.extract_strided_slice %261 {offsets = [0, 32], sizes = [8, 32], strides = [1, 1]} : vector<8x64xf32> to vector<8x32xf32>
    %c3_93 = arith.constant 3 : index
    %c0_94 = arith.constant 0 : index
    %c32_95 = arith.constant 32 : index
    %267 = vector.load %arg16[%c3_93, %c0_94, %c32_95] : memref<8x8x64xf32, #tpu.memory_space<vmem>>, vector<1x8x32xf32>
    %268 = vector.shape_cast %267 : vector<1x8x32xf32> to vector<8x32xf32>
    %269 = vector.shape_cast %266 : vector<8x32xf32> to vector<1x8x32xf32>
    tpu.vector_store %arg16[%c3_93, %c0_94, %c32_95], %269 {strides = array<i32>} : memref<8x8x64xf32, #tpu.memory_space<vmem>>, vector<1x8x32xf32>,
    %c5_96 = arith.constant 5 : index
    %c0_97 = arith.constant 0 : index
    %c0_98 = arith.constant 0 : index
    %270 = vector.load %arg15[%c5_96, %c0_97, %c0_98] : memref<8x8x192xf32, #tpu.memory_space<vmem>>, vector<1x8x192xf32>
    %271 = vector.shape_cast %270 : vector<1x8x192xf32> to vector<8x192xf32>
    %c2_99 = arith.constant 2 : index
    %c0_100 = arith.constant 0 : index
    %c0_101 = arith.constant 0 : index
    %272 = vector.load %arg15[%c2_99, %c0_100, %c0_101] : memref<8x8x192xf32, #tpu.memory_space<vmem>>, vector<1x8x192xf32>
    %273 = vector.shape_cast %272 : vector<1x8x192xf32> to vector<8x192xf32>
    %274 = vector.shape_cast %19 : vector<1x192xi1> to vector<1x192xi1>
    %275 = vector.broadcast %274 : vector<1x192xi1> to vector<8x192xi1>
    %276 = arith.select %275, %271, %273 : vector<8x192xi1>, vector<8x192xf32>
    %cst_102 = arith.constant dense<0.000000e+00> : vector<8x192xf32>
    %277 = tpu.matmul %259, %32, %cst_102 {dimension_numbers = #tpu.dot_dimension_numbers<[1], [0], [0], [1], [0, 0, 1, 1], [], []>} : vector<8x64xf32>, vector<64x192xf32>, vector<8x192xf32> -> vector<8x192xf32>
    %278 = vector.extract_strided_slice %276 {offsets = [0, 0], sizes = [8, 128], strides = [1, 1]} : vector<8x192xf32> to vector<8x128xf32>
    %279 = vector.extract_strided_slice %277 {offsets = [0, 0], sizes = [8, 128], strides = [1, 1]} : vector<8x192xf32> to vector<8x128xf32>
    %280 = arith.addf %278, %279 : vector<8x128xf32>
    %281 = arith.negf %280 : vector<8x128xf32>
    %282 = math.exp %281 : vector<8x128xf32>
    %cst_103 = arith.constant 1.000000e+00 : f32
    %283 = vector.broadcast %cst_103 : f32 to vector<8x128xf32>
    %284 = arith.addf %283, %282 : vector<8x128xf32>
    %285 = arith.divf %283, %284 : vector<8x128xf32>
    %286 = vector.extract_strided_slice %285 {offsets = [0, 0], sizes = [8, 64], strides = [1, 1]} : vector<8x128xf32> to vector<8x64xf32>
    %287 = vector.extract_strided_slice %285 {offsets = [0, 64], sizes = [8, 64], strides = [1, 1]} : vector<8x128xf32> to vector<8x64xf32>
    %288 = vector.extract_strided_slice %276 {offsets = [0, 128], sizes = [8, 64], strides = [1, 1]} : vector<8x192xf32> to vector<8x64xf32>
    %289 = vector.extract_strided_slice %277 {offsets = [0, 128], sizes = [8, 64], strides = [1, 1]} : vector<8x192xf32> to vector<8x64xf32>
    %290 = vector.broadcast %33 : vector<1x64xf32> to vector<8x64xf32>
    %291 = arith.addf %289, %290 : vector<8x64xf32>
    %292 = arith.mulf %286, %291 : vector<8x64xf32>
    %293 = arith.addf %288, %292 : vector<8x64xf32>
    %294 = math.tanh %293 : vector<8x64xf32>
    %cst_104 = arith.constant 1.000000e+00 : f32
    %295 = vector.broadcast %cst_104 : f32 to vector<8x64xf32>
    %296 = arith.subf %295, %287 : vector<8x64xf32>
    %297 = arith.mulf %296, %294 : vector<8x64xf32>
    %298 = arith.mulf %287, %259 : vector<8x64xf32>
    %299 = arith.addf %297, %298 : vector<8x64xf32>
    %c5_i32_105 = arith.constant 5 : i32
    %c2_i32_106 = arith.constant 2 : i32
    %300 = vector.broadcast %c5_i32_105 : i32 to vector<1x64xi32>
    %301 = vector.broadcast %c2_i32_106 : i32 to vector<1x64xi32>
    %302 = arith.select %22, %300, %301 : vector<1x64xi1>, vector<1x64xi32>
    %303 = vector.broadcast %302 : vector<1x64xi32> to vector<8x64xi32>
    %304 = vector.broadcast %0 : vector<8x1xi32> to vector<8x64xi32>
    %305 = arith.cmpi slt, %303, %304 : vector<8x64xi32>
    %306 = arith.select %305, %299, %259 : vector<8x64xi1>, vector<8x64xf32>
    %cst_107 = arith.constant 0.000000e+00 : f32
    %307 = vector.broadcast %cst_107 : f32 to vector<8x64xf32>
    %308 = arith.select %305, %299, %307 : vector<8x64xi1>, vector<8x64xf32>
    %309 = vector.extract_strided_slice %308 {offsets = [0, 0], sizes = [8, 32], strides = [1, 1]} : vector<8x64xf32> to vector<8x32xf32>
    %c5_108 = arith.constant 5 : index
    %c0_109 = arith.constant 0 : index
    %c0_110 = arith.constant 0 : index
    %310 = vector.load %arg16[%c5_108, %c0_109, %c0_110] : memref<8x8x64xf32, #tpu.memory_space<vmem>>, vector<1x8x32xf32>
    %311 = vector.shape_cast %310 : vector<1x8x32xf32> to vector<8x32xf32>
    %312 = vector.shape_cast %309 : vector<8x32xf32> to vector<1x8x32xf32>
    tpu.vector_store %arg16[%c5_108, %c0_109, %c0_110], %312 {strides = array<i32>} : memref<8x8x64xf32, #tpu.memory_space<vmem>>, vector<1x8x32xf32>,
    %313 = vector.extract_strided_slice %308 {offsets = [0, 32], sizes = [8, 32], strides = [1, 1]} : vector<8x64xf32> to vector<8x32xf32>
    %c2_111 = arith.constant 2 : index
    %c0_112 = arith.constant 0 : index
    %c32_113 = arith.constant 32 : index
    %314 = vector.load %arg16[%c2_111, %c0_112, %c32_113] : memref<8x8x64xf32, #tpu.memory_space<vmem>>, vector<1x8x32xf32>
    %315 = vector.shape_cast %314 : vector<1x8x32xf32> to vector<8x32xf32>
    %316 = vector.shape_cast %313 : vector<8x32xf32> to vector<1x8x32xf32>
    tpu.vector_store %arg16[%c2_111, %c0_112, %c32_113], %316 {strides = array<i32>} : memref<8x8x64xf32, #tpu.memory_space<vmem>>, vector<1x8x32xf32>,
    %c6_114 = arith.constant 6 : index
    %c0_115 = arith.constant 0 : index
    %c0_116 = arith.constant 0 : index
    %317 = vector.load %arg15[%c6_114, %c0_115, %c0_116] : memref<8x8x192xf32, #tpu.memory_space<vmem>>, vector<1x8x192xf32>
    %318 = vector.shape_cast %317 : vector<1x8x192xf32> to vector<8x192xf32>
    %c1_117 = arith.constant 1 : index
    %c0_118 = arith.constant 0 : index
    %c0_119 = arith.constant 0 : index
    %319 = vector.load %arg15[%c1_117, %c0_118, %c0_119] : memref<8x8x192xf32, #tpu.memory_space<vmem>>, vector<1x8x192xf32>
    %320 = vector.shape_cast %319 : vector<1x8x192xf32> to vector<8x192xf32>
    %321 = vector.shape_cast %19 : vector<1x192xi1> to vector<1x192xi1>
    %322 = vector.broadcast %321 : vector<1x192xi1> to vector<8x192xi1>
    %323 = arith.select %322, %318, %320 : vector<8x192xi1>, vector<8x192xf32>
    %cst_120 = arith.constant dense<0.000000e+00> : vector<8x192xf32>
    %324 = tpu.matmul %306, %32, %cst_120 {dimension_numbers = #tpu.dot_dimension_numbers<[1], [0], [0], [1], [0, 0, 1, 1], [], []>} : vector<8x64xf32>, vector<64x192xf32>, vector<8x192xf32> -> vector<8x192xf32>
    %325 = vector.extract_strided_slice %323 {offsets = [0, 0], sizes = [8, 128], strides = [1, 1]} : vector<8x192xf32> to vector<8x128xf32>
    %326 = vector.extract_strided_slice %324 {offsets = [0, 0], sizes = [8, 128], strides = [1, 1]} : vector<8x192xf32> to vector<8x128xf32>
    %327 = arith.addf %325, %326 : vector<8x128xf32>
    %328 = arith.negf %327 : vector<8x128xf32>
    %329 = math.exp %328 : vector<8x128xf32>
    %cst_121 = arith.constant 1.000000e+00 : f32
    %330 = vector.broadcast %cst_121 : f32 to vector<8x128xf32>
    %331 = arith.addf %330, %329 : vector<8x128xf32>
    %332 = arith.divf %330, %331 : vector<8x128xf32>
    %333 = vector.extract_strided_slice %332 {offsets = [0, 0], sizes = [8, 64], strides = [1, 1]} : vector<8x128xf32> to vector<8x64xf32>
    %334 = vector.extract_strided_slice %332 {offsets = [0, 64], sizes = [8, 64], strides = [1, 1]} : vector<8x128xf32> to vector<8x64xf32>
    %335 = vector.extract_strided_slice %323 {offsets = [0, 128], sizes = [8, 64], strides = [1, 1]} : vector<8x192xf32> to vector<8x64xf32>
    %336 = vector.extract_strided_slice %324 {offsets = [0, 128], sizes = [8, 64], strides = [1, 1]} : vector<8x192xf32> to vector<8x64xf32>
    %337 = vector.broadcast %33 : vector<1x64xf32> to vector<8x64xf32>
    %338 = arith.addf %336, %337 : vector<8x64xf32>
    %339 = arith.mulf %333, %338 : vector<8x64xf32>
    %340 = arith.addf %335, %339 : vector<8x64xf32>
    %341 = math.tanh %340 : vector<8x64xf32>
    %cst_122 = arith.constant 1.000000e+00 : f32
    %342 = vector.broadcast %cst_122 : f32 to vector<8x64xf32>
    %343 = arith.subf %342, %334 : vector<8x64xf32>
    %344 = arith.mulf %343, %341 : vector<8x64xf32>
    %345 = arith.mulf %334, %306 : vector<8x64xf32>
    %346 = arith.addf %344, %345 : vector<8x64xf32>
    %c6_i32_123 = arith.constant 6 : i32
    %c1_i32_124 = arith.constant 1 : i32
    %347 = vector.broadcast %c6_i32_123 : i32 to vector<1x64xi32>
    %348 = vector.broadcast %c1_i32_124 : i32 to vector<1x64xi32>
    %349 = arith.select %22, %347, %348 : vector<1x64xi1>, vector<1x64xi32>
    %350 = vector.broadcast %349 : vector<1x64xi32> to vector<8x64xi32>
    %351 = vector.broadcast %0 : vector<8x1xi32> to vector<8x64xi32>
    %352 = arith.cmpi slt, %350, %351 : vector<8x64xi32>
    %353 = arith.select %352, %346, %306 : vector<8x64xi1>, vector<8x64xf32>
    %cst_125 = arith.constant 0.000000e+00 : f32
    %354 = vector.broadcast %cst_125 : f32 to vector<8x64xf32>
    %355 = arith.select %352, %346, %354 : vector<8x64xi1>, vector<8x64xf32>
    %356 = vector.extract_strided_slice %355 {offsets = [0, 0], sizes = [8, 32], strides = [1, 1]} : vector<8x64xf32> to vector<8x32xf32>
    %c6_126 = arith.constant 6 : index
    %c0_127 = arith.constant 0 : index
    %c0_128 = arith.constant 0 : index
    %357 = vector.load %arg16[%c6_126, %c0_127, %c0_128] : memref<8x8x64xf32, #tpu.memory_space<vmem>>, vector<1x8x32xf32>
    %358 = vector.shape_cast %357 : vector<1x8x32xf32> to vector<8x32xf32>
    %359 = vector.shape_cast %356 : vector<8x32xf32> to vector<1x8x32xf32>
    tpu.vector_store %arg16[%c6_126, %c0_127, %c0_128], %359 {strides = array<i32>} : memref<8x8x64xf32, #tpu.memory_space<vmem>>, vector<1x8x32xf32>,
    %360 = vector.extract_strided_slice %355 {offsets = [0, 32], sizes = [8, 32], strides = [1, 1]} : vector<8x64xf32> to vector<8x32xf32>
    %c1_129 = arith.constant 1 : index
    %c0_130 = arith.constant 0 : index
    %c32_131 = arith.constant 32 : index
    %361 = vector.load %arg16[%c1_129, %c0_130, %c32_131] : memref<8x8x64xf32, #tpu.memory_space<vmem>>, vector<1x8x32xf32>
    %362 = vector.shape_cast %361 : vector<1x8x32xf32> to vector<8x32xf32>
    %363 = vector.shape_cast %360 : vector<8x32xf32> to vector<1x8x32xf32>
    tpu.vector_store %arg16[%c1_129, %c0_130, %c32_131], %363 {strides = array<i32>} : memref<8x8x64xf32, #tpu.memory_space<vmem>>, vector<1x8x32xf32>,
    %c7_132 = arith.constant 7 : index
    %c0_133 = arith.constant 0 : index
    %c0_134 = arith.constant 0 : index
    %364 = vector.load %arg15[%c7_132, %c0_133, %c0_134] : memref<8x8x192xf32, #tpu.memory_space<vmem>>, vector<1x8x192xf32>
    %365 = vector.shape_cast %364 : vector<1x8x192xf32> to vector<8x192xf32>
    %c0_135 = arith.constant 0 : index
    %c0_136 = arith.constant 0 : index
    %c0_137 = arith.constant 0 : index
    %366 = vector.load %arg15[%c0_135, %c0_136, %c0_137] : memref<8x8x192xf32, #tpu.memory_space<vmem>>, vector<1x8x192xf32>
    %367 = vector.shape_cast %366 : vector<1x8x192xf32> to vector<8x192xf32>
    %368 = vector.shape_cast %19 : vector<1x192xi1> to vector<1x192xi1>
    %369 = vector.broadcast %368 : vector<1x192xi1> to vector<8x192xi1>
    %370 = arith.select %369, %365, %367 : vector<8x192xi1>, vector<8x192xf32>
    %cst_138 = arith.constant dense<0.000000e+00> : vector<8x192xf32>
    %371 = tpu.matmul %353, %32, %cst_138 {dimension_numbers = #tpu.dot_dimension_numbers<[1], [0], [0], [1], [0, 0, 1, 1], [], []>} : vector<8x64xf32>, vector<64x192xf32>, vector<8x192xf32> -> vector<8x192xf32>
    %372 = vector.extract_strided_slice %370 {offsets = [0, 0], sizes = [8, 128], strides = [1, 1]} : vector<8x192xf32> to vector<8x128xf32>
    %373 = vector.extract_strided_slice %371 {offsets = [0, 0], sizes = [8, 128], strides = [1, 1]} : vector<8x192xf32> to vector<8x128xf32>
    %374 = arith.addf %372, %373 : vector<8x128xf32>
    %375 = arith.negf %374 : vector<8x128xf32>
    %376 = math.exp %375 : vector<8x128xf32>
    %cst_139 = arith.constant 1.000000e+00 : f32
    %377 = vector.broadcast %cst_139 : f32 to vector<8x128xf32>
    %378 = arith.addf %377, %376 : vector<8x128xf32>
    %379 = arith.divf %377, %378 : vector<8x128xf32>
    %380 = vector.extract_strided_slice %379 {offsets = [0, 0], sizes = [8, 64], strides = [1, 1]} : vector<8x128xf32> to vector<8x64xf32>
    %381 = vector.extract_strided_slice %379 {offsets = [0, 64], sizes = [8, 64], strides = [1, 1]} : vector<8x128xf32> to vector<8x64xf32>
    %382 = vector.extract_strided_slice %370 {offsets = [0, 128], sizes = [8, 64], strides = [1, 1]} : vector<8x192xf32> to vector<8x64xf32>
    %383 = vector.extract_strided_slice %371 {offsets = [0, 128], sizes = [8, 64], strides = [1, 1]} : vector<8x192xf32> to vector<8x64xf32>
    %384 = vector.broadcast %33 : vector<1x64xf32> to vector<8x64xf32>
    %385 = arith.addf %383, %384 : vector<8x64xf32>
    %386 = arith.mulf %380, %385 : vector<8x64xf32>
    %387 = arith.addf %382, %386 : vector<8x64xf32>
    %388 = math.tanh %387 : vector<8x64xf32>
    %cst_140 = arith.constant 1.000000e+00 : f32
    %389 = vector.broadcast %cst_140 : f32 to vector<8x64xf32>
    %390 = arith.subf %389, %381 : vector<8x64xf32>
    %391 = arith.mulf %390, %388 : vector<8x64xf32>
    %392 = arith.mulf %381, %353 : vector<8x64xf32>
    %393 = arith.addf %391, %392 : vector<8x64xf32>
    %c7_i32_141 = arith.constant 7 : i32
    %c0_i32_142 = arith.constant 0 : i32
    %394 = vector.broadcast %c7_i32_141 : i32 to vector<1x64xi32>
    %395 = vector.broadcast %c0_i32_142 : i32 to vector<1x64xi32>
    %396 = arith.select %22, %394, %395 : vector<1x64xi1>, vector<1x64xi32>
    %397 = vector.broadcast %396 : vector<1x64xi32> to vector<8x64xi32>
    %398 = vector.broadcast %0 : vector<8x1xi32> to vector<8x64xi32>
    %399 = arith.cmpi slt, %397, %398 : vector<8x64xi32>
    %cst_143 = arith.constant 0.000000e+00 : f32
    %400 = vector.broadcast %cst_143 : f32 to vector<8x64xf32>
    %401 = arith.select %399, %393, %400 : vector<8x64xi1>, vector<8x64xf32>
    %402 = vector.extract_strided_slice %401 {offsets = [0, 0], sizes = [8, 32], strides = [1, 1]} : vector<8x64xf32> to vector<8x32xf32>
    %c7_144 = arith.constant 7 : index
    %c0_145 = arith.constant 0 : index
    %c0_146 = arith.constant 0 : index
    %403 = vector.load %arg16[%c7_144, %c0_145, %c0_146] : memref<8x8x64xf32, #tpu.memory_space<vmem>>, vector<1x8x32xf32>
    %404 = vector.shape_cast %403 : vector<1x8x32xf32> to vector<8x32xf32>
    %405 = vector.shape_cast %402 : vector<8x32xf32> to vector<1x8x32xf32>
    tpu.vector_store %arg16[%c7_144, %c0_145, %c0_146], %405 {strides = array<i32>} : memref<8x8x64xf32, #tpu.memory_space<vmem>>, vector<1x8x32xf32>,
    %406 = vector.extract_strided_slice %401 {offsets = [0, 32], sizes = [8, 32], strides = [1, 1]} : vector<8x64xf32> to vector<8x32xf32>
    %c0_147 = arith.constant 0 : index
    %c0_148 = arith.constant 0 : index
    %c32_149 = arith.constant 32 : index
    %407 = vector.load %arg16[%c0_147, %c0_148, %c32_149] : memref<8x8x64xf32, #tpu.memory_space<vmem>>, vector<1x8x32xf32>
    %408 = vector.shape_cast %407 : vector<1x8x32xf32> to vector<8x32xf32>
    %409 = vector.shape_cast %406 : vector<8x32xf32> to vector<1x8x32xf32>
    tpu.vector_store %arg16[%c0_147, %c0_148, %c32_149], %409 {strides = array<i32>} : memref<8x8x64xf32, #tpu.memory_space<vmem>>, vector<1x8x32xf32>,
    %c0_150 = arith.constant 0 : index
    %c0_151 = arith.constant 0 : index
    %c0_152 = arith.constant 0 : index
    %410 = vector.load %arg16[%c0_150, %c0_151, %c0_152] : memref<8x8x64xf32, #tpu.memory_space<vmem>>, vector<8x8x64xf32>
    %411 = vector.shape_cast %410 : vector<8x8x64xf32> to vector<64x64xf32>
    %c0_153 = arith.constant 0 : index
    %c0_154 = arith.constant 0 : index
    %412 = vector.load %arg7[%c0_153, %c0_154] : memref<64x192xf32, #tpu.memory_space<vmem>>, vector<64x192xf32>
    %cst_155 = arith.constant dense<0.000000e+00> : vector<64x192xf32>
    %413 = tpu.matmul %411, %412, %cst_155 {dimension_numbers = #tpu.dot_dimension_numbers<[1], [0], [0], [1], [0, 0, 1, 1], [], []>} : vector<64x64xf32>, vector<64x192xf32>, vector<64x192xf32> -> vector<64x192xf32>
    %c0_156 = arith.constant 0 : index
    %c0_157 = arith.constant 0 : index
    %414 = vector.load %arg9[%c0_156, %c0_157] : memref<1x192xf32, #tpu.memory_space<vmem>>, vector<1x192xf32>
    %415 = vector.broadcast %414 : vector<1x192xf32> to vector<64x192xf32>
    %416 = arith.addf %413, %415 : vector<64x192xf32>
    %417 = vector.shape_cast %416 : vector<64x192xf32> to vector<8x8x192xf32>
    %c0_158 = arith.constant 0 : index
    %c0_159 = arith.constant 0 : index
    %c0_160 = arith.constant 0 : index
    %418 = vector.load %arg15[%c0_158, %c0_159, %c0_160] : memref<8x8x192xf32, #tpu.memory_space<vmem>>, vector<8x8x192xf32>
    tpu.vector_store %arg15[%c0_158, %c0_159, %c0_160], %417 {strides = array<i32>} : memref<8x8x192xf32, #tpu.memory_space<vmem>>, vector<8x8x192xf32>,
    %c0_161 = arith.constant 0 : index
    %c0_162 = arith.constant 0 : index
    %419 = vector.load %arg8[%c0_161, %c0_162] : memref<64x192xf32, #tpu.memory_space<vmem>>, vector<64x192xf32>
    %c0_163 = arith.constant 0 : index
    %c0_164 = arith.constant 0 : index
    %420 = vector.load %arg10[%c0_163, %c0_164] : memref<1x64xf32, #tpu.memory_space<vmem>>, vector<1x64xf32>
    %cst_165 = arith.constant 0.000000e+00 : f32
    %421 = vector.broadcast %cst_165 : f32 to vector<8x64xf32>
    %c0_166 = arith.constant 0 : index
    %c0_167 = arith.constant 0 : index
    %c0_168 = arith.constant 0 : index
    %422 = vector.load %arg15[%c0_166, %c0_167, %c0_168] : memref<8x8x192xf32, #tpu.memory_space<vmem>>, vector<1x8x192xf32>
    %423 = vector.shape_cast %422 : vector<1x8x192xf32> to vector<8x192xf32>
    %c7_169 = arith.constant 7 : index
    %c0_170 = arith.constant 0 : index
    %c0_171 = arith.constant 0 : index
    %424 = vector.load %arg15[%c7_169, %c0_170, %c0_171] : memref<8x8x192xf32, #tpu.memory_space<vmem>>, vector<1x8x192xf32>
    %425 = vector.shape_cast %424 : vector<1x8x192xf32> to vector<8x192xf32>
    %426 = vector.shape_cast %19 : vector<1x192xi1> to vector<1x192xi1>
    %427 = vector.broadcast %426 : vector<1x192xi1> to vector<8x192xi1>
    %428 = arith.select %427, %423, %425 : vector<8x192xi1>, vector<8x192xf32>
    %cst_172 = arith.constant dense<0.000000e+00> : vector<8x192xf32>
    %429 = tpu.matmul %421, %419, %cst_172 {dimension_numbers = #tpu.dot_dimension_numbers<[1], [0], [0], [1], [0, 0, 1, 1], [], []>} : vector<8x64xf32>, vector<64x192xf32>, vector<8x192xf32> -> vector<8x192xf32>
    %430 = vector.extract_strided_slice %428 {offsets = [0, 0], sizes = [8, 128], strides = [1, 1]} : vector<8x192xf32> to vector<8x128xf32>
    %431 = vector.extract_strided_slice %429 {offsets = [0, 0], sizes = [8, 128], strides = [1, 1]} : vector<8x192xf32> to vector<8x128xf32>
    %432 = arith.addf %430, %431 : vector<8x128xf32>
    %433 = arith.negf %432 : vector<8x128xf32>
    %434 = math.exp %433 : vector<8x128xf32>
    %cst_173 = arith.constant 1.000000e+00 : f32
    %435 = vector.broadcast %cst_173 : f32 to vector<8x128xf32>
    %436 = arith.addf %435, %434 : vector<8x128xf32>
    %437 = arith.divf %435, %436 : vector<8x128xf32>
    %438 = vector.extract_strided_slice %437 {offsets = [0, 0], sizes = [8, 64], strides = [1, 1]} : vector<8x128xf32> to vector<8x64xf32>
    %439 = vector.extract_strided_slice %437 {offsets = [0, 64], sizes = [8, 64], strides = [1, 1]} : vector<8x128xf32> to vector<8x64xf32>
    %440 = vector.extract_strided_slice %428 {offsets = [0, 128], sizes = [8, 64], strides = [1, 1]} : vector<8x192xf32> to vector<8x64xf32>
    %441 = vector.extract_strided_slice %429 {offsets = [0, 128], sizes = [8, 64], strides = [1, 1]} : vector<8x192xf32> to vector<8x64xf32>
    %442 = vector.broadcast %420 : vector<1x64xf32> to vector<8x64xf32>
    %443 = arith.addf %441, %442 : vector<8x64xf32>
    %444 = arith.mulf %438, %443 : vector<8x64xf32>
    %445 = arith.addf %440, %444 : vector<8x64xf32>
    %446 = math.tanh %445 : vector<8x64xf32>
    %cst_174 = arith.constant 1.000000e+00 : f32
    %447 = vector.broadcast %cst_174 : f32 to vector<8x64xf32>
    %448 = arith.subf %447, %439 : vector<8x64xf32>
    %449 = arith.mulf %448, %446 : vector<8x64xf32>
    %450 = arith.mulf %439, %421 : vector<8x64xf32>
    %451 = arith.addf %449, %450 : vector<8x64xf32>
    %c0_i32_175 = arith.constant 0 : i32
    %c7_i32_176 = arith.constant 7 : i32
    %452 = vector.broadcast %c0_i32_175 : i32 to vector<1x64xi32>
    %453 = vector.broadcast %c7_i32_176 : i32 to vector<1x64xi32>
    %454 = arith.select %22, %452, %453 : vector<1x64xi1>, vector<1x64xi32>
    %455 = vector.broadcast %454 : vector<1x64xi32> to vector<8x64xi32>
    %456 = vector.broadcast %0 : vector<8x1xi32> to vector<8x64xi32>
    %457 = arith.cmpi slt, %455, %456 : vector<8x64xi32>
    %458 = arith.select %457, %451, %421 : vector<8x64xi1>, vector<8x64xf32>
    %cst_177 = arith.constant 0.000000e+00 : f32
    %459 = vector.broadcast %cst_177 : f32 to vector<8x64xf32>
    %460 = arith.select %457, %451, %459 : vector<8x64xi1>, vector<8x64xf32>
    %461 = vector.extract_strided_slice %460 {offsets = [0, 0], sizes = [8, 32], strides = [1, 1]} : vector<8x64xf32> to vector<8x32xf32>
    %c0_178 = arith.constant 0 : index
    %c0_179 = arith.constant 0 : index
    %c0_180 = arith.constant 0 : index
    %462 = vector.load %arg17[%c0_178, %c0_179, %c0_180] : memref<8x8x64xf32, #tpu.memory_space<vmem>>, vector<1x8x32xf32>
    %463 = vector.shape_cast %462 : vector<1x8x32xf32> to vector<8x32xf32>
    %464 = vector.shape_cast %461 : vector<8x32xf32> to vector<1x8x32xf32>
    tpu.vector_store %arg17[%c0_178, %c0_179, %c0_180], %464 {strides = array<i32>} : memref<8x8x64xf32, #tpu.memory_space<vmem>>, vector<1x8x32xf32>,
    %465 = vector.extract_strided_slice %460 {offsets = [0, 32], sizes = [8, 32], strides = [1, 1]} : vector<8x64xf32> to vector<8x32xf32>
    %c7_181 = arith.constant 7 : index
    %c0_182 = arith.constant 0 : index
    %c32_183 = arith.constant 32 : index
    %466 = vector.load %arg17[%c7_181, %c0_182, %c32_183] : memref<8x8x64xf32, #tpu.memory_space<vmem>>, vector<1x8x32xf32>
    %467 = vector.shape_cast %466 : vector<1x8x32xf32> to vector<8x32xf32>
    %468 = vector.shape_cast %465 : vector<8x32xf32> to vector<1x8x32xf32>
    tpu.vector_store %arg17[%c7_181, %c0_182, %c32_183], %468 {strides = array<i32>} : memref<8x8x64xf32, #tpu.memory_space<vmem>>, vector<1x8x32xf32>,
    %c1_184 = arith.constant 1 : index
    %c0_185 = arith.constant 0 : index
    %c0_186 = arith.constant 0 : index
    %469 = vector.load %arg15[%c1_184, %c0_185, %c0_186] : memref<8x8x192xf32, #tpu.memory_space<vmem>>, vector<1x8x192xf32>
    %470 = vector.shape_cast %469 : vector<1x8x192xf32> to vector<8x192xf32>
    %c6_187 = arith.constant 6 : index
    %c0_188 = arith.constant 0 : index
    %c0_189 = arith.constant 0 : index
    %471 = vector.load %arg15[%c6_187, %c0_188, %c0_189] : memref<8x8x192xf32, #tpu.memory_space<vmem>>, vector<1x8x192xf32>
    %472 = vector.shape_cast %471 : vector<1x8x192xf32> to vector<8x192xf32>
    %473 = vector.shape_cast %19 : vector<1x192xi1> to vector<1x192xi1>
    %474 = vector.broadcast %473 : vector<1x192xi1> to vector<8x192xi1>
    %475 = arith.select %474, %470, %472 : vector<8x192xi1>, vector<8x192xf32>
    %cst_190 = arith.constant dense<0.000000e+00> : vector<8x192xf32>
    %476 = tpu.matmul %458, %419, %cst_190 {dimension_numbers = #tpu.dot_dimension_numbers<[1], [0], [0], [1], [0, 0, 1, 1], [], []>} : vector<8x64xf32>, vector<64x192xf32>, vector<8x192xf32> -> vector<8x192xf32>
    %477 = vector.extract_strided_slice %475 {offsets = [0, 0], sizes = [8, 128], strides = [1, 1]} : vector<8x192xf32> to vector<8x128xf32>
    %478 = vector.extract_strided_slice %476 {offsets = [0, 0], sizes = [8, 128], strides = [1, 1]} : vector<8x192xf32> to vector<8x128xf32>
    %479 = arith.addf %477, %478 : vector<8x128xf32>
    %480 = arith.negf %479 : vector<8x128xf32>
    %481 = math.exp %480 : vector<8x128xf32>
    %cst_191 = arith.constant 1.000000e+00 : f32
    %482 = vector.broadcast %cst_191 : f32 to vector<8x128xf32>
    %483 = arith.addf %482, %481 : vector<8x128xf32>
    %484 = arith.divf %482, %483 : vector<8x128xf32>
    %485 = vector.extract_strided_slice %484 {offsets = [0, 0], sizes = [8, 64], strides = [1, 1]} : vector<8x128xf32> to vector<8x64xf32>
    %486 = vector.extract_strided_slice %484 {offsets = [0, 64], sizes = [8, 64], strides = [1, 1]} : vector<8x128xf32> to vector<8x64xf32>
    %487 = vector.extract_strided_slice %475 {offsets = [0, 128], sizes = [8, 64], strides = [1, 1]} : vector<8x192xf32> to vector<8x64xf32>
    %488 = vector.extract_strided_slice %476 {offsets = [0, 128], sizes = [8, 64], strides = [1, 1]} : vector<8x192xf32> to vector<8x64xf32>
    %489 = vector.broadcast %420 : vector<1x64xf32> to vector<8x64xf32>
    %490 = arith.addf %488, %489 : vector<8x64xf32>
    %491 = arith.mulf %485, %490 : vector<8x64xf32>
    %492 = arith.addf %487, %491 : vector<8x64xf32>
    %493 = math.tanh %492 : vector<8x64xf32>
    %cst_192 = arith.constant 1.000000e+00 : f32
    %494 = vector.broadcast %cst_192 : f32 to vector<8x64xf32>
    %495 = arith.subf %494, %486 : vector<8x64xf32>
    %496 = arith.mulf %495, %493 : vector<8x64xf32>
    %497 = arith.mulf %486, %458 : vector<8x64xf32>
    %498 = arith.addf %496, %497 : vector<8x64xf32>
    %c1_i32_193 = arith.constant 1 : i32
    %c6_i32_194 = arith.constant 6 : i32
    %499 = vector.broadcast %c1_i32_193 : i32 to vector<1x64xi32>
    %500 = vector.broadcast %c6_i32_194 : i32 to vector<1x64xi32>
    %501 = arith.select %22, %499, %500 : vector<1x64xi1>, vector<1x64xi32>
    %502 = vector.broadcast %501 : vector<1x64xi32> to vector<8x64xi32>
    %503 = vector.broadcast %0 : vector<8x1xi32> to vector<8x64xi32>
    %504 = arith.cmpi slt, %502, %503 : vector<8x64xi32>
    %505 = arith.select %504, %498, %458 : vector<8x64xi1>, vector<8x64xf32>
    %cst_195 = arith.constant 0.000000e+00 : f32
    %506 = vector.broadcast %cst_195 : f32 to vector<8x64xf32>
    %507 = arith.select %504, %498, %506 : vector<8x64xi1>, vector<8x64xf32>
    %508 = vector.extract_strided_slice %507 {offsets = [0, 0], sizes = [8, 32], strides = [1, 1]} : vector<8x64xf32> to vector<8x32xf32>
    %c1_196 = arith.constant 1 : index
    %c0_197 = arith.constant 0 : index
    %c0_198 = arith.constant 0 : index
    %509 = vector.load %arg17[%c1_196, %c0_197, %c0_198] : memref<8x8x64xf32, #tpu.memory_space<vmem>>, vector<1x8x32xf32>
    %510 = vector.shape_cast %509 : vector<1x8x32xf32> to vector<8x32xf32>
    %511 = vector.shape_cast %508 : vector<8x32xf32> to vector<1x8x32xf32>
    tpu.vector_store %arg17[%c1_196, %c0_197, %c0_198], %511 {strides = array<i32>} : memref<8x8x64xf32, #tpu.memory_space<vmem>>, vector<1x8x32xf32>,
    %512 = vector.extract_strided_slice %507 {offsets = [0, 32], sizes = [8, 32], strides = [1, 1]} : vector<8x64xf32> to vector<8x32xf32>
    %c6_199 = arith.constant 6 : index
    %c0_200 = arith.constant 0 : index
    %c32_201 = arith.constant 32 : index
    %513 = vector.load %arg17[%c6_199, %c0_200, %c32_201] : memref<8x8x64xf32, #tpu.memory_space<vmem>>, vector<1x8x32xf32>
    %514 = vector.shape_cast %513 : vector<1x8x32xf32> to vector<8x32xf32>
    %515 = vector.shape_cast %512 : vector<8x32xf32> to vector<1x8x32xf32>
    tpu.vector_store %arg17[%c6_199, %c0_200, %c32_201], %515 {strides = array<i32>} : memref<8x8x64xf32, #tpu.memory_space<vmem>>, vector<1x8x32xf32>,
    %c2_202 = arith.constant 2 : index
    %c0_203 = arith.constant 0 : index
    %c0_204 = arith.constant 0 : index
    %516 = vector.load %arg15[%c2_202, %c0_203, %c0_204] : memref<8x8x192xf32, #tpu.memory_space<vmem>>, vector<1x8x192xf32>
    %517 = vector.shape_cast %516 : vector<1x8x192xf32> to vector<8x192xf32>
    %c5_205 = arith.constant 5 : index
    %c0_206 = arith.constant 0 : index
    %c0_207 = arith.constant 0 : index
    %518 = vector.load %arg15[%c5_205, %c0_206, %c0_207] : memref<8x8x192xf32, #tpu.memory_space<vmem>>, vector<1x8x192xf32>
    %519 = vector.shape_cast %518 : vector<1x8x192xf32> to vector<8x192xf32>
    %520 = vector.shape_cast %19 : vector<1x192xi1> to vector<1x192xi1>
    %521 = vector.broadcast %520 : vector<1x192xi1> to vector<8x192xi1>
    %522 = arith.select %521, %517, %519 : vector<8x192xi1>, vector<8x192xf32>
    %cst_208 = arith.constant dense<0.000000e+00> : vector<8x192xf32>
    %523 = tpu.matmul %505, %419, %cst_208 {dimension_numbers = #tpu.dot_dimension_numbers<[1], [0], [0], [1], [0, 0, 1, 1], [], []>} : vector<8x64xf32>, vector<64x192xf32>, vector<8x192xf32> -> vector<8x192xf32>
    %524 = vector.extract_strided_slice %522 {offsets = [0, 0], sizes = [8, 128], strides = [1, 1]} : vector<8x192xf32> to vector<8x128xf32>
    %525 = vector.extract_strided_slice %523 {offsets = [0, 0], sizes = [8, 128], strides = [1, 1]} : vector<8x192xf32> to vector<8x128xf32>
    %526 = arith.addf %524, %525 : vector<8x128xf32>
    %527 = arith.negf %526 : vector<8x128xf32>
    %528 = math.exp %527 : vector<8x128xf32>
    %cst_209 = arith.constant 1.000000e+00 : f32
    %529 = vector.broadcast %cst_209 : f32 to vector<8x128xf32>
    %530 = arith.addf %529, %528 : vector<8x128xf32>
    %531 = arith.divf %529, %530 : vector<8x128xf32>
    %532 = vector.extract_strided_slice %531 {offsets = [0, 0], sizes = [8, 64], strides = [1, 1]} : vector<8x128xf32> to vector<8x64xf32>
    %533 = vector.extract_strided_slice %531 {offsets = [0, 64], sizes = [8, 64], strides = [1, 1]} : vector<8x128xf32> to vector<8x64xf32>
    %534 = vector.extract_strided_slice %522 {offsets = [0, 128], sizes = [8, 64], strides = [1, 1]} : vector<8x192xf32> to vector<8x64xf32>
    %535 = vector.extract_strided_slice %523 {offsets = [0, 128], sizes = [8, 64], strides = [1, 1]} : vector<8x192xf32> to vector<8x64xf32>
    %536 = vector.broadcast %420 : vector<1x64xf32> to vector<8x64xf32>
    %537 = arith.addf %535, %536 : vector<8x64xf32>
    %538 = arith.mulf %532, %537 : vector<8x64xf32>
    %539 = arith.addf %534, %538 : vector<8x64xf32>
    %540 = math.tanh %539 : vector<8x64xf32>
    %cst_210 = arith.constant 1.000000e+00 : f32
    %541 = vector.broadcast %cst_210 : f32 to vector<8x64xf32>
    %542 = arith.subf %541, %533 : vector<8x64xf32>
    %543 = arith.mulf %542, %540 : vector<8x64xf32>
    %544 = arith.mulf %533, %505 : vector<8x64xf32>
    %545 = arith.addf %543, %544 : vector<8x64xf32>
    %c2_i32_211 = arith.constant 2 : i32
    %c5_i32_212 = arith.constant 5 : i32
    %546 = vector.broadcast %c2_i32_211 : i32 to vector<1x64xi32>
    %547 = vector.broadcast %c5_i32_212 : i32 to vector<1x64xi32>
    %548 = arith.select %22, %546, %547 : vector<1x64xi1>, vector<1x64xi32>
    %549 = vector.broadcast %548 : vector<1x64xi32> to vector<8x64xi32>
    %550 = vector.broadcast %0 : vector<8x1xi32> to vector<8x64xi32>
    %551 = arith.cmpi slt, %549, %550 : vector<8x64xi32>
    %552 = arith.select %551, %545, %505 : vector<8x64xi1>, vector<8x64xf32>
    %cst_213 = arith.constant 0.000000e+00 : f32
    %553 = vector.broadcast %cst_213 : f32 to vector<8x64xf32>
    %554 = arith.select %551, %545, %553 : vector<8x64xi1>, vector<8x64xf32>
    %555 = vector.extract_strided_slice %554 {offsets = [0, 0], sizes = [8, 32], strides = [1, 1]} : vector<8x64xf32> to vector<8x32xf32>
    %c2_214 = arith.constant 2 : index
    %c0_215 = arith.constant 0 : index
    %c0_216 = arith.constant 0 : index
    %556 = vector.load %arg17[%c2_214, %c0_215, %c0_216] : memref<8x8x64xf32, #tpu.memory_space<vmem>>, vector<1x8x32xf32>
    %557 = vector.shape_cast %556 : vector<1x8x32xf32> to vector<8x32xf32>
    %558 = vector.shape_cast %555 : vector<8x32xf32> to vector<1x8x32xf32>
    tpu.vector_store %arg17[%c2_214, %c0_215, %c0_216], %558 {strides = array<i32>} : memref<8x8x64xf32, #tpu.memory_space<vmem>>, vector<1x8x32xf32>,
    %559 = vector.extract_strided_slice %554 {offsets = [0, 32], sizes = [8, 32], strides = [1, 1]} : vector<8x64xf32> to vector<8x32xf32>
    %c5_217 = arith.constant 5 : index
    %c0_218 = arith.constant 0 : index
    %c32_219 = arith.constant 32 : index
    %560 = vector.load %arg17[%c5_217, %c0_218, %c32_219] : memref<8x8x64xf32, #tpu.memory_space<vmem>>, vector<1x8x32xf32>
    %561 = vector.shape_cast %560 : vector<1x8x32xf32> to vector<8x32xf32>
    %562 = vector.shape_cast %559 : vector<8x32xf32> to vector<1x8x32xf32>
    tpu.vector_store %arg17[%c5_217, %c0_218, %c32_219], %562 {strides = array<i32>} : memref<8x8x64xf32, #tpu.memory_space<vmem>>, vector<1x8x32xf32>,
    %c3_220 = arith.constant 3 : index
    %c0_221 = arith.constant 0 : index
    %c0_222 = arith.constant 0 : index
    %563 = vector.load %arg15[%c3_220, %c0_221, %c0_222] : memref<8x8x192xf32, #tpu.memory_space<vmem>>, vector<1x8x192xf32>
    %564 = vector.shape_cast %563 : vector<1x8x192xf32> to vector<8x192xf32>
    %c4_223 = arith.constant 4 : index
    %c0_224 = arith.constant 0 : index
    %c0_225 = arith.constant 0 : index
    %565 = vector.load %arg15[%c4_223, %c0_224, %c0_225] : memref<8x8x192xf32, #tpu.memory_space<vmem>>, vector<1x8x192xf32>
    %566 = vector.shape_cast %565 : vector<1x8x192xf32> to vector<8x192xf32>
    %567 = vector.shape_cast %19 : vector<1x192xi1> to vector<1x192xi1>
    %568 = vector.broadcast %567 : vector<1x192xi1> to vector<8x192xi1>
    %569 = arith.select %568, %564, %566 : vector<8x192xi1>, vector<8x192xf32>
    %cst_226 = arith.constant dense<0.000000e+00> : vector<8x192xf32>
    %570 = tpu.matmul %552, %419, %cst_226 {dimension_numbers = #tpu.dot_dimension_numbers<[1], [0], [0], [1], [0, 0, 1, 1], [], []>} : vector<8x64xf32>, vector<64x192xf32>, vector<8x192xf32> -> vector<8x192xf32>
    %571 = vector.extract_strided_slice %569 {offsets = [0, 0], sizes = [8, 128], strides = [1, 1]} : vector<8x192xf32> to vector<8x128xf32>
    %572 = vector.extract_strided_slice %570 {offsets = [0, 0], sizes = [8, 128], strides = [1, 1]} : vector<8x192xf32> to vector<8x128xf32>
    %573 = arith.addf %571, %572 : vector<8x128xf32>
    %574 = arith.negf %573 : vector<8x128xf32>
    %575 = math.exp %574 : vector<8x128xf32>
    %cst_227 = arith.constant 1.000000e+00 : f32
    %576 = vector.broadcast %cst_227 : f32 to vector<8x128xf32>
    %577 = arith.addf %576, %575 : vector<8x128xf32>
    %578 = arith.divf %576, %577 : vector<8x128xf32>
    %579 = vector.extract_strided_slice %578 {offsets = [0, 0], sizes = [8, 64], strides = [1, 1]} : vector<8x128xf32> to vector<8x64xf32>
    %580 = vector.extract_strided_slice %578 {offsets = [0, 64], sizes = [8, 64], strides = [1, 1]} : vector<8x128xf32> to vector<8x64xf32>
    %581 = vector.extract_strided_slice %569 {offsets = [0, 128], sizes = [8, 64], strides = [1, 1]} : vector<8x192xf32> to vector<8x64xf32>
    %582 = vector.extract_strided_slice %570 {offsets = [0, 128], sizes = [8, 64], strides = [1, 1]} : vector<8x192xf32> to vector<8x64xf32>
    %583 = vector.broadcast %420 : vector<1x64xf32> to vector<8x64xf32>
    %584 = arith.addf %582, %583 : vector<8x64xf32>
    %585 = arith.mulf %579, %584 : vector<8x64xf32>
    %586 = arith.addf %581, %585 : vector<8x64xf32>
    %587 = math.tanh %586 : vector<8x64xf32>
    %cst_228 = arith.constant 1.000000e+00 : f32
    %588 = vector.broadcast %cst_228 : f32 to vector<8x64xf32>
    %589 = arith.subf %588, %580 : vector<8x64xf32>
    %590 = arith.mulf %589, %587 : vector<8x64xf32>
    %591 = arith.mulf %580, %552 : vector<8x64xf32>
    %592 = arith.addf %590, %591 : vector<8x64xf32>
    %c3_i32_229 = arith.constant 3 : i32
    %c4_i32_230 = arith.constant 4 : i32
    %593 = vector.broadcast %c3_i32_229 : i32 to vector<1x64xi32>
    %594 = vector.broadcast %c4_i32_230 : i32 to vector<1x64xi32>
    %595 = arith.select %22, %593, %594 : vector<1x64xi1>, vector<1x64xi32>
    %596 = vector.broadcast %595 : vector<1x64xi32> to vector<8x64xi32>
    %597 = vector.broadcast %0 : vector<8x1xi32> to vector<8x64xi32>
    %598 = arith.cmpi slt, %596, %597 : vector<8x64xi32>
    %599 = arith.select %598, %592, %552 : vector<8x64xi1>, vector<8x64xf32>
    %cst_231 = arith.constant 0.000000e+00 : f32
    %600 = vector.broadcast %cst_231 : f32 to vector<8x64xf32>
    %601 = arith.select %598, %592, %600 : vector<8x64xi1>, vector<8x64xf32>
    %602 = vector.extract_strided_slice %601 {offsets = [0, 0], sizes = [8, 32], strides = [1, 1]} : vector<8x64xf32> to vector<8x32xf32>
    %c3_232 = arith.constant 3 : index
    %c0_233 = arith.constant 0 : index
    %c0_234 = arith.constant 0 : index
    %603 = vector.load %arg17[%c3_232, %c0_233, %c0_234] : memref<8x8x64xf32, #tpu.memory_space<vmem>>, vector<1x8x32xf32>
    %604 = vector.shape_cast %603 : vector<1x8x32xf32> to vector<8x32xf32>
    %605 = vector.shape_cast %602 : vector<8x32xf32> to vector<1x8x32xf32>
    tpu.vector_store %arg17[%c3_232, %c0_233, %c0_234], %605 {strides = array<i32>} : memref<8x8x64xf32, #tpu.memory_space<vmem>>, vector<1x8x32xf32>,
    %606 = vector.extract_strided_slice %601 {offsets = [0, 32], sizes = [8, 32], strides = [1, 1]} : vector<8x64xf32> to vector<8x32xf32>
    %c4_235 = arith.constant 4 : index
    %c0_236 = arith.constant 0 : index
    %c32_237 = arith.constant 32 : index
    %607 = vector.load %arg17[%c4_235, %c0_236, %c32_237] : memref<8x8x64xf32, #tpu.memory_space<vmem>>, vector<1x8x32xf32>
    %608 = vector.shape_cast %607 : vector<1x8x32xf32> to vector<8x32xf32>
    %609 = vector.shape_cast %606 : vector<8x32xf32> to vector<1x8x32xf32>
    tpu.vector_store %arg17[%c4_235, %c0_236, %c32_237], %609 {strides = array<i32>} : memref<8x8x64xf32, #tpu.memory_space<vmem>>, vector<1x8x32xf32>,
    %c4_238 = arith.constant 4 : index
    %c0_239 = arith.constant 0 : index
    %c0_240 = arith.constant 0 : index
    %610 = vector.load %arg15[%c4_238, %c0_239, %c0_240] : memref<8x8x192xf32, #tpu.memory_space<vmem>>, vector<1x8x192xf32>
    %611 = vector.shape_cast %610 : vector<1x8x192xf32> to vector<8x192xf32>
    %c3_241 = arith.constant 3 : index
    %c0_242 = arith.constant 0 : index
    %c0_243 = arith.constant 0 : index
    %612 = vector.load %arg15[%c3_241, %c0_242, %c0_243] : memref<8x8x192xf32, #tpu.memory_space<vmem>>, vector<1x8x192xf32>
    %613 = vector.shape_cast %612 : vector<1x8x192xf32> to vector<8x192xf32>
    %614 = vector.shape_cast %19 : vector<1x192xi1> to vector<1x192xi1>
    %615 = vector.broadcast %614 : vector<1x192xi1> to vector<8x192xi1>
    %616 = arith.select %615, %611, %613 : vector<8x192xi1>, vector<8x192xf32>
    %cst_244 = arith.constant dense<0.000000e+00> : vector<8x192xf32>
    %617 = tpu.matmul %599, %419, %cst_244 {dimension_numbers = #tpu.dot_dimension_numbers<[1], [0], [0], [1], [0, 0, 1, 1], [], []>} : vector<8x64xf32>, vector<64x192xf32>, vector<8x192xf32> -> vector<8x192xf32>
    %618 = vector.extract_strided_slice %616 {offsets = [0, 0], sizes = [8, 128], strides = [1, 1]} : vector<8x192xf32> to vector<8x128xf32>
    %619 = vector.extract_strided_slice %617 {offsets = [0, 0], sizes = [8, 128], strides = [1, 1]} : vector<8x192xf32> to vector<8x128xf32>
    %620 = arith.addf %618, %619 : vector<8x128xf32>
    %621 = arith.negf %620 : vector<8x128xf32>
    %622 = math.exp %621 : vector<8x128xf32>
    %cst_245 = arith.constant 1.000000e+00 : f32
    %623 = vector.broadcast %cst_245 : f32 to vector<8x128xf32>
    %624 = arith.addf %623, %622 : vector<8x128xf32>
    %625 = arith.divf %623, %624 : vector<8x128xf32>
    %626 = vector.extract_strided_slice %625 {offsets = [0, 0], sizes = [8, 64], strides = [1, 1]} : vector<8x128xf32> to vector<8x64xf32>
    %627 = vector.extract_strided_slice %625 {offsets = [0, 64], sizes = [8, 64], strides = [1, 1]} : vector<8x128xf32> to vector<8x64xf32>
    %628 = vector.extract_strided_slice %616 {offsets = [0, 128], sizes = [8, 64], strides = [1, 1]} : vector<8x192xf32> to vector<8x64xf32>
    %629 = vector.extract_strided_slice %617 {offsets = [0, 128], sizes = [8, 64], strides = [1, 1]} : vector<8x192xf32> to vector<8x64xf32>
    %630 = vector.broadcast %420 : vector<1x64xf32> to vector<8x64xf32>
    %631 = arith.addf %629, %630 : vector<8x64xf32>
    %632 = arith.mulf %626, %631 : vector<8x64xf32>
    %633 = arith.addf %628, %632 : vector<8x64xf32>
    %634 = math.tanh %633 : vector<8x64xf32>
    %cst_246 = arith.constant 1.000000e+00 : f32
    %635 = vector.broadcast %cst_246 : f32 to vector<8x64xf32>
    %636 = arith.subf %635, %627 : vector<8x64xf32>
    %637 = arith.mulf %636, %634 : vector<8x64xf32>
    %638 = arith.mulf %627, %599 : vector<8x64xf32>
    %639 = arith.addf %637, %638 : vector<8x64xf32>
    %c4_i32_247 = arith.constant 4 : i32
    %c3_i32_248 = arith.constant 3 : i32
    %640 = vector.broadcast %c4_i32_247 : i32 to vector<1x64xi32>
    %641 = vector.broadcast %c3_i32_248 : i32 to vector<1x64xi32>
    %642 = arith.select %22, %640, %641 : vector<1x64xi1>, vector<1x64xi32>
    %643 = vector.broadcast %642 : vector<1x64xi32> to vector<8x64xi32>
    %644 = vector.broadcast %0 : vector<8x1xi32> to vector<8x64xi32>
    %645 = arith.cmpi slt, %643, %644 : vector<8x64xi32>
    %646 = arith.select %645, %639, %599 : vector<8x64xi1>, vector<8x64xf32>
    %cst_249 = arith.constant 0.000000e+00 : f32
    %647 = vector.broadcast %cst_249 : f32 to vector<8x64xf32>
    %648 = arith.select %645, %639, %647 : vector<8x64xi1>, vector<8x64xf32>
    %649 = vector.extract_strided_slice %648 {offsets = [0, 0], sizes = [8, 32], strides = [1, 1]} : vector<8x64xf32> to vector<8x32xf32>
    %c4_250 = arith.constant 4 : index
    %c0_251 = arith.constant 0 : index
    %c0_252 = arith.constant 0 : index
    %650 = vector.load %arg17[%c4_250, %c0_251, %c0_252] : memref<8x8x64xf32, #tpu.memory_space<vmem>>, vector<1x8x32xf32>
    %651 = vector.shape_cast %650 : vector<1x8x32xf32> to vector<8x32xf32>
    %652 = vector.shape_cast %649 : vector<8x32xf32> to vector<1x8x32xf32>
    tpu.vector_store %arg17[%c4_250, %c0_251, %c0_252], %652 {strides = array<i32>} : memref<8x8x64xf32, #tpu.memory_space<vmem>>, vector<1x8x32xf32>,
    %653 = vector.extract_strided_slice %648 {offsets = [0, 32], sizes = [8, 32], strides = [1, 1]} : vector<8x64xf32> to vector<8x32xf32>
    %c3_253 = arith.constant 3 : index
    %c0_254 = arith.constant 0 : index
    %c32_255 = arith.constant 32 : index
    %654 = vector.load %arg17[%c3_253, %c0_254, %c32_255] : memref<8x8x64xf32, #tpu.memory_space<vmem>>, vector<1x8x32xf32>
    %655 = vector.shape_cast %654 : vector<1x8x32xf32> to vector<8x32xf32>
    %656 = vector.shape_cast %653 : vector<8x32xf32> to vector<1x8x32xf32>
    tpu.vector_store %arg17[%c3_253, %c0_254, %c32_255], %656 {strides = array<i32>} : memref<8x8x64xf32, #tpu.memory_space<vmem>>, vector<1x8x32xf32>,
    %c5_256 = arith.constant 5 : index
    %c0_257 = arith.constant 0 : index
    %c0_258 = arith.constant 0 : index
    %657 = vector.load %arg15[%c5_256, %c0_257, %c0_258] : memref<8x8x192xf32, #tpu.memory_space<vmem>>, vector<1x8x192xf32>
    %658 = vector.shape_cast %657 : vector<1x8x192xf32> to vector<8x192xf32>
    %c2_259 = arith.constant 2 : index
    %c0_260 = arith.constant 0 : index
    %c0_261 = arith.constant 0 : index
    %659 = vector.load %arg15[%c2_259, %c0_260, %c0_261] : memref<8x8x192xf32, #tpu.memory_space<vmem>>, vector<1x8x192xf32>
    %660 = vector.shape_cast %659 : vector<1x8x192xf32> to vector<8x192xf32>
    %661 = vector.shape_cast %19 : vector<1x192xi1> to vector<1x192xi1>
    %662 = vector.broadcast %661 : vector<1x192xi1> to vector<8x192xi1>
    %663 = arith.select %662, %658, %660 : vector<8x192xi1>, vector<8x192xf32>
    %cst_262 = arith.constant dense<0.000000e+00> : vector<8x192xf32>
    %664 = tpu.matmul %646, %419, %cst_262 {dimension_numbers = #tpu.dot_dimension_numbers<[1], [0], [0], [1], [0, 0, 1, 1], [], []>} : vector<8x64xf32>, vector<64x192xf32>, vector<8x192xf32> -> vector<8x192xf32>
    %665 = vector.extract_strided_slice %663 {offsets = [0, 0], sizes = [8, 128], strides = [1, 1]} : vector<8x192xf32> to vector<8x128xf32>
    %666 = vector.extract_strided_slice %664 {offsets = [0, 0], sizes = [8, 128], strides = [1, 1]} : vector<8x192xf32> to vector<8x128xf32>
    %667 = arith.addf %665, %666 : vector<8x128xf32>
    %668 = arith.negf %667 : vector<8x128xf32>
    %669 = math.exp %668 : vector<8x128xf32>
    %cst_263 = arith.constant 1.000000e+00 : f32
    %670 = vector.broadcast %cst_263 : f32 to vector<8x128xf32>
    %671 = arith.addf %670, %669 : vector<8x128xf32>
    %672 = arith.divf %670, %671 : vector<8x128xf32>
    %673 = vector.extract_strided_slice %672 {offsets = [0, 0], sizes = [8, 64], strides = [1, 1]} : vector<8x128xf32> to vector<8x64xf32>
    %674 = vector.extract_strided_slice %672 {offsets = [0, 64], sizes = [8, 64], strides = [1, 1]} : vector<8x128xf32> to vector<8x64xf32>
    %675 = vector.extract_strided_slice %663 {offsets = [0, 128], sizes = [8, 64], strides = [1, 1]} : vector<8x192xf32> to vector<8x64xf32>
    %676 = vector.extract_strided_slice %664 {offsets = [0, 128], sizes = [8, 64], strides = [1, 1]} : vector<8x192xf32> to vector<8x64xf32>
    %677 = vector.broadcast %420 : vector<1x64xf32> to vector<8x64xf32>
    %678 = arith.addf %676, %677 : vector<8x64xf32>
    %679 = arith.mulf %673, %678 : vector<8x64xf32>
    %680 = arith.addf %675, %679 : vector<8x64xf32>
    %681 = math.tanh %680 : vector<8x64xf32>
    %cst_264 = arith.constant 1.000000e+00 : f32
    %682 = vector.broadcast %cst_264 : f32 to vector<8x64xf32>
    %683 = arith.subf %682, %674 : vector<8x64xf32>
    %684 = arith.mulf %683, %681 : vector<8x64xf32>
    %685 = arith.mulf %674, %646 : vector<8x64xf32>
    %686 = arith.addf %684, %685 : vector<8x64xf32>
    %c5_i32_265 = arith.constant 5 : i32
    %c2_i32_266 = arith.constant 2 : i32
    %687 = vector.broadcast %c5_i32_265 : i32 to vector<1x64xi32>
    %688 = vector.broadcast %c2_i32_266 : i32 to vector<1x64xi32>
    %689 = arith.select %22, %687, %688 : vector<1x64xi1>, vector<1x64xi32>
    %690 = vector.broadcast %689 : vector<1x64xi32> to vector<8x64xi32>
    %691 = vector.broadcast %0 : vector<8x1xi32> to vector<8x64xi32>
    %692 = arith.cmpi slt, %690, %691 : vector<8x64xi32>
    %693 = arith.select %692, %686, %646 : vector<8x64xi1>, vector<8x64xf32>
    %cst_267 = arith.constant 0.000000e+00 : f32
    %694 = vector.broadcast %cst_267 : f32 to vector<8x64xf32>
    %695 = arith.select %692, %686, %694 : vector<8x64xi1>, vector<8x64xf32>
    %696 = vector.extract_strided_slice %695 {offsets = [0, 0], sizes = [8, 32], strides = [1, 1]} : vector<8x64xf32> to vector<8x32xf32>
    %c5_268 = arith.constant 5 : index
    %c0_269 = arith.constant 0 : index
    %c0_270 = arith.constant 0 : index
    %697 = vector.load %arg17[%c5_268, %c0_269, %c0_270] : memref<8x8x64xf32, #tpu.memory_space<vmem>>, vector<1x8x32xf32>
    %698 = vector.shape_cast %697 : vector<1x8x32xf32> to vector<8x32xf32>
    %699 = vector.shape_cast %696 : vector<8x32xf32> to vector<1x8x32xf32>
    tpu.vector_store %arg17[%c5_268, %c0_269, %c0_270], %699 {strides = array<i32>} : memref<8x8x64xf32, #tpu.memory_space<vmem>>, vector<1x8x32xf32>,
    %700 = vector.extract_strided_slice %695 {offsets = [0, 32], sizes = [8, 32], strides = [1, 1]} : vector<8x64xf32> to vector<8x32xf32>
    %c2_271 = arith.constant 2 : index
    %c0_272 = arith.constant 0 : index
    %c32_273 = arith.constant 32 : index
    %701 = vector.load %arg17[%c2_271, %c0_272, %c32_273] : memref<8x8x64xf32, #tpu.memory_space<vmem>>, vector<1x8x32xf32>
    %702 = vector.shape_cast %701 : vector<1x8x32xf32> to vector<8x32xf32>
    %703 = vector.shape_cast %700 : vector<8x32xf32> to vector<1x8x32xf32>
    tpu.vector_store %arg17[%c2_271, %c0_272, %c32_273], %703 {strides = array<i32>} : memref<8x8x64xf32, #tpu.memory_space<vmem>>, vector<1x8x32xf32>,
    %c6_274 = arith.constant 6 : index
    %c0_275 = arith.constant 0 : index
    %c0_276 = arith.constant 0 : index
    %704 = vector.load %arg15[%c6_274, %c0_275, %c0_276] : memref<8x8x192xf32, #tpu.memory_space<vmem>>, vector<1x8x192xf32>
    %705 = vector.shape_cast %704 : vector<1x8x192xf32> to vector<8x192xf32>
    %c1_277 = arith.constant 1 : index
    %c0_278 = arith.constant 0 : index
    %c0_279 = arith.constant 0 : index
    %706 = vector.load %arg15[%c1_277, %c0_278, %c0_279] : memref<8x8x192xf32, #tpu.memory_space<vmem>>, vector<1x8x192xf32>
    %707 = vector.shape_cast %706 : vector<1x8x192xf32> to vector<8x192xf32>
    %708 = vector.shape_cast %19 : vector<1x192xi1> to vector<1x192xi1>
    %709 = vector.broadcast %708 : vector<1x192xi1> to vector<8x192xi1>
    %710 = arith.select %709, %705, %707 : vector<8x192xi1>, vector<8x192xf32>
    %cst_280 = arith.constant dense<0.000000e+00> : vector<8x192xf32>
    %711 = tpu.matmul %693, %419, %cst_280 {dimension_numbers = #tpu.dot_dimension_numbers<[1], [0], [0], [1], [0, 0, 1, 1], [], []>} : vector<8x64xf32>, vector<64x192xf32>, vector<8x192xf32> -> vector<8x192xf32>
    %712 = vector.extract_strided_slice %710 {offsets = [0, 0], sizes = [8, 128], strides = [1, 1]} : vector<8x192xf32> to vector<8x128xf32>
    %713 = vector.extract_strided_slice %711 {offsets = [0, 0], sizes = [8, 128], strides = [1, 1]} : vector<8x192xf32> to vector<8x128xf32>
    %714 = arith.addf %712, %713 : vector<8x128xf32>
    %715 = arith.negf %714 : vector<8x128xf32>
    %716 = math.exp %715 : vector<8x128xf32>
    %cst_281 = arith.constant 1.000000e+00 : f32
    %717 = vector.broadcast %cst_281 : f32 to vector<8x128xf32>
    %718 = arith.addf %717, %716 : vector<8x128xf32>
    %719 = arith.divf %717, %718 : vector<8x128xf32>
    %720 = vector.extract_strided_slice %719 {offsets = [0, 0], sizes = [8, 64], strides = [1, 1]} : vector<8x128xf32> to vector<8x64xf32>
    %721 = vector.extract_strided_slice %719 {offsets = [0, 64], sizes = [8, 64], strides = [1, 1]} : vector<8x128xf32> to vector<8x64xf32>
    %722 = vector.extract_strided_slice %710 {offsets = [0, 128], sizes = [8, 64], strides = [1, 1]} : vector<8x192xf32> to vector<8x64xf32>
    %723 = vector.extract_strided_slice %711 {offsets = [0, 128], sizes = [8, 64], strides = [1, 1]} : vector<8x192xf32> to vector<8x64xf32>
    %724 = vector.broadcast %420 : vector<1x64xf32> to vector<8x64xf32>
    %725 = arith.addf %723, %724 : vector<8x64xf32>
    %726 = arith.mulf %720, %725 : vector<8x64xf32>
    %727 = arith.addf %722, %726 : vector<8x64xf32>
    %728 = math.tanh %727 : vector<8x64xf32>
    %cst_282 = arith.constant 1.000000e+00 : f32
    %729 = vector.broadcast %cst_282 : f32 to vector<8x64xf32>
    %730 = arith.subf %729, %721 : vector<8x64xf32>
    %731 = arith.mulf %730, %728 : vector<8x64xf32>
    %732 = arith.mulf %721, %693 : vector<8x64xf32>
    %733 = arith.addf %731, %732 : vector<8x64xf32>
    %c6_i32_283 = arith.constant 6 : i32
    %c1_i32_284 = arith.constant 1 : i32
    %734 = vector.broadcast %c6_i32_283 : i32 to vector<1x64xi32>
    %735 = vector.broadcast %c1_i32_284 : i32 to vector<1x64xi32>
    %736 = arith.select %22, %734, %735 : vector<1x64xi1>, vector<1x64xi32>
    %737 = vector.broadcast %736 : vector<1x64xi32> to vector<8x64xi32>
    %738 = vector.broadcast %0 : vector<8x1xi32> to vector<8x64xi32>
    %739 = arith.cmpi slt, %737, %738 : vector<8x64xi32>
    %740 = arith.select %739, %733, %693 : vector<8x64xi1>, vector<8x64xf32>
    %cst_285 = arith.constant 0.000000e+00 : f32
    %741 = vector.broadcast %cst_285 : f32 to vector<8x64xf32>
    %742 = arith.select %739, %733, %741 : vector<8x64xi1>, vector<8x64xf32>
    %743 = vector.extract_strided_slice %742 {offsets = [0, 0], sizes = [8, 32], strides = [1, 1]} : vector<8x64xf32> to vector<8x32xf32>
    %c6_286 = arith.constant 6 : index
    %c0_287 = arith.constant 0 : index
    %c0_288 = arith.constant 0 : index
    %744 = vector.load %arg17[%c6_286, %c0_287, %c0_288] : memref<8x8x64xf32, #tpu.memory_space<vmem>>, vector<1x8x32xf32>
    %745 = vector.shape_cast %744 : vector<1x8x32xf32> to vector<8x32xf32>
    %746 = vector.shape_cast %743 : vector<8x32xf32> to vector<1x8x32xf32>
    tpu.vector_store %arg17[%c6_286, %c0_287, %c0_288], %746 {strides = array<i32>} : memref<8x8x64xf32, #tpu.memory_space<vmem>>, vector<1x8x32xf32>,
    %747 = vector.extract_strided_slice %742 {offsets = [0, 32], sizes = [8, 32], strides = [1, 1]} : vector<8x64xf32> to vector<8x32xf32>
    %c1_289 = arith.constant 1 : index
    %c0_290 = arith.constant 0 : index
    %c32_291 = arith.constant 32 : index
    %748 = vector.load %arg17[%c1_289, %c0_290, %c32_291] : memref<8x8x64xf32, #tpu.memory_space<vmem>>, vector<1x8x32xf32>
    %749 = vector.shape_cast %748 : vector<1x8x32xf32> to vector<8x32xf32>
    %750 = vector.shape_cast %747 : vector<8x32xf32> to vector<1x8x32xf32>
    tpu.vector_store %arg17[%c1_289, %c0_290, %c32_291], %750 {strides = array<i32>} : memref<8x8x64xf32, #tpu.memory_space<vmem>>, vector<1x8x32xf32>,
    %c7_292 = arith.constant 7 : index
    %c0_293 = arith.constant 0 : index
    %c0_294 = arith.constant 0 : index
    %751 = vector.load %arg15[%c7_292, %c0_293, %c0_294] : memref<8x8x192xf32, #tpu.memory_space<vmem>>, vector<1x8x192xf32>
    %752 = vector.shape_cast %751 : vector<1x8x192xf32> to vector<8x192xf32>
    %c0_295 = arith.constant 0 : index
    %c0_296 = arith.constant 0 : index
    %c0_297 = arith.constant 0 : index
    %753 = vector.load %arg15[%c0_295, %c0_296, %c0_297] : memref<8x8x192xf32, #tpu.memory_space<vmem>>, vector<1x8x192xf32>
    %754 = vector.shape_cast %753 : vector<1x8x192xf32> to vector<8x192xf32>
    %755 = vector.shape_cast %19 : vector<1x192xi1> to vector<1x192xi1>
    %756 = vector.broadcast %755 : vector<1x192xi1> to vector<8x192xi1>
    %757 = arith.select %756, %752, %754 : vector<8x192xi1>, vector<8x192xf32>
    %cst_298 = arith.constant dense<0.000000e+00> : vector<8x192xf32>
    %758 = tpu.matmul %740, %419, %cst_298 {dimension_numbers = #tpu.dot_dimension_numbers<[1], [0], [0], [1], [0, 0, 1, 1], [], []>} : vector<8x64xf32>, vector<64x192xf32>, vector<8x192xf32> -> vector<8x192xf32>
    %759 = vector.extract_strided_slice %757 {offsets = [0, 0], sizes = [8, 128], strides = [1, 1]} : vector<8x192xf32> to vector<8x128xf32>
    %760 = vector.extract_strided_slice %758 {offsets = [0, 0], sizes = [8, 128], strides = [1, 1]} : vector<8x192xf32> to vector<8x128xf32>
    %761 = arith.addf %759, %760 : vector<8x128xf32>
    %762 = arith.negf %761 : vector<8x128xf32>
    %763 = math.exp %762 : vector<8x128xf32>
    %cst_299 = arith.constant 1.000000e+00 : f32
    %764 = vector.broadcast %cst_299 : f32 to vector<8x128xf32>
    %765 = arith.addf %764, %763 : vector<8x128xf32>
    %766 = arith.divf %764, %765 : vector<8x128xf32>
    %767 = vector.extract_strided_slice %766 {offsets = [0, 0], sizes = [8, 64], strides = [1, 1]} : vector<8x128xf32> to vector<8x64xf32>
    %768 = vector.extract_strided_slice %766 {offsets = [0, 64], sizes = [8, 64], strides = [1, 1]} : vector<8x128xf32> to vector<8x64xf32>
    %769 = vector.extract_strided_slice %757 {offsets = [0, 128], sizes = [8, 64], strides = [1, 1]} : vector<8x192xf32> to vector<8x64xf32>
    %770 = vector.extract_strided_slice %758 {offsets = [0, 128], sizes = [8, 64], strides = [1, 1]} : vector<8x192xf32> to vector<8x64xf32>
    %771 = vector.broadcast %420 : vector<1x64xf32> to vector<8x64xf32>
    %772 = arith.addf %770, %771 : vector<8x64xf32>
    %773 = arith.mulf %767, %772 : vector<8x64xf32>
    %774 = arith.addf %769, %773 : vector<8x64xf32>
    %775 = math.tanh %774 : vector<8x64xf32>
    %cst_300 = arith.constant 1.000000e+00 : f32
    %776 = vector.broadcast %cst_300 : f32 to vector<8x64xf32>
    %777 = arith.subf %776, %768 : vector<8x64xf32>
    %778 = arith.mulf %777, %775 : vector<8x64xf32>
    %779 = arith.mulf %768, %740 : vector<8x64xf32>
    %780 = arith.addf %778, %779 : vector<8x64xf32>
    %c7_i32_301 = arith.constant 7 : i32
    %c0_i32_302 = arith.constant 0 : i32
    %781 = vector.broadcast %c7_i32_301 : i32 to vector<1x64xi32>
    %782 = vector.broadcast %c0_i32_302 : i32 to vector<1x64xi32>
    %783 = arith.select %22, %781, %782 : vector<1x64xi1>, vector<1x64xi32>
    %784 = vector.broadcast %783 : vector<1x64xi32> to vector<8x64xi32>
    %785 = vector.broadcast %0 : vector<8x1xi32> to vector<8x64xi32>
    %786 = arith.cmpi slt, %784, %785 : vector<8x64xi32>
    %cst_303 = arith.constant 0.000000e+00 : f32
    %787 = vector.broadcast %cst_303 : f32 to vector<8x64xf32>
    %788 = arith.select %786, %780, %787 : vector<8x64xi1>, vector<8x64xf32>
    %789 = vector.extract_strided_slice %788 {offsets = [0, 0], sizes = [8, 32], strides = [1, 1]} : vector<8x64xf32> to vector<8x32xf32>
    %c7_304 = arith.constant 7 : index
    %c0_305 = arith.constant 0 : index
    %c0_306 = arith.constant 0 : index
    %790 = vector.load %arg17[%c7_304, %c0_305, %c0_306] : memref<8x8x64xf32, #tpu.memory_space<vmem>>, vector<1x8x32xf32>
    %791 = vector.shape_cast %790 : vector<1x8x32xf32> to vector<8x32xf32>
    %792 = vector.shape_cast %789 : vector<8x32xf32> to vector<1x8x32xf32>
    tpu.vector_store %arg17[%c7_304, %c0_305, %c0_306], %792 {strides = array<i32>} : memref<8x8x64xf32, #tpu.memory_space<vmem>>, vector<1x8x32xf32>,
    %793 = vector.extract_strided_slice %788 {offsets = [0, 32], sizes = [8, 32], strides = [1, 1]} : vector<8x64xf32> to vector<8x32xf32>
    %c0_307 = arith.constant 0 : index
    %c0_308 = arith.constant 0 : index
    %c32_309 = arith.constant 32 : index
    %794 = vector.load %arg17[%c0_307, %c0_308, %c32_309] : memref<8x8x64xf32, #tpu.memory_space<vmem>>, vector<1x8x32xf32>
    %795 = vector.shape_cast %794 : vector<1x8x32xf32> to vector<8x32xf32>
    %796 = vector.shape_cast %793 : vector<8x32xf32> to vector<1x8x32xf32>
    tpu.vector_store %arg17[%c0_307, %c0_308, %c32_309], %796 {strides = array<i32>} : memref<8x8x64xf32, #tpu.memory_space<vmem>>, vector<1x8x32xf32>,
    %c0_310 = arith.constant 0 : index
    %c0_311 = arith.constant 0 : index
    %c0_312 = arith.constant 0 : index
    %797 = vector.load %arg17[%c0_310, %c0_311, %c0_312] : memref<8x8x64xf32, #tpu.memory_space<vmem>>, vector<8x8x64xf32>
    %c0_313 = arith.constant 0 : index
    %c0_314 = arith.constant 0 : index
    %798 = vector.load %arg11[%c0_313, %c0_314] : memref<1x64xf32, #tpu.memory_space<vmem>>, vector<1x64xf32>
    %799 = vector.shape_cast %798 : vector<1x64xf32> to vector<1x1x64xf32>
    %800 = vector.broadcast %799 : vector<1x1x64xf32> to vector<8x8x64xf32>
    %801 = arith.mulf %797, %800 : vector<8x8x64xf32>
    %cst_315 = arith.constant dense<0.000000e+00> : vector<8x8xf32>
    %802 = vector.multi_reduction <add>, %801, %cst_315 [2] : vector<8x8x64xf32> to vector<8x8xf32>
    %803 = vector.shape_cast %802 : vector<8x8xf32> to vector<8x8x1xf32>
    %cst_316 = arith.constant dense<0xFF800000> : vector<8x1xf32>
    %804 = vector.multi_reduction <maximumf>, %803, %cst_316 [0] : vector<8x8x1xf32> to vector<8x1xf32>
    %805 = vector.shape_cast %804 : vector<8x1xf32> to vector<1x8x1xf32>
    %806 = vector.broadcast %805 : vector<1x8x1xf32> to vector<8x8x1xf32>
    %807 = arith.subf %803, %806 : vector<8x8x1xf32>
    %808 = math.exp %807 : vector<8x8x1xf32>
    %cst_317 = arith.constant dense<0.000000e+00> : vector<8x1xf32>
    %809 = vector.multi_reduction <add>, %808, %cst_317 [0] : vector<8x8x1xf32> to vector<8x1xf32>
    %810 = vector.shape_cast %809 : vector<8x1xf32> to vector<1x8x1xf32>
    %811 = vector.broadcast %810 : vector<1x8x1xf32> to vector<8x8x1xf32>
    %812 = arith.divf %808, %811 : vector<8x8x1xf32>
    %813 = vector.broadcast %812 : vector<8x8x1xf32> to vector<8x8x64xf32>
    %814 = arith.mulf %797, %813 : vector<8x8x64xf32>
    %cst_318 = arith.constant dense<0.000000e+00> : vector<8x64xf32>
    %815 = vector.multi_reduction <add>, %814, %cst_318 [0] : vector<8x8x64xf32> to vector<8x64xf32>
    %c0_319 = arith.constant 0 : index
    %c0_320 = arith.constant 0 : index
    %816 = vector.load %arg12[%c0_319, %c0_320] : memref<64x1xf32, #tpu.memory_space<vmem>>, vector<64x1xf32>
    %cst_321 = arith.constant dense<0.000000e+00> : vector<8x1xf32>
    %817 = tpu.matmul %815, %816, %cst_321 {dimension_numbers = #tpu.dot_dimension_numbers<[1], [0], [0], [1], [0, 0, 1, 1], [], []>} : vector<8x64xf32>, vector<64x1xf32>, vector<8x1xf32> -> vector<8x1xf32>
    %c0_322 = arith.constant 0 : index
    %c0_323 = arith.constant 0 : index
    %818 = memref.load %arg13[%c0_322, %c0_323] : memref<1x1xf32, #tpu.memory_space<smem>>
    %819 = vector.broadcast %818 : f32 to vector<8x1xf32>
    %820 = arith.addf %817, %819 : vector<8x1xf32>
    %c0_324 = arith.constant 0 : index
    %c0_325 = arith.constant 0 : index
    %821 = vector.load %arg14[%c0_324, %c0_325] : memref<8x1xf32, #tpu.memory_space<vmem>>, vector<8x1xf32>
    tpu.vector_store %arg14[%c0_324, %c0_325], %820 {strides = array<i32>} : memref<8x1xf32, #tpu.memory_space<vmem>>, vector<8x1xf32>,
    return
  }
  func.func @transform_0(%arg0: i32) -> (i32, i32) {
    %c0_i32 = arith.constant 0 : i32
    %c0_i32_0 = arith.constant 0 : i32
    return %arg0, %c0_i32 : i32, i32
  }
  func.func @transform_1(%arg0: i32) -> (i32, i32, i32) {
    %c0_i32 = arith.constant 0 : i32
    %c0_i32_0 = arith.constant 0 : i32
    %c0_i32_1 = arith.constant 0 : i32
    return %c0_i32, %arg0, %c0_i32_0 : i32, i32, i32
  }
  func.func @transform_2(%arg0: i32) -> (i32, i32) {
    %c0_i32 = arith.constant 0 : i32
    %c0_i32_0 = arith.constant 0 : i32
    %c0_i32_1 = arith.constant 0 : i32
    return %c0_i32, %c0_i32_0 : i32, i32
  }
  func.func @transform_3(%arg0: i32) -> (i32, i32) {
    %c0_i32 = arith.constant 0 : i32
    %c0_i32_0 = arith.constant 0 : i32
    %c0_i32_1 = arith.constant 0 : i32
    return %c0_i32, %c0_i32_0 : i32, i32
  }
  func.func @transform_4(%arg0: i32) -> (i32, i32) {
    %c0_i32 = arith.constant 0 : i32
    %c0_i32_0 = arith.constant 0 : i32
    %c0_i32_1 = arith.constant 0 : i32
    return %c0_i32, %c0_i32_0 : i32, i32
  }
  func.func @transform_5(%arg0: i32) -> (i32, i32) {
    %c0_i32 = arith.constant 0 : i32
    %c0_i32_0 = arith.constant 0 : i32
    %c0_i32_1 = arith.constant 0 : i32
    return %c0_i32, %c0_i32_0 : i32, i32
  }
  func.func @transform_6(%arg0: i32) -> (i32, i32) {
    %c0_i32 = arith.constant 0 : i32
    %c0_i32_0 = arith.constant 0 : i32
    %c0_i32_1 = arith.constant 0 : i32
    return %c0_i32, %c0_i32_0 : i32, i32
  }
  func.func @transform_7(%arg0: i32) -> (i32, i32) {
    %c0_i32 = arith.constant 0 : i32
    %c0_i32_0 = arith.constant 0 : i32
    %c0_i32_1 = arith.constant 0 : i32
    return %c0_i32, %c0_i32_0 : i32, i32
  }
  func.func @transform_8(%arg0: i32) -> (i32, i32) {
    %c0_i32 = arith.constant 0 : i32
    %c0_i32_0 = arith.constant 0 : i32
    %c0_i32_1 = arith.constant 0 : i32
    return %c0_i32, %c0_i32_0 : i32, i32
  }
  func.func @transform_9(%arg0: i32) -> (i32, i32) {
    %c0_i32 = arith.constant 0 : i32
    %c0_i32_0 = arith.constant 0 : i32
    %c0_i32_1 = arith.constant 0 : i32
    return %c0_i32, %c0_i32_0 : i32, i32
  }
  func.func @transform_10(%arg0: i32) -> (i32, i32) {
    %c0_i32 = arith.constant 0 : i32
    %c0_i32_0 = arith.constant 0 : i32
    %c0_i32_1 = arith.constant 0 : i32
    return %c0_i32, %c0_i32_0 : i32, i32
  }
  func.func @transform_11(%arg0: i32) -> (i32, i32) {
    %c0_i32 = arith.constant 0 : i32
    %c0_i32_0 = arith.constant 0 : i32
    %c0_i32_1 = arith.constant 0 : i32
    return %c0_i32, %c0_i32_0 : i32, i32
  }
  func.func @transform_12(%arg0: i32) -> (i32, i32) {
    %c0_i32 = arith.constant 0 : i32
    %c0_i32_0 = arith.constant 0 : i32
    %c0_i32_1 = arith.constant 0 : i32
    return %c0_i32, %c0_i32_0 : i32, i32
  }
  func.func @transform_13(%arg0: i32) -> (i32, i32) {
    %c0_i32 = arith.constant 0 : i32
    %c0_i32_0 = arith.constant 0 : i32
    return %arg0, %c0_i32 : i32, i32
  }
}

</mosaic_0001>

<llo_original>
// kernel: gru_attention_forward.1
$region0: #{gru_attention_forward.1}
  #allocation0 [shape = 'u32[]', space=smem, size = 0x4, offset = 0x4, fixed_abs, tag = 'smem constant byte address 0x4 - core index']
  #allocation1 [shape = 'u32[72,128]{1,0:T(1,128)}', space=vmem, size = 0x9000, scoped, tag = 'internal scratch']
  #allocation2 [shape = 'f32[8,8,192]{2,1,0:T(8,128)}', space=vmem, size = 0x10000, scoped, tag = 'scratch operand']
  #allocation3 [shape = 'f32[8,8,64]{2,1,0:T(8,128)}', space=vmem, size = 0x8000, scoped, tag = 'scratch operand']
  #allocation4 [shape = 'f32[8,8,64]{2,1,0:T(8,128)}', space=vmem, size = 0x8000, scoped, tag = 'scratch operand']
  #allocation5 [shape = 'f32[1,1]{1,0:T(1,128)S(6)}', space=smem, size = 0x200, scoped, tag = 'scoped memory for gru_attention_forward.1']
  %s0 = inlined_call_operand.vmem [shape: s32[8,1], index: 0, kind: input, shape index: {}]
  %s1 = inlined_call_operand.vmem [shape: f32[8,8,32], index: 1, kind: input, shape index: {}]
  %s2 = inlined_call_operand.vmem [shape: f32[32,192], index: 2, kind: input, shape index: {}]
  %s3 = inlined_call_operand.vmem [shape: f32[64,192], index: 3, kind: input, shape index: {}]
  %s4 = inlined_call_operand.vmem [shape: f32[1,192], index: 4, kind: input, shape index: {}]
  %s5 = inlined_call_operand.vmem [shape: f32[1,64], index: 5, kind: input, shape index: {}]
  %s6 = inlined_call_operand.vmem [shape: f32[64,192], index: 6, kind: input, shape index: {}]
  %s7 = inlined_call_operand.vmem [shape: f32[64,192], index: 7, kind: input, shape index: {}]
  %s8 = inlined_call_operand.vmem [shape: f32[1,192], index: 8, kind: input, shape index: {}]
  %s9 = inlined_call_operand.vmem [shape: f32[1,64], index: 9, kind: input, shape index: {}]
  %s10 = inlined_call_operand.vmem [shape: f32[1,64], index: 10, kind: input, shape index: {}]
  %s11 = inlined_call_operand.vmem [shape: f32[64,1], index: 11, kind: input, shape index: {}]
  %s12 = inlined_call_operand.<no memory space> [shape: f32[1,1], index: 12, kind: input, shape index: {}]
  %s13 = inlined_call_operand.vmem [shape: f32[8,1], index: 13, kind: output, shape index: {}]
  %s14 = sld [smem:[#allocation0]]
  $region62: #{gru_attention_forward.1} parent=0
    _
  %s16 = ssub.s32 1, %s14
  %s17 = scalar_select 0, %s16, %s14
  %18 = sst [smem:[#allocation5]] %s12
  // Predicated region
  $region2: #{gru_attention_forward.1} parent=0 // pred_check
    _
  $region3: #{gru_attention_forward.1} parent=0 // pred_check_branch
    %20 = sbr.rel (0) target = $region5
  $region4: #{gru_attention_forward.1} parent=0 // pred_region
    _
  $region5: #{gru_attention_forward.1} parent=0 // pred_fallthru
    _
  // Predicated region
  $region6: #{gru_attention_forward.1} parent=0 // pred_check
    _
  $region7: #{gru_attention_forward.1} parent=0 // pred_check_branch
    %22 = sbr.rel (0) target = $region9
  $region8: #{gru_attention_forward.1} parent=0 // pred_region
    _
  $region9: #{gru_attention_forward.1} parent=0 // pred_fallthru
    _
  // Predicated region
  $region10: #{gru_attention_forward.1} parent=0 // pred_check
    _
  $region11: #{gru_attention_forward.1} parent=0 // pred_check_branch
    %24 = sbr.rel (0) target = $region13
  $region12: #{gru_attention_forward.1} parent=0 // pred_region
    _
  $region13: #{gru_attention_forward.1} parent=0 // pred_fallthru
    _
  // Predicated region
  $region14: #{gru_attention_forward.1} parent=0 // pred_check
    _
  $region15: #{gru_attention_forward.1} parent=0 // pred_check_branch
    %26 = sbr.rel (0) target = $region17
  $region16: #{gru_attention_forward.1} parent=0 // pred_region
    _
  $region17: #{gru_attention_forward.1} parent=0 // pred_fallthru
    _
  // Predicated region
  $region18: #{gru_attention_forward.1} parent=0 // pred_check
    _
  $region19: #{gru_attention_forward.1} parent=0 // pred_check_branch
    %28 = sbr.rel (0) target = $region21
  $region20: #{gru_attention_forward.1} parent=0 // pred_region
    _
  $region21: #{gru_attention_forward.1} parent=0 // pred_fallthru
    _
  // Predicated region
  $region22: #{gru_attention_forward.1} parent=0 // pred_check
    _
  $region23: #{gru_attention_forward.1} parent=0 // pred_check_branch
    %30 = sbr.rel (0) target = $region25
  $region24: #{gru_attention_forward.1} parent=0 // pred_region
    _
  $region25: #{gru_attention_forward.1} parent=0 // pred_fallthru
    _
  // Predicated region
  $region26: #{gru_attention_forward.1} parent=0 // pred_check
    _
  $region27: #{gru_attention_forward.1} parent=0 // pred_check_branch
    %32 = sbr.rel (0) target = $region29
  $region28: #{gru_attention_forward.1} parent=0 // pred_region
    _
  $region29: #{gru_attention_forward.1} parent=0 // pred_fallthru
    _
  // Predicated region
  $region30: #{gru_attention_forward.1} parent=0 // pred_check
    _
  $region31: #{gru_attention_forward.1} parent=0 // pred_check_branch
    %34 = sbr.rel (0) target = $region33
  $region32: #{gru_attention_forward.1} parent=0 // pred_region
    _
  $region33: #{gru_attention_forward.1} parent=0 // pred_fallthru
    _
  // Predicated region
  $region34: #{gru_attention_forward.1} parent=0 // pred_check
    _
  $region35: #{gru_attention_forward.1} parent=0 // pred_check_branch
    %36 = sbr.rel (0) target = $region37
  $region36: #{gru_attention_forward.1} parent=0 // pred_region
    _
  $region37: #{gru_attention_forward.1} parent=0 // pred_fallthru
    _
  // Predicated region
  $region38: #{gru_attention_forward.1} parent=0 // pred_check
    _
  $region39: #{gru_attention_forward.1} parent=0 // pred_check_branch
    %38 = sbr.rel (0) target = $region41
  $region40: #{gru_attention_forward.1} parent=0 // pred_region
    _
  $region41: #{gru_attention_forward.1} parent=0 // pred_fallthru
    _
  // Predicated region
  $region42: #{gru_attention_forward.1} parent=0 // pred_check
    _
  $region43: #{gru_attention_forward.1} parent=0 // pred_check_branch
    %40 = sbr.rel (0) target = $region45
  $region44: #{gru_attention_forward.1} parent=0 // pred_region
    _
  $region45: #{gru_attention_forward.1} parent=0 // pred_fallthru
    _
  // Predicated region
  $region46: #{gru_attention_forward.1} parent=0 // pred_check
    _
  $region47: #{gru_attention_forward.1} parent=0 // pred_check_branch
    %42 = sbr.rel (0) target = $region49
  $region48: #{gru_attention_forward.1} parent=0 // pred_region
    _
  $region49: #{gru_attention_forward.1} parent=0 // pred_fallthru
    _
  // Predicated region
  $region50: #{gru_attention_forward.1} parent=0 // pred_check
    _
  $region51: #{gru_attention_forward.1} parent=0 // pred_check_branch
    %44 = sbr.rel (0) target = $region53
  $region52: #{gru_attention_forward.1} parent=0 // pred_region
    _
  $region53: #{gru_attention_forward.1} parent=0 // pred_fallthru
    _
  %v45 = vld [vmem:[%s0] sm:$0xff]
  %v46 = vlaneseq
  %v47 = vand.u32 %v46, 127
  %v48 = vadd.s32 %v47, 128
  %vm49 = vcmp.lt.s32.totalorder %v47, 0
  %v50 = vsub.s32 0, %v47
  %v51 = vsel %vm49, %v50, %v47
  %v52 = vshrl.u32 %v51, 6
  %v53 = vand.u32 %v51, 63
  %v54 = vsub.s32 0, %v53
  %v55 = vsel %vm49, %v54, %v53
  %vm56 = vcmp.lt.s32.totalorder %v48, 0
  %v57 = vsub.s32 0, %v48
  %v58 = vsel %vm56, %v57, %v48
  %v59 = vshrl.u32 %v58, 6
  %v60 = vand.u32 %v58, 63
  %v61 = vsub.s32 0, %v60
  %v62 = vsel %vm56, %v61, %v60
  %vm63 = vcmp.ne.s32.totalorder %v55, 0
  %vm64 = vcmp.ne.s32.totalorder %v62, 0
  %vm65 = vcmp.lt.s32.totalorder %v55, 0
  %vm66 = vcmp.lt.s32.totalorder %v62, 0
  %vm67 = vmand %vm65, %vm63
  %vm68 = vmand %vm66, %vm64
  %v69 = vadd.s32 %v55, 64
  %v70 = vadd.s32 %v62, 64
  %v71 = vsel %vm67, %v69, %v55
  %v72 = vsel %vm68, %v70, %v62
  %vm73 = vcmp.lt.s32.totalorder %v71, 32
  %vm74 = vcmp.lt.s32.totalorder %v72, 32
  %vm75 = vcmp.lt.s32.totalorder %v47, 32
  %v76 = vld [vmem:[%s1] sm:$0xff]
  %v77 = vld [vmem:[%s1 + $0x8] sm:$0xff]
  %v78 = vld [vmem:[%s1 + $0x10] sm:$0xff]
  %v79 = vld [vmem:[%s1 + $0x18] sm:$0xff]
  %v80 = vld [vmem:[%s1 + $0x20] sm:$0xff]
  %v81 = vld [vmem:[%s1 + $0x28] sm:$0xff]
  %v82 = vld [vmem:[%s1 + $0x30] sm:$0xff]
  %v83 = vld [vmem:[%s1 + $0x38] sm:$0xff]
  %v84 = vld [vmem:[%s2] sm:$0xff]
  %v85 = vld [vmem:[%s2 + $0x8] sm:$0xff]
  %v86 = vld [vmem:[%s2 + $0x10] sm:$0xff]
  %v87 = vld [vmem:[%s2 + $0x18] sm:$0xff]
  %v88 = vld [vmem:[%s2 + $0x20] sm:$0xff]
  %v89 = vld [vmem:[%s2 + $0x28] sm:$0xff]
  %v90 = vld [vmem:[%s2 + $0x30] sm:$0xff]
  %v91 = vld [vmem:[%s2 + $0x38] sm:$0xff]
  %v92 = vld [vmem:[%s4] sm:$0x3]
  %v94 = vperm.slane %v92, 0
  %v95 = vperm.slane %v92, 1
  %vm98 = vcmask 261120
  %v100 = vsel %vm98, %v76, 0
  %v103 = vsel %vm98, %v77, 0
  %v106 = vsel %vm98, %v78, 0
  %v109 = vsel %vm98, %v79, 0
  %v112 = vsel %vm98, %v80, 0
  %v115 = vsel %vm98, %v81, 0
  %v118 = vsel %vm98, %v82, 0
  %v121 = vsel %vm98, %v83, 0
  %123 = vmatpush.msra.mxu0 0.0
  %124 = vmatpush.msra.mxu0 0.0
  %125 = vmatpush.msra.mxu0 0.0
  %126 = vmatpush.msra.mxu0 0.0
  %127 = vmatpush.msra.mxu0 0.0
  %128 = vmatpush.msra.mxu0 0.0
  %129 = vmatpush.msra.mxu0 0.0
  %130 = vmatpush.msra.mxu0 0.0
  %131 = vmatpush.msra.mxu0 0.0
  %132 = vmatpush.msra.mxu0 0.0
  %133 = vmatpush.msra.mxu0 0.0
  %134 = vmatpush.msra.mxu0 0.0
  %135 = vmatpush.msra.mxu0 %v90
  %136 = vmatpush.msra.mxu0 %v88
  %137 = vmatpush.msra.mxu0 %v86
  %138 = vmatpush.msra.mxu0 %v84
  %139 = vmatmul.f32.gmra.mxu0 %v100
  %v140 = vpop.f32.mrf.mxu0
  %v141 = vadd.f32 %v94, %v140
  %142 = vmatmul.f32.gmra.mxu0 %v103
  %v143 = vpop.f32.mrf.mxu0
  %v144 = vadd.f32 %v94, %v143
  %145 = vmatmul.f32.gmra.mxu0 %v106
  %v146 = vpop.f32.mrf.mxu0
  %v147 = vadd.f32 %v94, %v146
  %148 = vmatmul.f32.gmra.mxu0 %v109
  %v149 = vpop.f32.mrf.mxu0
  %v150 = vadd.f32 %v94, %v149
  %151 = vmatmul.f32.gmra.mxu0 %v112
  %v152 = vpop.f32.mrf.mxu0
  %v153 = vadd.f32 %v94, %v152
  %154 = vmatmul.f32.gmra.mxu0 %v115
  %v155 = vpop.f32.mrf.mxu0
  %v156 = vadd.f32 %v94, %v155
  %157 = vmatmul.f32.gmra.mxu0 %v118
  %v158 = vpop.f32.mrf.mxu0
  %v159 = vadd.f32 %v94, %v158
  %160 = vmatmul.f32.gmra.mxu0 %v121
  %v161 = vpop.f32.mrf.mxu0
  %v162 = vadd.f32 %v94, %v161
  %163 = vdwg.mxu0
  %164 = vmatpush.msra.mxu0 0.0
  %165 = vmatpush.msra.mxu0 0.0
  %166 = vmatpush.msra.mxu0 0.0
  %167 = vmatpush.msra.mxu0 0.0
  %168 = vmatpush.msra.mxu0 0.0
  %169 = vmatpush.msra.mxu0 0.0
  %170 = vmatpush.msra.mxu0 0.0
  %171 = vmatpush.msra.mxu0 0.0
  %172 = vmatpush.msra.mxu0 0.0
  %173 = vmatpush.msra.mxu0 0.0
  %174 = vmatpush.msra.mxu0 0.0
  %175 = vmatpush.msra.mxu0 0.0
  %176 = vmatpush.msra.mxu0 %v91
  %177 = vmatpush.msra.mxu0 %v89
  %178 = vmatpush.msra.mxu0 %v87
  %179 = vmatpush.msra.mxu0 %v85
  %180 = vmatmul.f32.gmra.mxu0 %v100
  %v181 = vpop.f32.mrf.mxu0
  %v182 = vadd.f32 %v95, %v181
  %183 = vmatmul.f32.gmra.mxu0 %v103
  %v184 = vpop.f32.mrf.mxu0
  %v185 = vadd.f32 %v95, %v184
  %186 = vmatmul.f32.gmra.mxu0 %v106
  %v187 = vpop.f32.mrf.mxu0
  %v188 = vadd.f32 %v95, %v187
  %189 = vmatmul.f32.gmra.mxu0 %v109
  %v190 = vpop.f32.mrf.mxu0
  %v191 = vadd.f32 %v95, %v190
  %192 = vmatmul.f32.gmra.mxu0 %v112
  %v193 = vpop.f32.mrf.mxu0
  %v194 = vadd.f32 %v95, %v193
  %195 = vmatmul.f32.gmra.mxu0 %v115
  %v196 = vpop.f32.mrf.mxu0
  %v197 = vadd.f32 %v95, %v196
  %198 = vmatmul.f32.gmra.mxu0 %v118
  %v199 = vpop.f32.mrf.mxu0
  %v200 = vadd.f32 %v95, %v199
  %201 = vmatmul.f32.gmra.mxu0 %v121
  %v202 = vpop.f32.mrf.mxu0
  %v203 = vadd.f32 %v95, %v202
  %204 = vdwg.mxu0
  %205 = vst [vmem:[#allocation2] sm:$0xff] %v141
  %vm206 = vcmask 523264
  %207 = vst.msk [vmem:[#allocation2 + $0x8] sm:$0xff] %vm206, %v182
  %208 = vst [vmem:[#allocation2 + $0x10] sm:$0xff] %v144
  %209 = vst.msk [vmem:[#allocation2 + $0x18] sm:$0xff] %vm206, %v185
  %210 = vst [vmem:[#allocation2 + $0x20] sm:$0xff] %v147
  %211 = vst.msk [vmem:[#allocation2 + $0x28] sm:$0xff] %vm206, %v188
  %212 = vst [vmem:[#allocation2 + $0x30] sm:$0xff] %v150
  %213 = vst.msk [vmem:[#allocation2 + $0x38] sm:$0xff] %vm206, %v191
  %214 = vst [vmem:[#allocation2 + $0x40] sm:$0xff] %v153
  %215 = vst.msk [vmem:[#allocation2 + $0x48] sm:$0xff] %vm206, %v194
  %216 = vst [vmem:[#allocation2 + $0x50] sm:$0xff] %v156
  %217 = vst.msk [vmem:[#allocation2 + $0x58] sm:$0xff] %vm206, %v197
  %218 = vst [vmem:[#allocation2 + $0x60] sm:$0xff] %v159
  %219 = vst.msk [vmem:[#allocation2 + $0x68] sm:$0xff] %vm206, %v200
  %220 = vst [vmem:[#allocation2 + $0x70] sm:$0xff] %v162
  %221 = vst.msk [vmem:[#allocation2 + $0x78] sm:$0xff] %vm206, %v203
  %v222 = vld [vmem:[%s3] sm:$0xff]
  %v223 = vld [vmem:[%s3 + $0x8] sm:$0xff]
  %v224 = vld [vmem:[%s3 + $0x10] sm:$0xff]
  %v225 = vld [vmem:[%s3 + $0x18] sm:$0xff]
  %v226 = vld [vmem:[%s3 + $0x20] sm:$0xff]
  %v227 = vld [vmem:[%s3 + $0x28] sm:$0xff]
  %v228 = vld [vmem:[%s3 + $0x30] sm:$0xff]
  %v229 = vld [vmem:[%s3 + $0x38] sm:$0xff]
  %v230 = vld [vmem:[%s3 + $0x40] sm:$0xff]
  %v231 = vld [vmem:[%s3 + $0x48] sm:$0xff]
  %v232 = vld [vmem:[%s3 + $0x50] sm:$0xff]
  %v233 = vld [vmem:[%s3 + $0x58] sm:$0xff]
  %v234 = vld [vmem:[%s3 + $0x60] sm:$0xff]
  %v235 = vld [vmem:[%s3 + $0x68] sm:$0xff]
  %v236 = vld [vmem:[%s3 + $0x70] sm:$0xff]
  %v237 = vld [vmem:[%s3 + $0x78] sm:$0xff]
  %v238 = vld [vmem:[%s5] sm:$0x1]
  %v239 = vld [vmem:[#allocation2] sm:$0xff]
  %v240 = vld [vmem:[#allocation2 + $0x8] sm:$0xff]
  %s241 = scalar_lea.vmem [#allocation2], 112
  %v242 = vld [vmem:[%s241] sm:$0xff]
  %v243 = vld [vmem:[%s241 + $0x8] sm:$0xff]
  %v244 = vsel %vm73, 1, 0
  %v245 = vsel %vm74, 1, 0
  %vm246 = vcmp.eq.s32.totalorder %v244, 1
  %vm247 = vcmp.eq.s32.totalorder %v245, 1
  %v248 = vsel %vm246, %v239, %v242
  %v249 = vsel %vm247, %v240, %v243
  %v251 = vsel %vm206, 0.0, 0
  %253 = vmatpush.msra.mxu0 0.0
  %254 = vmatpush.msra.mxu0 0.0
  %255 = vmatpush.msra.mxu0 0.0
  %256 = vmatpush.msra.mxu0 0.0
  %257 = vmatpush.msra.mxu0 0.0
  %258 = vmatpush.msra.mxu0 0.0
  %259 = vmatpush.msra.mxu0 0.0
  %260 = vmatpush.msra.mxu0 0.0
  %261 = vmatpush.msra.mxu0 %v236
  %262 = vmatpush.msra.mxu0 %v234
  %263 = vmatpush.msra.mxu0 %v232
  %264 = vmatpush.msra.mxu0 %v230
  %265 = vmatpush.msra.mxu0 %v228
  %266 = vmatpush.msra.mxu0 %v226
  %267 = vmatpush.msra.mxu0 %v224
  %268 = vmatpush.msra.mxu0 %v222
  %269 = vmatmul.f32.gmra.mxu0 %v251
  %v270 = vpop.f32.mrf.mxu0
  %v271 = vadd.f32 0.0, %v270
  %272 = vdwg.mxu0
  %273 = vmatpush.msra.mxu0 0.0
  %274 = vmatpush.msra.mxu0 0.0
  %275 = vmatpush.msra.mxu0 0.0
  %276 = vmatpush.msra.mxu0 0.0
  %277 = vmatpush.msra.mxu0 0.0
  %278 = vmatpush.msra.mxu0 0.0
  %279 = vmatpush.msra.mxu0 0.0
  %280 = vmatpush.msra.mxu0 0.0
  %281 = vmatpush.msra.mxu0 %v237
  %282 = vmatpush.msra.mxu0 %v235
  %283 = vmatpush.msra.mxu0 %v233
  %284 = vmatpush.msra.mxu0 %v231
  %285 = vmatpush.msra.mxu0 %v229
  %286 = vmatpush.msra.mxu0 %v227
  %287 = vmatpush.msra.mxu0 %v225
  %288 = vmatpush.msra.mxu0 %v223
  %289 = vmatmul.f32.gmra.mxu0 %v251
  %v290 = vpop.f32.mrf.mxu0
  %v291 = vadd.f32 0.0, %v290
  %292 = vdwg.mxu0
  %v293 = vadd.f32 %v248, %v271
  %v294 = vxor.u32 %v293, 2147483648
  %v295 = vmul.f32 %v294, 1.442695
  %v296 = vpow.pop %v295
  %v297 = vadd.f32 %v296, 1.0
  %v298 = vrcp.pop %v297
  %v299 = vmul.f32 %v297, %v298
  %v300 = vsub.f32 1.0, %v299
  %v301 = vmul.f32 %v298, %v300
  %v302 = vadd.f32 %v298, %v301
  %vm303 = vweird.f32 %v297
  %vm304 = vweird.f32 %v298
  %vm305 = vmor %vm303, %vm304
  %v306 = vsel %vm305, %v298, %v302
  %v307 = vand.u32 2147483647, %v297
  %vm308 = vcmp.eq.f32.partialorder %v307, 8.507059e+37
  %v309 = vand.u32 %v297, 2147483648
  %v310 = vor.u32 1.1754944e-38, %v309
  %v311 = vsel %vm308, %v310, %v306
  %v312 = vmul.f32 1.0, %v311
  %v314 = vperm.slane %v238, 0
  %v316 = vadd.f32 %v291, %v314
  %v317 = vmul.f32 %v312, %v316
  %v318 = vadd.f32 %v249, %v317
  %v319 = vtanh.pop %v318
  %v320 = vsub.f32 1.0, %v312
  %322 = vrot.lane.b32.xlu0 %v319, 64
  %v323 = vpop.permute.xlu0 %322
  %v325 = vmul.f32 %v320, %v323
  %v326 = vmul.f32 %v312, 0.0
  %v327 = vadd.f32 %v325, %v326
  %v328 = vsel %vm75, 0, 7
  %329 = vset.pattern.permute.xlu0 0
  %330 = vperm.xlu0 %329, %v45
  %v331 = vpop.permute.xlu0 %330
  %vm332 = vcmp.lt.s32.totalorder %v328, %v331
  %334 = vrot.lane.b32.xlu0 %v327, 64
  %v335 = vpop.permute.xlu0 %334
  %v337 = vsel %vm332, %v335, 0.0
  %338 = vst.msk [vmem:[#allocation3] sm:$0xff] %vm98, %v337
  %s339 = scalar_lea.vmem [#allocation3], 56
  %vm340 = vcmask 523520
  %341 = vst.msk [vmem:[%s339] sm:$0xff] %vm340, %v337
  %s342 = scalar_lea.vmem [#allocation2], 16
  %v343 = vld [vmem:[%s342] sm:$0xff]
  %v344 = vld [vmem:[%s342 + $0x8] sm:$0xff]
  %s345 = scalar_lea.vmem [#allocation2], 96
  %v346 = vld [vmem:[%s345] sm:$0xff]
  %v347 = vld [vmem:[%s345 + $0x8] sm:$0xff]
  %v348 = vsel %vm246, %v343, %v346
  %v349 = vsel %vm247, %v344, %v347
  %v351 = vsel %vm206, %v337, 0
  %353 = vmatpush.msra.mxu0 0.0
  %354 = vmatpush.msra.mxu0 0.0
  %355 = vmatpush.msra.mxu0 0.0
  %356 = vmatpush.msra.mxu0 0.0
  %357 = vmatpush.msra.mxu0 0.0
  %358 = vmatpush.msra.mxu0 0.0
  %359 = vmatpush.msra.mxu0 0.0
  %360 = vmatpush.msra.mxu0 0.0
  %361 = vmatpush.msra.mxu0 %v236
  %362 = vmatpush.msra.mxu0 %v234
  %363 = vmatpush.msra.mxu0 %v232
  %364 = vmatpush.msra.mxu0 %v230
  %365 = vmatpush.msra.mxu0 %v228
  %366 = vmatpush.msra.mxu0 %v226
  %367 = vmatpush.msra.mxu0 %v224
  %368 = vmatpush.msra.mxu0 %v222
  %369 = vmatmul.f32.gmra.mxu0 %v351
  %v370 = vpop.f32.mrf.mxu0
  %v371 = vadd.f32 0.0, %v370
  %372 = vdwg.mxu0
  %373 = vmatpush.msra.mxu0 0.0
  %374 = vmatpush.msra.mxu0 0.0
  %375 = vmatpush.msra.mxu0 0.0
  %376 = vmatpush.msra.mxu0 0.0
  %377 = vmatpush.msra.mxu0 0.0
  %378 = vmatpush.msra.mxu0 0.0
  %379 = vmatpush.msra.mxu0 0.0
  %380 = vmatpush.msra.mxu0 0.0
  %381 = vmatpush.msra.mxu0 %v237
  %382 = vmatpush.msra.mxu0 %v235
  %383 = vmatpush.msra.mxu0 %v233
  %384 = vmatpush.msra.mxu0 %v231
  %385 = vmatpush.msra.mxu0 %v229
  %386 = vmatpush.msra.mxu0 %v227
  %387 = vmatpush.msra.mxu0 %v225
  %388 = vmatpush.msra.mxu0 %v223
  %389 = vmatmul.f32.gmra.mxu0 %v351
  %v390 = vpop.f32.mrf.mxu0
  %v391 = vadd.f32 0.0, %v390
  %392 = vdwg.mxu0
  %v393 = vadd.f32 %v348, %v371
  %v394 = vxor.u32 %v393, 2147483648
  %v395 = vmul.f32 %v394, 1.442695
  %v396 = vpow.pop %v395
  %v397 = vadd.f32 %v396, 1.0
  %v398 = vrcp.pop %v397
  %v399 = vmul.f32 %v397, %v398
  %v400 = vsub.f32 1.0, %v399
  %v401 = vmul.f32 %v398, %v400
  %v402 = vadd.f32 %v398, %v401
  %vm403 = vweird.f32 %v397
  %vm404 = vweird.f32 %v398
  %vm405 = vmor %vm403, %vm404
  %v406 = vsel %vm405, %v398, %v402
  %v407 = vand.u32 2147483647, %v397
  %vm408 = vcmp.eq.f32.partialorder %v407, 8.507059e+37
  %v409 = vand.u32 %v397, 2147483648
  %v410 = vor.u32 1.1754944e-38, %v409
  %v411 = vsel %vm408, %v410, %v406
  %v412 = vmul.f32 1.0, %v411
  %v413 = vadd.f32 %v391, %v314
  %v414 = vmul.f32 %v412, %v413
  %v415 = vadd.f32 %v349, %v414
  %v416 = vtanh.pop %v415
  %v417 = vsub.f32 1.0, %v412
  %419 = vrot.lane.b32.xlu0 %v416, 64
  %v420 = vpop.permute.xlu0 %419
  %v422 = vmul.f32 %v417, %v420
  %423 = vrot.lane.b32.xlu0 %v337, 64
  %v424 = vpop.permute.xlu0 %423
  %v426 = vmul.f32 %v412, %v424
  %v427 = vadd.f32 %v422, %v426
  %v428 = vsel %vm75, 1, 6
  %vm429 = vcmp.lt.s32.totalorder %v428, %v331
  %431 = vrot.lane.b32.xlu0 %v427, 64
  %v432 = vpop.permute.xlu0 %431
  %v434 = vsel %vm429, %v432, %v337
  %v435 = vsel %vm429, %v432, 0.0
  %s436 = scalar_lea.vmem [#allocation3], 8
  %437 = vst.msk [vmem:[%s436] sm:$0xff] %vm98, %v435
  %s438 = scalar_lea.vmem [#allocation3], 48
  %439 = vst.msk [vmem:[%s438] sm:$0xff] %vm340, %v435
  %s440 = scalar_lea.vmem [#allocation2], 32
  %v441 = vld [vmem:[%s440] sm:$0xff]
  %v442 = vld [vmem:[%s440 + $0x8] sm:$0xff]
  %s443 = scalar_lea.vmem [#allocation2], 80
  %v444 = vld [vmem:[%s443] sm:$0xff]
  %v445 = vld [vmem:[%s443 + $0x8] sm:$0xff]
  %v446 = vsel %vm246, %v441, %v444
  %v447 = vsel %vm247, %v442, %v445
  %v449 = vsel %vm206, %v434, 0
  %451 = vmatpush.msra.mxu0 0.0
  %452 = vmatpush.msra.mxu0 0.0
  %453 = vmatpush.msra.mxu0 0.0
  %454 = vmatpush.msra.mxu0 0.0
  %455 = vmatpush.msra.mxu0 0.0
  %456 = vmatpush.msra.mxu0 0.0
  %457 = vmatpush.msra.mxu0 0.0
  %458 = vmatpush.msra.mxu0 0.0
  %459 = vmatpush.msra.mxu0 %v236
  %460 = vmatpush.msra.mxu0 %v234
  %461 = vmatpush.msra.mxu0 %v232
  %462 = vmatpush.msra.mxu0 %v230
  %463 = vmatpush.msra.mxu0 %v228
  %464 = vmatpush.msra.mxu0 %v226
  %465 = vmatpush.msra.mxu0 %v224
  %466 = vmatpush.msra.mxu0 %v222
  %467 = vmatmul.f32.gmra.mxu0 %v449
  %v468 = vpop.f32.mrf.mxu0
  %v469 = vadd.f32 0.0, %v468
  %470 = vdwg.mxu0
  %471 = vmatpush.msra.mxu0 0.0
  %472 = vmatpush.msra.mxu0 0.0
  %473 = vmatpush.msra.mxu0 0.0
  %474 = vmatpush.msra.mxu0 0.0
  %475 = vmatpush.msra.mxu0 0.0
  %476 = vmatpush.msra.mxu0 0.0
  %477 = vmatpush.msra.mxu0 0.0
  %478 = vmatpush.msra.mxu0 0.0
  %479 = vmatpush.msra.mxu0 %v237
  %480 = vmatpush.msra.mxu0 %v235
  %481 = vmatpush.msra.mxu0 %v233
  %482 = vmatpush.msra.mxu0 %v231
  %483 = vmatpush.msra.mxu0 %v229
  %484 = vmatpush.msra.mxu0 %v227
  %485 = vmatpush.msra.mxu0 %v225
  %486 = vmatpush.msra.mxu0 %v223
  %487 = vmatmul.f32.gmra.mxu0 %v449
  %v488 = vpop.f32.mrf.mxu0
  %v489 = vadd.f32 0.0, %v488
  %490 = vdwg.mxu0
  %v491 = vadd.f32 %v446, %v469
  %v492 = vxor.u32 %v491, 2147483648
  %v493 = vmul.f32 %v492, 1.442695
  %v494 = vpow.pop %v493
  %v495 = vadd.f32 %v494, 1.0
  %v496 = vrcp.pop %v495
  %v497 = vmul.f32 %v495, %v496
  %v498 = vsub.f32 1.0, %v497
  %v499 = vmul.f32 %v496, %v498
  %v500 = vadd.f32 %v496, %v499
  %vm501 = vweird.f32 %v495
  %vm502 = vweird.f32 %v496
  %vm503 = vmor %vm501, %vm502
  %v504 = vsel %vm503, %v496, %v500
  %v505 = vand.u32 2147483647, %v495
  %vm506 = vcmp.eq.f32.partialorder %v505, 8.507059e+37
  %v507 = vand.u32 %v495, 2147483648
  %v508 = vor.u32 1.1754944e-38, %v507
  %v509 = vsel %vm506, %v508, %v504
  %v510 = vmul.f32 1.0, %v509
  %v511 = vadd.f32 %v489, %v314
  %v512 = vmul.f32 %v510, %v511
  %v513 = vadd.f32 %v447, %v512
  %v514 = vtanh.pop %v513
  %v515 = vsub.f32 1.0, %v510
  %517 = vrot.lane.b32.xlu0 %v514, 64
  %v518 = vpop.permute.xlu0 %517
  %v520 = vmul.f32 %v515, %v518
  %521 = vrot.lane.b32.xlu0 %v434, 64
  %v522 = vpop.permute.xlu0 %521
  %v524 = vmul.f32 %v510, %v522
  %v525 = vadd.f32 %v520, %v524
  %v526 = vsel %vm75, 2, 5
  %vm527 = vcmp.lt.s32.totalorder %v526, %v331
  %529 = vrot.lane.b32.xlu0 %v525, 64
  %v530 = vpop.permute.xlu0 %529
  %v532 = vsel %vm527, %v530, %v434
  %v533 = vsel %vm527, %v530, 0.0
  %s534 = scalar_lea.vmem [#allocation3], 16
  %535 = vst.msk [vmem:[%s534] sm:$0xff] %vm98, %v533
  %s536 = scalar_lea.vmem [#allocation3], 40
  %537 = vst.msk [vmem:[%s536] sm:$0xff] %vm340, %v533
  %s538 = scalar_lea.vmem [#allocation2], 48
  %v539 = vld [vmem:[%s538] sm:$0xff]
  %v540 = vld [vmem:[%s538 + $0x8] sm:$0xff]
  %s541 = scalar_lea.vmem [#allocation2], 64
  %v542 = vld [vmem:[%s541] sm:$0xff]
  %v543 = vld [vmem:[%s541 + $0x8] sm:$0xff]
  %v544 = vsel %vm246, %v539, %v542
  %v545 = vsel %vm247, %v540, %v543
  %v547 = vsel %vm206, %v532, 0
  %549 = vmatpush.msra.mxu0 0.0
  %550 = vmatpush.msra.mxu0 0.0
  %551 = vmatpush.msra.mxu0 0.0
  %552 = vmatpush.msra.mxu0 0.0
  %553 = vmatpush.msra.mxu0 0.0
  %554 = vmatpush.msra.mxu0 0.0
  %555 = vmatpush.msra.mxu0 0.0
  %556 = vmatpush.msra.mxu0 0.0
  %557 = vmatpush.msra.mxu0 %v236
  %558 = vmatpush.msra.mxu0 %v234
  %559 = vmatpush.msra.mxu0 %v232
  %560 = vmatpush.msra.mxu0 %v230
  %561 = vmatpush.msra.mxu0 %v228
  %562 = vmatpush.msra.mxu0 %v226
  %563 = vmatpush.msra.mxu0 %v224
  %564 = vmatpush.msra.mxu0 %v222
  %565 = vmatmul.f32.gmra.mxu0 %v547
  %v566 = vpop.f32.mrf.mxu0
  %v567 = vadd.f32 0.0, %v566
  %568 = vdwg.mxu0
  %569 = vmatpush.msra.mxu0 0.0
  %570 = vmatpush.msra.mxu0 0.0
  %571 = vmatpush.msra.mxu0 0.0
  %572 = vmatpush.msra.mxu0 0.0
  %573 = vmatpush.msra.mxu0 0.0
  %574 = vmatpush.msra.mxu0 0.0
  %575 = vmatpush.msra.mxu0 0.0
  %576 = vmatpush.msra.mxu0 0.0
  %577 = vmatpush.msra.mxu0 %v237
  %578 = vmatpush.msra.mxu0 %v235
  %579 = vmatpush.msra.mxu0 %v233
  %580 = vmatpush.msra.mxu0 %v231
  %581 = vmatpush.msra.mxu0 %v229
  %582 = vmatpush.msra.mxu0 %v227
  %583 = vmatpush.msra.mxu0 %v225
  %584 = vmatpush.msra.mxu0 %v223
  %585 = vmatmul.f32.gmra.mxu0 %v547
  %v586 = vpop.f32.mrf.mxu0
  %v587 = vadd.f32 0.0, %v586
  %588 = vdwg.mxu0
  %v589 = vadd.f32 %v544, %v567
  %v590 = vxor.u32 %v589, 2147483648
  %v591 = vmul.f32 %v590, 1.442695
  %v592 = vpow.pop %v591
  %v593 = vadd.f32 %v592, 1.0
  %v594 = vrcp.pop %v593
  %v595 = vmul.f32 %v593, %v594
  %v596 = vsub.f32 1.0, %v595
  %v597 = vmul.f32 %v594, %v596
  %v598 = vadd.f32 %v594, %v597
  %vm599 = vweird.f32 %v593
  %vm600 = vweird.f32 %v594
  %vm601 = vmor %vm599, %vm600
  %v602 = vsel %vm601, %v594, %v598
  %v603 = vand.u32 2147483647, %v593
  %vm604 = vcmp.eq.f32.partialorder %v603, 8.507059e+37
  %v605 = vand.u32 %v593, 2147483648
  %v606 = vor.u32 1.1754944e-38, %v605
  %v607 = vsel %vm604, %v606, %v602
  %v608 = vmul.f32 1.0, %v607
  %v609 = vadd.f32 %v587, %v314
  %v610 = vmul.f32 %v608, %v609
  %v611 = vadd.f32 %v545, %v610
  %v612 = vtanh.pop %v611
  %v613 = vsub.f32 1.0, %v608
  %615 = vrot.lane.b32.xlu0 %v612, 64
  %v616 = vpop.permute.xlu0 %615
  %v618 = vmul.f32 %v613, %v616
  %619 = vrot.lane.b32.xlu0 %v532, 64
  %v620 = vpop.permute.xlu0 %619
  %v622 = vmul.f32 %v608, %v620
  %v623 = vadd.f32 %v618, %v622
  %v624 = vsel %vm75, 3, 4
  %vm625 = vcmp.lt.s32.totalorder %v624, %v331
  %627 = vrot.lane.b32.xlu0 %v623, 64
  %v628 = vpop.permute.xlu0 %627
  %v630 = vsel %vm625, %v628, %v532
  %v631 = vsel %vm625, %v628, 0.0
  %s632 = scalar_lea.vmem [#allocation3], 24
  %633 = vst.msk [vmem:[%s632] sm:$0xff] %vm98, %v631
  %s634 = scalar_lea.vmem [#allocation3], 32
  %635 = vst.msk [vmem:[%s634] sm:$0xff] %vm340, %v631
  %v636 = vld [vmem:[%s541] sm:$0xff]
  %v637 = vld [vmem:[%s541 + $0x8] sm:$0xff]
  %v638 = vld [vmem:[%s538] sm:$0xff]
  %v639 = vld [vmem:[%s538 + $0x8] sm:$0xff]
  %v640 = vsel %vm246, %v636, %v638
  %v641 = vsel %vm247, %v637, %v639
  %v643 = vsel %vm206, %v630, 0
  %645 = vmatpush.msra.mxu0 0.0
  %646 = vmatpush.msra.mxu0 0.0
  %647 = vmatpush.msra.mxu0 0.0
  %648 = vmatpush.msra.mxu0 0.0
  %649 = vmatpush.msra.mxu0 0.0
  %650 = vmatpush.msra.mxu0 0.0
  %651 = vmatpush.msra.mxu0 0.0
  %652 = vmatpush.msra.mxu0 0.0
  %653 = vmatpush.msra.mxu0 %v236
  %654 = vmatpush.msra.mxu0 %v234
  %655 = vmatpush.msra.mxu0 %v232
  %656 = vmatpush.msra.mxu0 %v230
  %657 = vmatpush.msra.mxu0 %v228
  %658 = vmatpush.msra.mxu0 %v226
  %659 = vmatpush.msra.mxu0 %v224
  %660 = vmatpush.msra.mxu0 %v222
  %661 = vmatmul.f32.gmra.mxu0 %v643
  %v662 = vpop.f32.mrf.mxu0
  %v663 = vadd.f32 0.0, %v662
  %664 = vdwg.mxu0
  %665 = vmatpush.msra.mxu0 0.0
  %666 = vmatpush.msra.mxu0 0.0
  %667 = vmatpush.msra.mxu0 0.0
  %668 = vmatpush.msra.mxu0 0.0
  %669 = vmatpush.msra.mxu0 0.0
  %670 = vmatpush.msra.mxu0 0.0
  %671 = vmatpush.msra.mxu0 0.0
  %672 = vmatpush.msra.mxu0 0.0
  %673 = vmatpush.msra.mxu0 %v237
  %674 = vmatpush.msra.mxu0 %v235
  %675 = vmatpush.msra.mxu0 %v233
  %676 = vmatpush.msra.mxu0 %v231
  %677 = vmatpush.msra.mxu0 %v229
  %678 = vmatpush.msra.mxu0 %v227
  %679 = vmatpush.msra.mxu0 %v225
  %680 = vmatpush.msra.mxu0 %v223
  %681 = vmatmul.f32.gmra.mxu0 %v643
  %v682 = vpop.f32.mrf.mxu0
  %v683 = vadd.f32 0.0, %v682
  %684 = vdwg.mxu0
  %v685 = vadd.f32 %v640, %v663
  %v686 = vxor.u32 %v685, 2147483648
  %v687 = vmul.f32 %v686, 1.442695
  %v688 = vpow.pop %v687
  %v689 = vadd.f32 %v688, 1.0
  %v690 = vrcp.pop %v689
  %v691 = vmul.f32 %v689, %v690
  %v692 = vsub.f32 1.0, %v691
  %v693 = vmul.f32 %v690, %v692
  %v694 = vadd.f32 %v690, %v693
  %vm695 = vweird.f32 %v689
  %vm696 = vweird.f32 %v690
  %vm697 = vmor %vm695, %vm696
  %v698 = vsel %vm697, %v690, %v694
  %v699 = vand.u32 2147483647, %v689
  %vm700 = vcmp.eq.f32.partialorder %v699, 8.507059e+37
  %v701 = vand.u32 %v689, 2147483648
  %v702 = vor.u32 1.1754944e-38, %v701
  %v703 = vsel %vm700, %v702, %v698
  %v704 = vmul.f32 1.0, %v703
  %v705 = vadd.f32 %v683, %v314
  %v706 = vmul.f32 %v704, %v705
  %v707 = vadd.f32 %v641, %v706
  %v708 = vtanh.pop %v707
  %v709 = vsub.f32 1.0, %v704
  %711 = vrot.lane.b32.xlu0 %v708, 64
  %v712 = vpop.permute.xlu0 %711
  %v714 = vmul.f32 %v709, %v712
  %715 = vrot.lane.b32.xlu0 %v630, 64
  %v716 = vpop.permute.xlu0 %715
  %v718 = vmul.f32 %v704, %v716
  %v719 = vadd.f32 %v714, %v718
  %v720 = vsel %vm75, 4, 3
  %vm721 = vcmp.lt.s32.totalorder %v720, %v331
  %723 = vrot.lane.b32.xlu0 %v719, 64
  %v724 = vpop.permute.xlu0 %723
  %v726 = vsel %vm721, %v724, %v630
  %v727 = vsel %vm721, %v724, 0.0
  %728 = vst.msk [vmem:[%s634] sm:$0xff] %vm98, %v727
  %729 = vst.msk [vmem:[%s632] sm:$0xff] %vm340, %v727
  %v730 = vld [vmem:[%s443] sm:$0xff]
  %v731 = vld [vmem:[%s443 + $0x8] sm:$0xff]
  %v732 = vld [vmem:[%s440] sm:$0xff]
  %v733 = vld [vmem:[%s440 + $0x8] sm:$0xff]
  %v734 = vsel %vm246, %v730, %v732
  %v735 = vsel %vm247, %v731, %v733
  %v737 = vsel %vm206, %v726, 0
  %739 = vmatpush.msra.mxu0 0.0
  %740 = vmatpush.msra.mxu0 0.0
  %741 = vmatpush.msra.mxu0 0.0
  %742 = vmatpush.msra.mxu0 0.0
  %743 = vmatpush.msra.mxu0 0.0
  %744 = vmatpush.msra.mxu0 0.0
  %745 = vmatpush.msra.mxu0 0.0
  %746 = vmatpush.msra.mxu0 0.0
  %747 = vmatpush.msra.mxu0 %v236
  %748 = vmatpush.msra.mxu0 %v234
  %749 = vmatpush.msra.mxu0 %v232
  %750 = vmatpush.msra.mxu0 %v230
  %751 = vmatpush.msra.mxu0 %v228
  %752 = vmatpush.msra.mxu0 %v226
  %753 = vmatpush.msra.mxu0 %v224
  %754 = vmatpush.msra.mxu0 %v222
  %755 = vmatmul.f32.gmra.mxu0 %v737
  %v756 = vpop.f32.mrf.mxu0
  %v757 = vadd.f32 0.0, %v756
  %758 = vdwg.mxu0
  %759 = vmatpush.msra.mxu0 0.0
  %760 = vmatpush.msra.mxu0 0.0
  %761 = vmatpush.msra.mxu0 0.0
  %762 = vmatpush.msra.mxu0 0.0
  %763 = vmatpush.msra.mxu0 0.0
  %764 = vmatpush.msra.mxu0 0.0
  %765 = vmatpush.msra.mxu0 0.0
  %766 = vmatpush.msra.mxu0 0.0
  %767 = vmatpush.msra.mxu0 %v237
  %768 = vmatpush.msra.mxu0 %v235
  %769 = vmatpush.msra.mxu0 %v233
  %770 = vmatpush.msra.mxu0 %v231
  %771 = vmatpush.msra.mxu0 %v229
  %772 = vmatpush.msra.mxu0 %v227
  %773 = vmatpush.msra.mxu0 %v225
  %774 = vmatpush.msra.mxu0 %v223
  %775 = vmatmul.f32.gmra.mxu0 %v737
  %v776 = vpop.f32.mrf.mxu0
  %v777 = vadd.f32 0.0, %v776
  %778 = vdwg.mxu0
  %v779 = vadd.f32 %v734, %v757
  %v780 = vxor.u32 %v779, 2147483648
  %v781 = vmul.f32 %v780, 1.442695
  %v782 = vpow.pop %v781
  %v783 = vadd.f32 %v782, 1.0
  %v784 = vrcp.pop %v783
  %v785 = vmul.f32 %v783, %v784
  %v786 = vsub.f32 1.0, %v785
  %v787 = vmul.f32 %v784, %v786
  %v788 = vadd.f32 %v784, %v787
  %vm789 = vweird.f32 %v783
  %vm790 = vweird.f32 %v784
  %vm791 = vmor %vm789, %vm790
  %v792 = vsel %vm791, %v784, %v788
  %v793 = vand.u32 2147483647, %v783
  %vm794 = vcmp.eq.f32.partialorder %v793, 8.507059e+37
  %v795 = vand.u32 %v783, 2147483648
  %v796 = vor.u32 1.1754944e-38, %v795
  %v797 = vsel %vm794, %v796, %v792
  %v798 = vmul.f32 1.0, %v797
  %v799 = vadd.f32 %v777, %v314
  %v800 = vmul.f32 %v798, %v799
  %v801 = vadd.f32 %v735, %v800
  %v802 = vtanh.pop %v801
  %v803 = vsub.f32 1.0, %v798
  %805 = vrot.lane.b32.xlu0 %v802, 64
  %v806 = vpop.permute.xlu0 %805
  %v808 = vmul.f32 %v803, %v806
  %809 = vrot.lane.b32.xlu0 %v726, 64
  %v810 = vpop.permute.xlu0 %809
  %v812 = vmul.f32 %v798, %v810
  %v813 = vadd.f32 %v808, %v812
  %v814 = vsel %vm75, 5, 2
  %vm815 = vcmp.lt.s32.totalorder %v814, %v331
  %817 = vrot.lane.b32.xlu0 %v813, 64
  %v818 = vpop.permute.xlu0 %817
  %v820 = vsel %vm815, %v818, %v726
  %v821 = vsel %vm815, %v818, 0.0
  %822 = vst.msk [vmem:[%s536] sm:$0xff] %vm98, %v821
  %823 = vst.msk [vmem:[%s534] sm:$0xff] %vm340, %v821
  %v824 = vld [vmem:[%s345] sm:$0xff]
  %v825 = vld [vmem:[%s345 + $0x8] sm:$0xff]
  %v826 = vld [vmem:[%s342] sm:$0xff]
  %v827 = vld [vmem:[%s342 + $0x8] sm:$0xff]
  %v828 = vsel %vm246, %v824, %v826
  %v829 = vsel %vm247, %v825, %v827
  %v831 = vsel %vm206, %v820, 0
  %833 = vmatpush.msra.mxu0 0.0
  %834 = vmatpush.msra.mxu0 0.0
  %835 = vmatpush.msra.mxu0 0.0
  %836 = vmatpush.msra.mxu0 0.0
  %837 = vmatpush.msra.mxu0 0.0
  %838 = vmatpush.msra.mxu0 0.0
  %839 = vmatpush.msra.mxu0 0.0
  %840 = vmatpush.msra.mxu0 0.0
  %841 = vmatpush.msra.mxu0 %v236
  %842 = vmatpush.msra.mxu0 %v234
  %843 = vmatpush.msra.mxu0 %v232
  %844 = vmatpush.msra.mxu0 %v230
  %845 = vmatpush.msra.mxu0 %v228
  %846 = vmatpush.msra.mxu0 %v226
  %847 = vmatpush.msra.mxu0 %v224
  %848 = vmatpush.msra.mxu0 %v222
  %849 = vmatmul.f32.gmra.mxu0 %v831
  %v850 = vpop.f32.mrf.mxu0
  %v851 = vadd.f32 0.0, %v850
  %852 = vdwg.mxu0
  %853 = vmatpush.msra.mxu0 0.0
  %854 = vmatpush.msra.mxu0 0.0
  %855 = vmatpush.msra.mxu0 0.0
  %856 = vmatpush.msra.mxu0 0.0
  %857 = vmatpush.msra.mxu0 0.0
  %858 = vmatpush.msra.mxu0 0.0
  %859 = vmatpush.msra.mxu0 0.0
  %860 = vmatpush.msra.mxu0 0.0
  %861 = vmatpush.msra.mxu0 %v237
  %862 = vmatpush.msra.mxu0 %v235
  %863 = vmatpush.msra.mxu0 %v233
  %864 = vmatpush.msra.mxu0 %v231
  %865 = vmatpush.msra.mxu0 %v229
  %866 = vmatpush.msra.mxu0 %v227
  %867 = vmatpush.msra.mxu0 %v225
  %868 = vmatpush.msra.mxu0 %v223
  %869 = vmatmul.f32.gmra.mxu0 %v831
  %v870 = vpop.f32.mrf.mxu0
  %v871 = vadd.f32 0.0, %v870
  %872 = vdwg.mxu0
  %v873 = vadd.f32 %v828, %v851
  %v874 = vxor.u32 %v873, 2147483648
  %v875 = vmul.f32 %v874, 1.442695
  %v876 = vpow.pop %v875
  %v877 = vadd.f32 %v876, 1.0
  %v878 = vrcp.pop %v877
  %v879 = vmul.f32 %v877, %v878
  %v880 = vsub.f32 1.0, %v879
  %v881 = vmul.f32 %v878, %v880
  %v882 = vadd.f32 %v878, %v881
  %vm883 = vweird.f32 %v877
  %vm884 = vweird.f32 %v878
  %vm885 = vmor %vm883, %vm884
  %v886 = vsel %vm885, %v878, %v882
  %v887 = vand.u32 2147483647, %v877
  %vm888 = vcmp.eq.f32.partialorder %v887, 8.507059e+37
  %v889 = vand.u32 %v877, 2147483648
  %v890 = vor.u32 1.1754944e-38, %v889
  %v891 = vsel %vm888, %v890, %v886
  %v892 = vmul.f32 1.0, %v891
  %v893 = vadd.f32 %v871, %v314
  %v894 = vmul.f32 %v892, %v893
  %v895 = vadd.f32 %v829, %v894
  %v896 = vtanh.pop %v895
  %v897 = vsub.f32 1.0, %v892
  %899 = vrot.lane.b32.xlu0 %v896, 64
  %v900 = vpop.permute.xlu0 %899
  %v902 = vmul.f32 %v897, %v900
  %903 = vrot.lane.b32.xlu0 %v820, 64
  %v904 = vpop.permute.xlu0 %903
  %v906 = vmul.f32 %v892, %v904
  %v907 = vadd.f32 %v902, %v906
  %v908 = vsel %vm75, 6, 1
  %vm909 = vcmp.lt.s32.totalorder %v908, %v331
  %911 = vrot.lane.b32.xlu0 %v907, 64
  %v912 = vpop.permute.xlu0 %911
  %v914 = vsel %vm909, %v912, %v820
  %v915 = vsel %vm909, %v912, 0.0
  %916 = vst.msk [vmem:[%s438] sm:$0xff] %vm98, %v915
  %917 = vst.msk [vmem:[%s436] sm:$0xff] %vm340, %v915
  %v918 = vld [vmem:[%s241] sm:$0xff]
  %v919 = vld [vmem:[%s241 + $0x8] sm:$0xff]
  %v920 = vld [vmem:[#allocation2] sm:$0xff]
  %v921 = vld [vmem:[#allocation2 + $0x8] sm:$0xff]
  %v922 = vsel %vm246, %v918, %v920
  %v923 = vsel %vm247, %v919, %v921
  %v925 = vsel %vm206, %v914, 0
  %927 = vmatpush.msra.mxu0 0.0
  %928 = vmatpush.msra.mxu0 0.0
  %929 = vmatpush.msra.mxu0 0.0
  %930 = vmatpush.msra.mxu0 0.0
  %931 = vmatpush.msra.mxu0 0.0
  %932 = vmatpush.msra.mxu0 0.0
  %933 = vmatpush.msra.mxu0 0.0
  %934 = vmatpush.msra.mxu0 0.0
  %935 = vmatpush.msra.mxu0 %v236
  %936 = vmatpush.msra.mxu0 %v234
  %937 = vmatpush.msra.mxu0 %v232
  %938 = vmatpush.msra.mxu0 %v230
  %939 = vmatpush.msra.mxu0 %v228
  %940 = vmatpush.msra.mxu0 %v226
  %941 = vmatpush.msra.mxu0 %v224
  %942 = vmatpush.msra.mxu0 %v222
  %943 = vmatmul.f32.gmra.mxu0 %v925
  %v944 = vpop.f32.mrf.mxu0
  %v945 = vadd.f32 0.0, %v944
  %946 = vdwg.mxu0
  %947 = vmatpush.msra.mxu0 0.0
  %948 = vmatpush.msra.mxu0 0.0
  %949 = vmatpush.msra.mxu0 0.0
  %950 = vmatpush.msra.mxu0 0.0
  %951 = vmatpush.msra.mxu0 0.0
  %952 = vmatpush.msra.mxu0 0.0
  %953 = vmatpush.msra.mxu0 0.0
  %954 = vmatpush.msra.mxu0 0.0
  %955 = vmatpush.msra.mxu0 %v237
  %956 = vmatpush.msra.mxu0 %v235
  %957 = vmatpush.msra.mxu0 %v233
  %958 = vmatpush.msra.mxu0 %v231
  %959 = vmatpush.msra.mxu0 %v229
  %960 = vmatpush.msra.mxu0 %v227
  %961 = vmatpush.msra.mxu0 %v225
  %962 = vmatpush.msra.mxu0 %v223
  %963 = vmatmul.f32.gmra.mxu0 %v925
  %v964 = vpop.f32.mrf.mxu0
  %v965 = vadd.f32 0.0, %v964
  %966 = vdwg.mxu0
  %v967 = vadd.f32 %v922, %v945
  %v968 = vxor.u32 %v967, 2147483648
  %v969 = vmul.f32 %v968, 1.442695
  %v970 = vpow.pop %v969
  %v971 = vadd.f32 %v970, 1.0
  %v972 = vrcp.pop %v971
  %v973 = vmul.f32 %v971, %v972
  %v974 = vsub.f32 1.0, %v973
  %v975 = vmul.f32 %v972, %v974
  %v976 = vadd.f32 %v972, %v975
  %vm977 = vweird.f32 %v971
  %vm978 = vweird.f32 %v972
  %vm979 = vmor %vm977, %vm978
  %v980 = vsel %vm979, %v972, %v976
  %v981 = vand.u32 2147483647, %v971
  %vm982 = vcmp.eq.f32.partialorder %v981, 8.507059e+37
  %v983 = vand.u32 %v971, 2147483648
  %v984 = vor.u32 1.1754944e-38, %v983
  %v985 = vsel %vm982, %v984, %v980
  %v986 = vmul.f32 1.0, %v985
  %v987 = vadd.f32 %v965, %v314
  %v988 = vmul.f32 %v986, %v987
  %v989 = vadd.f32 %v923, %v988
  %v990 = vtanh.pop %v989
  %v991 = vsub.f32 1.0, %v986
  %993 = vrot.lane.b32.xlu0 %v990, 64
  %v994 = vpop.permute.xlu0 %993
  %v996 = vmul.f32 %v991, %v994
  %997 = vrot.lane.b32.xlu0 %v914, 64
  %v998 = vpop.permute.xlu0 %997
  %v1000 = vmul.f32 %v986, %v998
  %v1001 = vadd.f32 %v996, %v1000
  %v1002 = vsel %vm75, 7, 0
  %vm1003 = vcmp.lt.s32.totalorder %v1002, %v331
  %1005 = vrot.lane.b32.xlu0 %v1001, 64
  %v1006 = vpop.permute.xlu0 %1005
  %v1008 = vsel %vm1003, %v1006, 0.0
  %1009 = vst.msk [vmem:[%s339] sm:$0xff] %vm98, %v1008
  %1010 = vst.msk [vmem:[#allocation3] sm:$0xff] %vm340, %v1008
  %v1011 = vld [vmem:[#allocation3] sm:$0xff]
  %v1012 = vld [vmem:[#allocation3 + $0x8] sm:$0xff]
  %v1013 = vld [vmem:[#allocation3 + $0x10] sm:$0xff]
  %v1014 = vld [vmem:[#allocation3 + $0x18] sm:$0xff]
  %v1015 = vld [vmem:[#allocation3 + $0x20] sm:$0xff]
  %v1016 = vld [vmem:[#allocation3 + $0x28] sm:$0xff]
  %v1017 = vld [vmem:[#allocation3 + $0x30] sm:$0xff]
  %v1018 = vld [vmem:[#allocation3 + $0x38] sm:$0xff]
  %v1019 = vld [vmem:[%s6] sm:$0xff]
  %v1020 = vld [vmem:[%s6 + $0x8] sm:$0xff]
  %v1021 = vld [vmem:[%s6 + $0x10] sm:$0xff]
  %v1022 = vld [vmem:[%s6 + $0x18] sm:$0xff]
  %v1023 = vld [vmem:[%s6 + $0x20] sm:$0xff]
  %v1024 = vld [vmem:[%s6 + $0x28] sm:$0xff]
  %v1025 = vld [vmem:[%s6 + $0x30] sm:$0xff]
  %v1026 = vld [vmem:[%s6 + $0x38] sm:$0xff]
  %v1027 = vld [vmem:[%s6 + $0x40] sm:$0xff]
  %v1028 = vld [vmem:[%s6 + $0x48] sm:$0xff]
  %v1029 = vld [vmem:[%s6 + $0x50] sm:$0xff]
  %v1030 = vld [vmem:[%s6 + $0x58] sm:$0xff]
  %v1031 = vld [vmem:[%s6 + $0x60] sm:$0xff]
  %v1032 = vld [vmem:[%s6 + $0x68] sm:$0xff]
  %v1033 = vld [vmem:[%s6 + $0x70] sm:$0xff]
  %v1034 = vld [vmem:[%s6 + $0x78] sm:$0xff]
  %v1035 = vld [vmem:[%s8] sm:$0x3]
  %v1037 = vperm.slane %v1035, 0
  %v1038 = vperm.slane %v1035, 1
  %v1042 = vsel %vm206, %v1011, 0
  %v1045 = vsel %vm206, %v1012, 0
  %v1048 = vsel %vm206, %v1013, 0
  %v1051 = vsel %vm206, %v1014, 0
  %v1054 = vsel %vm206, %v1015, 0
  %v1057 = vsel %vm206, %v1016, 0
  %v1060 = vsel %vm206, %v1017, 0
  %v1063 = vsel %vm206, %v1018, 0
  %1065 = vmatpush.msra.mxu0 0.0
  %1066 = vmatpush.msra.mxu0 0.0
  %1067 = vmatpush.msra.mxu0 0.0
  %1068 = vmatpush.msra.mxu0 0.0
  %1069 = vmatpush.msra.mxu0 0.0
  %1070 = vmatpush.msra.mxu0 0.0
  %1071 = vmatpush.msra.mxu0 0.0
  %1072 = vmatpush.msra.mxu0 0.0
  %1073 = vmatpush.msra.mxu0 %v1033
  %1074 = vmatpush.msra.mxu0 %v1031
  %1075 = vmatpush.msra.mxu0 %v1029
  %1076 = vmatpush.msra.mxu0 %v1027
  %1077 = vmatpush.msra.mxu0 %v1025
  %1078 = vmatpush.msra.mxu0 %v1023
  %1079 = vmatpush.msra.mxu0 %v1021
  %1080 = vmatpush.msra.mxu0 %v1019
  %1081 = vmatmul.f32.gmra.mxu0 %v1042
  %v1082 = vpop.f32.mrf.mxu0
  %v1083 = vadd.f32 %v1037, %v1082
  %1084 = vmatmul.f32.gmra.mxu0 %v1045
  %v1085 = vpop.f32.mrf.mxu0
  %v1086 = vadd.f32 %v1037, %v1085
  %1087 = vmatmul.f32.gmra.mxu0 %v1048
  %v1088 = vpop.f32.mrf.mxu0
  %v1089 = vadd.f32 %v1037, %v1088
  %1090 = vmatmul.f32.gmra.mxu0 %v1051
  %v1091 = vpop.f32.mrf.mxu0
  %v1092 = vadd.f32 %v1037, %v1091
  %1093 = vmatmul.f32.gmra.mxu0 %v1054
  %v1094 = vpop.f32.mrf.mxu0
  %v1095 = vadd.f32 %v1037, %v1094
  %1096 = vmatmul.f32.gmra.mxu0 %v1057
  %v1097 = vpop.f32.mrf.mxu0
  %v1098 = vadd.f32 %v1037, %v1097
  %1099 = vmatmul.f32.gmra.mxu0 %v1060
  %v1100 = vpop.f32.mrf.mxu0
  %v1101 = vadd.f32 %v1037, %v1100
  %1102 = vmatmul.f32.gmra.mxu0 %v1063
  %v1103 = vpop.f32.mrf.mxu0
  %v1104 = vadd.f32 %v1037, %v1103
  %1105 = vdwg.mxu0
  %1106 = vmatpush.msra.mxu0 0.0
  %1107 = vmatpush.msra.mxu0 0.0
  %1108 = vmatpush.msra.mxu0 0.0
  %1109 = vmatpush.msra.mxu0 0.0
  %1110 = vmatpush.msra.mxu0 0.0
  %1111 = vmatpush.msra.mxu0 0.0
  %1112 = vmatpush.msra.mxu0 0.0
  %1113 = vmatpush.msra.mxu0 0.0
  %1114 = vmatpush.msra.mxu0 %v1034
  %1115 = vmatpush.msra.mxu0 %v1032
  %1116 = vmatpush.msra.mxu0 %v1030
  %1117 = vmatpush.msra.mxu0 %v1028
  %1118 = vmatpush.msra.mxu0 %v1026
  %1119 = vmatpush.msra.mxu0 %v1024
  %1120 = vmatpush.msra.mxu0 %v1022
  %1121 = vmatpush.msra.mxu0 %v1020
  %1122 = vmatmul.f32.gmra.mxu0 %v1042
  %v1123 = vpop.f32.mrf.mxu0
  %v1124 = vadd.f32 %v1038, %v1123
  %1125 = vmatmul.f32.gmra.mxu0 %v1045
  %v1126 = vpop.f32.mrf.mxu0
  %v1127 = vadd.f32 %v1038, %v1126
  %1128 = vmatmul.f32.gmra.mxu0 %v1048
  %v1129 = vpop.f32.mrf.mxu0
  %v1130 = vadd.f32 %v1038, %v1129
  %1131 = vmatmul.f32.gmra.mxu0 %v1051
  %v1132 = vpop.f32.mrf.mxu0
  %v1133 = vadd.f32 %v1038, %v1132
  %1134 = vmatmul.f32.gmra.mxu0 %v1054
  %v1135 = vpop.f32.mrf.mxu0
  %v1136 = vadd.f32 %v1038, %v1135
  %1137 = vmatmul.f32.gmra.mxu0 %v1057
  %v1138 = vpop.f32.mrf.mxu0
  %v1139 = vadd.f32 %v1038, %v1138
  %1140 = vmatmul.f32.gmra.mxu0 %v1060
  %v1141 = vpop.f32.mrf.mxu0
  %v1142 = vadd.f32 %v1038, %v1141
  %1143 = vmatmul.f32.gmra.mxu0 %v1063
  %v1144 = vpop.f32.mrf.mxu0
  %v1145 = vadd.f32 %v1038, %v1144
  %1146 = vdwg.mxu0
  %1147 = vst [vmem:[#allocation2] sm:$0xff] %v1083
  %1148 = vst.msk [vmem:[#allocation2 + $0x8] sm:$0xff] %vm206, %v1124
  %1149 = vst [vmem:[#allocation2 + $0x10] sm:$0xff] %v1086
  %1150 = vst.msk [vmem:[#allocation2 + $0x18] sm:$0xff] %vm206, %v1127
  %1151 = vst [vmem:[#allocation2 + $0x20] sm:$0xff] %v1089
  %1152 = vst.msk [vmem:[#allocation2 + $0x28] sm:$0xff] %vm206, %v1130
  %1153 = vst [vmem:[#allocation2 + $0x30] sm:$0xff] %v1092
  %1154 = vst.msk [vmem:[#allocation2 + $0x38] sm:$0xff] %vm206, %v1133
  %1155 = vst [vmem:[#allocation2 + $0x40] sm:$0xff] %v1095
  %1156 = vst.msk [vmem:[#allocation2 + $0x48] sm:$0xff] %vm206, %v1136
  %1157 = vst [vmem:[#allocation2 + $0x50] sm:$0xff] %v1098
  %1158 = vst.msk [vmem:[#allocation2 + $0x58] sm:$0xff] %vm206, %v1139
  %1159 = vst [vmem:[#allocation2 + $0x60] sm:$0xff] %v1101
  %1160 = vst.msk [vmem:[#allocation2 + $0x68] sm:$0xff] %vm206, %v1142
  %1161 = vst [vmem:[#allocation2 + $0x70] sm:$0xff] %v1104
  %1162 = vst.msk [vmem:[#allocation2 + $0x78] sm:$0xff] %vm206, %v1145
  %v1163 = vld [vmem:[%s7] sm:$0xff]
  %v1164 = vld [vmem:[%s7 + $0x8] sm:$0xff]
  %v1165 = vld [vmem:[%s7 + $0x10] sm:$0xff]
  %v1166 = vld [vmem:[%s7 + $0x18] sm:$0xff]
  %v1167 = vld [vmem:[%s7 + $0x20] sm:$0xff]
  %v1168 = vld [vmem:[%s7 + $0x28] sm:$0xff]
  %v1169 = vld [vmem:[%s7 + $0x30] sm:$0xff]
  %v1170 = vld [vmem:[%s7 + $0x38] sm:$0xff]
  %v1171 = vld [vmem:[%s7 + $0x40] sm:$0xff]
  %v1172 = vld [vmem:[%s7 + $0x48] sm:$0xff]
  %v1173 = vld [vmem:[%s7 + $0x50] sm:$0xff]
  %v1174 = vld [vmem:[%s7 + $0x58] sm:$0xff]
  %v1175 = vld [vmem:[%s7 + $0x60] sm:$0xff]
  %v1176 = vld [vmem:[%s7 + $0x68] sm:$0xff]
  %v1177 = vld [vmem:[%s7 + $0x70] sm:$0xff]
  %v1178 = vld [vmem:[%s7 + $0x78] sm:$0xff]
  %v1179 = vld [vmem:[%s9] sm:$0x1]
  %v1180 = vld [vmem:[#allocation2] sm:$0xff]
  %v1181 = vld [vmem:[#allocation2 + $0x8] sm:$0xff]
  %v1182 = vld [vmem:[%s241] sm:$0xff]
  %v1183 = vld [vmem:[%s241 + $0x8] sm:$0xff]
  %v1184 = vsel %vm246, %v1180, %v1182
  %v1185 = vsel %vm247, %v1181, %v1183
  %1186 = vmatpush.msra.mxu0 0.0
  %1187 = vmatpush.msra.mxu0 0.0
  %1188 = vmatpush.msra.mxu0 0.0
  %1189 = vmatpush.msra.mxu0 0.0
  %1190 = vmatpush.msra.mxu0 0.0
  %1191 = vmatpush.msra.mxu0 0.0
  %1192 = vmatpush.msra.mxu0 0.0
  %1193 = vmatpush.msra.mxu0 0.0
  %1194 = vmatpush.msra.mxu0 %v1177
  %1195 = vmatpush.msra.mxu0 %v1175
  %1196 = vmatpush.msra.mxu0 %v1173
  %1197 = vmatpush.msra.mxu0 %v1171
  %1198 = vmatpush.msra.mxu0 %v1169
  %1199 = vmatpush.msra.mxu0 %v1167
  %1200 = vmatpush.msra.mxu0 %v1165
  %1201 = vmatpush.msra.mxu0 %v1163
  %1202 = vmatmul.f32.gmra.mxu0 %v251
  %v1203 = vpop.f32.mrf.mxu0
  %v1204 = vadd.f32 0.0, %v1203
  %1205 = vdwg.mxu0
  %1206 = vmatpush.msra.mxu0 0.0
  %1207 = vmatpush.msra.mxu0 0.0
  %1208 = vmatpush.msra.mxu0 0.0
  %1209 = vmatpush.msra.mxu0 0.0
  %1210 = vmatpush.msra.mxu0 0.0
  %1211 = vmatpush.msra.mxu0 0.0
  %1212 = vmatpush.msra.mxu0 0.0
  %1213 = vmatpush.msra.mxu0 0.0
  %1214 = vmatpush.msra.mxu0 %v1178
  %1215 = vmatpush.msra.mxu0 %v1176
  %1216 = vmatpush.msra.mxu0 %v1174
  %1217 = vmatpush.msra.mxu0 %v1172
  %1218 = vmatpush.msra.mxu0 %v1170
  %1219 = vmatpush.msra.mxu0 %v1168
  %1220 = vmatpush.msra.mxu0 %v1166
  %1221 = vmatpush.msra.mxu0 %v1164
  %1222 = vmatmul.f32.gmra.mxu0 %v251
  %v1223 = vpop.f32.mrf.mxu0
  %v1224 = vadd.f32 0.0, %v1223
  %1225 = vdwg.mxu0
  %v1226 = vadd.f32 %v1184, %v1204
  %v1227 = vxor.u32 %v1226, 2147483648
  %v1228 = vmul.f32 %v1227, 1.442695
  %v1229 = vpow.pop %v1228
  %v1230 = vadd.f32 %v1229, 1.0
  %v1231 = vrcp.pop %v1230
  %v1232 = vmul.f32 %v1230, %v1231
  %v1233 = vsub.f32 1.0, %v1232
  %v1234 = vmul.f32 %v1231, %v1233
  %v1235 = vadd.f32 %v1231, %v1234
  %vm1236 = vweird.f32 %v1230
  %vm1237 = vweird.f32 %v1231
  %vm1238 = vmor %vm1236, %vm1237
  %v1239 = vsel %vm1238, %v1231, %v1235
  %v1240 = vand.u32 2147483647, %v1230
  %vm1241 = vcmp.eq.f32.partialorder %v1240, 8.507059e+37
  %v1242 = vand.u32 %v1230, 2147483648
  %v1243 = vor.u32 1.1754944e-38, %v1242
  %v1244 = vsel %vm1241, %v1243, %v1239
  %v1245 = vmul.f32 1.0, %v1244
  %v1247 = vperm.slane %v1179, 0
  %v1249 = vadd.f32 %v1224, %v1247
  %v1250 = vmul.f32 %v1245, %v1249
  %v1251 = vadd.f32 %v1185, %v1250
  %v1252 = vtanh.pop %v1251
  %v1253 = vsub.f32 1.0, %v1245
  %1255 = vrot.lane.b32.xlu0 %v1252, 64
  %v1256 = vpop.permute.xlu0 %1255
  %v1258 = vmul.f32 %v1253, %v1256
  %v1259 = vmul.f32 %v1245, 0.0
  %v1260 = vadd.f32 %v1258, %v1259
  %1262 = vrot.lane.b32.xlu0 %v1260, 64
  %v1263 = vpop.permute.xlu0 %1262
  %v1265 = vsel %vm332, %v1263, 0.0
  %1266 = vst.msk [vmem:[#allocation4] sm:$0xff] %vm98, %v1265
  %s1267 = scalar_lea.vmem [#allocation4], 56
  %1268 = vst.msk [vmem:[%s1267] sm:$0xff] %vm340, %v1265
  %v1269 = vld [vmem:[%s342] sm:$0xff]
  %v1270 = vld [vmem:[%s342 + $0x8] sm:$0xff]
  %v1271 = vld [vmem:[%s345] sm:$0xff]
  %v1272 = vld [vmem:[%s345 + $0x8] sm:$0xff]
  %v1273 = vsel %vm246, %v1269, %v1271
  %v1274 = vsel %vm247, %v1270, %v1272
  %v1276 = vsel %vm206, %v1265, 0
  %1278 = vmatpush.msra.mxu0 0.0
  %1279 = vmatpush.msra.mxu0 0.0
  %1280 = vmatpush.msra.mxu0 0.0
  %1281 = vmatpush.msra.mxu0 0.0
  %1282 = vmatpush.msra.mxu0 0.0
  %1283 = vmatpush.msra.mxu0 0.0
  %1284 = vmatpush.msra.mxu0 0.0
  %1285 = vmatpush.msra.mxu0 0.0
  %1286 = vmatpush.msra.mxu0 %v1177
  %1287 = vmatpush.msra.mxu0 %v1175
  %1288 = vmatpush.msra.mxu0 %v1173
  %1289 = vmatpush.msra.mxu0 %v1171
  %1290 = vmatpush.msra.mxu0 %v1169
  %1291 = vmatpush.msra.mxu0 %v1167
  %1292 = vmatpush.msra.mxu0 %v1165
  %1293 = vmatpush.msra.mxu0 %v1163
  %1294 = vmatmul.f32.gmra.mxu0 %v1276
  %v1295 = vpop.f32.mrf.mxu0
  %v1296 = vadd.f32 0.0, %v1295
  %1297 = vdwg.mxu0
  %1298 = vmatpush.msra.mxu0 0.0
  %1299 = vmatpush.msra.mxu0 0.0
  %1300 = vmatpush.msra.mxu0 0.0
  %1301 = vmatpush.msra.mxu0 0.0
  %1302 = vmatpush.msra.mxu0 0.0
  %1303 = vmatpush.msra.mxu0 0.0
  %1304 = vmatpush.msra.mxu0 0.0
  %1305 = vmatpush.msra.mxu0 0.0
  %1306 = vmatpush.msra.mxu0 %v1178
  %1307 = vmatpush.msra.mxu0 %v1176
  %1308 = vmatpush.msra.mxu0 %v1174
  %1309 = vmatpush.msra.mxu0 %v1172
  %1310 = vmatpush.msra.mxu0 %v1170
  %1311 = vmatpush.msra.mxu0 %v1168
  %1312 = vmatpush.msra.mxu0 %v1166
  %1313 = vmatpush.msra.mxu0 %v1164
  %1314 = vmatmul.f32.gmra.mxu0 %v1276
  %v1315 = vpop.f32.mrf.mxu0
  %v1316 = vadd.f32 0.0, %v1315
  %1317 = vdwg.mxu0
  %v1318 = vadd.f32 %v1273, %v1296
  %v1319 = vxor.u32 %v1318, 2147483648
  %v1320 = vmul.f32 %v1319, 1.442695
  %v1321 = vpow.pop %v1320
  %v1322 = vadd.f32 %v1321, 1.0
  %v1323 = vrcp.pop %v1322
  %v1324 = vmul.f32 %v1322, %v1323
  %v1325 = vsub.f32 1.0, %v1324
  %v1326 = vmul.f32 %v1323, %v1325
  %v1327 = vadd.f32 %v1323, %v1326
  %vm1328 = vweird.f32 %v1322
  %vm1329 = vweird.f32 %v1323
  %vm1330 = vmor %vm1328, %vm1329
  %v1331 = vsel %vm1330, %v1323, %v1327
  %v1332 = vand.u32 2147483647, %v1322
  %vm1333 = vcmp.eq.f32.partialorder %v1332, 8.507059e+37
  %v1334 = vand.u32 %v1322, 2147483648
  %v1335 = vor.u32 1.1754944e-38, %v1334
  %v1336 = vsel %vm1333, %v1335, %v1331
  %v1337 = vmul.f32 1.0, %v1336
  %v1338 = vadd.f32 %v1316, %v1247
  %v1339 = vmul.f32 %v1337, %v1338
  %v1340 = vadd.f32 %v1274, %v1339
  %v1341 = vtanh.pop %v1340
  %v1342 = vsub.f32 1.0, %v1337
  %1344 = vrot.lane.b32.xlu0 %v1341, 64
  %v1345 = vpop.permute.xlu0 %1344
  %v1347 = vmul.f32 %v1342, %v1345
  %1348 = vrot.lane.b32.xlu0 %v1265, 64
  %v1349 = vpop.permute.xlu0 %1348
  %v1351 = vmul.f32 %v1337, %v1349
  %v1352 = vadd.f32 %v1347, %v1351
  %1354 = vrot.lane.b32.xlu0 %v1352, 64
  %v1355 = vpop.permute.xlu0 %1354
  %v1357 = vsel %vm429, %v1355, %v1265
  %v1358 = vsel %vm429, %v1355, 0.0
  %s1359 = scalar_lea.vmem [#allocation4], 8
  %1360 = vst.msk [vmem:[%s1359] sm:$0xff] %vm98, %v1358
  %s1361 = scalar_lea.vmem [#allocation4], 48
  %1362 = vst.msk [vmem:[%s1361] sm:$0xff] %vm340, %v1358
  %v1363 = vld [vmem:[%s440] sm:$0xff]
  %v1364 = vld [vmem:[%s440 + $0x8] sm:$0xff]
  %v1365 = vld [vmem:[%s443] sm:$0xff]
  %v1366 = vld [vmem:[%s443 + $0x8] sm:$0xff]
  %v1367 = vsel %vm246, %v1363, %v1365
  %v1368 = vsel %vm247, %v1364, %v1366
  %v1370 = vsel %vm206, %v1357, 0
  %1372 = vmatpush.msra.mxu0 0.0
  %1373 = vmatpush.msra.mxu0 0.0
  %1374 = vmatpush.msra.mxu0 0.0
  %1375 = vmatpush.msra.mxu0 0.0
  %1376 = vmatpush.msra.mxu0 0.0
  %1377 = vmatpush.msra.mxu0 0.0
  %1378 = vmatpush.msra.mxu0 0.0
  %1379 = vmatpush.msra.mxu0 0.0
  %1380 = vmatpush.msra.mxu0 %v1177
  %1381 = vmatpush.msra.mxu0 %v1175
  %1382 = vmatpush.msra.mxu0 %v1173
  %1383 = vmatpush.msra.mxu0 %v1171
  %1384 = vmatpush.msra.mxu0 %v1169
  %1385 = vmatpush.msra.mxu0 %v1167
  %1386 = vmatpush.msra.mxu0 %v1165
  %1387 = vmatpush.msra.mxu0 %v1163
  %1388 = vmatmul.f32.gmra.mxu0 %v1370
  %v1389 = vpop.f32.mrf.mxu0
  %v1390 = vadd.f32 0.0, %v1389
  %1391 = vdwg.mxu0
  %1392 = vmatpush.msra.mxu0 0.0
  %1393 = vmatpush.msra.mxu0 0.0
  %1394 = vmatpush.msra.mxu0 0.0
  %1395 = vmatpush.msra.mxu0 0.0
  %1396 = vmatpush.msra.mxu0 0.0
  %1397 = vmatpush.msra.mxu0 0.0
  %1398 = vmatpush.msra.mxu0 0.0
  %1399 = vmatpush.msra.mxu0 0.0
  %1400 = vmatpush.msra.mxu0 %v1178
  %1401 = vmatpush.msra.mxu0 %v1176
  %1402 = vmatpush.msra.mxu0 %v1174
  %1403 = vmatpush.msra.mxu0 %v1172
  %1404 = vmatpush.msra.mxu0 %v1170
  %1405 = vmatpush.msra.mxu0 %v1168
  %1406 = vmatpush.msra.mxu0 %v1166
  %1407 = vmatpush.msra.mxu0 %v1164
  %1408 = vmatmul.f32.gmra.mxu0 %v1370
  %v1409 = vpop.f32.mrf.mxu0
  %v1410 = vadd.f32 0.0, %v1409
  %1411 = vdwg.mxu0
  %v1412 = vadd.f32 %v1367, %v1390
  %v1413 = vxor.u32 %v1412, 2147483648
  %v1414 = vmul.f32 %v1413, 1.442695
  %v1415 = vpow.pop %v1414
  %v1416 = vadd.f32 %v1415, 1.0
  %v1417 = vrcp.pop %v1416
  %v1418 = vmul.f32 %v1416, %v1417
  %v1419 = vsub.f32 1.0, %v1418
  %v1420 = vmul.f32 %v1417, %v1419
  %v1421 = vadd.f32 %v1417, %v1420
  %vm1422 = vweird.f32 %v1416
  %vm1423 = vweird.f32 %v1417
  %vm1424 = vmor %vm1422, %vm1423
  %v1425 = vsel %vm1424, %v1417, %v1421
  %v1426 = vand.u32 2147483647, %v1416
  %vm1427 = vcmp.eq.f32.partialorder %v1426, 8.507059e+37
  %v1428 = vand.u32 %v1416, 2147483648
  %v1429 = vor.u32 1.1754944e-38, %v1428
  %v1430 = vsel %vm1427, %v1429, %v1425
  %v1431 = vmul.f32 1.0, %v1430
  %v1432 = vadd.f32 %v1410, %v1247
  %v1433 = vmul.f32 %v1431, %v1432
  %v1434 = vadd.f32 %v1368, %v1433
  %v1435 = vtanh.pop %v1434
  %v1436 = vsub.f32 1.0, %v1431
  %1438 = vrot.lane.b32.xlu0 %v1435, 64
  %v1439 = vpop.permute.xlu0 %1438
  %v1441 = vmul.f32 %v1436, %v1439
  %1442 = vrot.lane.b32.xlu0 %v1357, 64
  %v1443 = vpop.permute.xlu0 %1442
  %v1445 = vmul.f32 %v1431, %v1443
  %v1446 = vadd.f32 %v1441, %v1445
  %1448 = vrot.lane.b32.xlu0 %v1446, 64
  %v1449 = vpop.permute.xlu0 %1448
  %v1451 = vsel %vm527, %v1449, %v1357
  %v1452 = vsel %vm527, %v1449, 0.0
  %s1453 = scalar_lea.vmem [#allocation4], 16
  %1454 = vst.msk [vmem:[%s1453] sm:$0xff] %vm98, %v1452
  %s1455 = scalar_lea.vmem [#allocation4], 40
  %1456 = vst.msk [vmem:[%s1455] sm:$0xff] %vm340, %v1452
  %v1457 = vld [vmem:[%s538] sm:$0xff]
  %v1458 = vld [vmem:[%s538 + $0x8] sm:$0xff]
  %v1459 = vld [vmem:[%s541] sm:$0xff]
  %v1460 = vld [vmem:[%s541 + $0x8] sm:$0xff]
  %v1461 = vsel %vm246, %v1457, %v1459
  %v1462 = vsel %vm247, %v1458, %v1460
  %v1464 = vsel %vm206, %v1451, 0
  %1466 = vmatpush.msra.mxu0 0.0
  %1467 = vmatpush.msra.mxu0 0.0
  %1468 = vmatpush.msra.mxu0 0.0
  %1469 = vmatpush.msra.mxu0 0.0
  %1470 = vmatpush.msra.mxu0 0.0
  %1471 = vmatpush.msra.mxu0 0.0
  %1472 = vmatpush.msra.mxu0 0.0
  %1473 = vmatpush.msra.mxu0 0.0
  %1474 = vmatpush.msra.mxu0 %v1177
  %1475 = vmatpush.msra.mxu0 %v1175
  %1476 = vmatpush.msra.mxu0 %v1173
  %1477 = vmatpush.msra.mxu0 %v1171
  %1478 = vmatpush.msra.mxu0 %v1169
  %1479 = vmatpush.msra.mxu0 %v1167
  %1480 = vmatpush.msra.mxu0 %v1165
  %1481 = vmatpush.msra.mxu0 %v1163
  %1482 = vmatmul.f32.gmra.mxu0 %v1464
  %v1483 = vpop.f32.mrf.mxu0
  %v1484 = vadd.f32 0.0, %v1483
  %1485 = vdwg.mxu0
  %1486 = vmatpush.msra.mxu0 0.0
  %1487 = vmatpush.msra.mxu0 0.0
  %1488 = vmatpush.msra.mxu0 0.0
  %1489 = vmatpush.msra.mxu0 0.0
  %1490 = vmatpush.msra.mxu0 0.0
  %1491 = vmatpush.msra.mxu0 0.0
  %1492 = vmatpush.msra.mxu0 0.0
  %1493 = vmatpush.msra.mxu0 0.0
  %1494 = vmatpush.msra.mxu0 %v1178
  %1495 = vmatpush.msra.mxu0 %v1176
  %1496 = vmatpush.msra.mxu0 %v1174
  %1497 = vmatpush.msra.mxu0 %v1172
  %1498 = vmatpush.msra.mxu0 %v1170
  %1499 = vmatpush.msra.mxu0 %v1168
  %1500 = vmatpush.msra.mxu0 %v1166
  %1501 = vmatpush.msra.mxu0 %v1164
  %1502 = vmatmul.f32.gmra.mxu0 %v1464
  %v1503 = vpop.f32.mrf.mxu0
  %v1504 = vadd.f32 0.0, %v1503
  %1505 = vdwg.mxu0
  %v1506 = vadd.f32 %v1461, %v1484
  %v1507 = vxor.u32 %v1506, 2147483648
  %v1508 = vmul.f32 %v1507, 1.442695
  %v1509 = vpow.pop %v1508
  %v1510 = vadd.f32 %v1509, 1.0
  %v1511 = vrcp.pop %v1510
  %v1512 = vmul.f32 %v1510, %v1511
  %v1513 = vsub.f32 1.0, %v1512
  %v1514 = vmul.f32 %v1511, %v1513
  %v1515 = vadd.f32 %v1511, %v1514
  %vm1516 = vweird.f32 %v1510
  %vm1517 = vweird.f32 %v1511
  %vm1518 = vmor %vm1516, %vm1517
  %v1519 = vsel %vm1518, %v1511, %v1515
  %v1520 = vand.u32 2147483647, %v1510
  %vm1521 = vcmp.eq.f32.partialorder %v1520, 8.507059e+37
  %v1522 = vand.u32 %v1510, 2147483648
  %v1523 = vor.u32 1.1754944e-38, %v1522
  %v1524 = vsel %vm1521, %v1523, %v1519
  %v1525 = vmul.f32 1.0, %v1524
  %v1526 = vadd.f32 %v1504, %v1247
  %v1527 = vmul.f32 %v1525, %v1526
  %v1528 = vadd.f32 %v1462, %v1527
  %v1529 = vtanh.pop %v1528
  %v1530 = vsub.f32 1.0, %v1525
  %1532 = vrot.lane.b32.xlu0 %v1529, 64
  %v1533 = vpop.permute.xlu0 %1532
  %v1535 = vmul.f32 %v1530, %v1533
  %1536 = vrot.lane.b32.xlu0 %v1451, 64
  %v1537 = vpop.permute.xlu0 %1536
  %v1539 = vmul.f32 %v1525, %v1537
  %v1540 = vadd.f32 %v1535, %v1539
  %1542 = vrot.lane.b32.xlu0 %v1540, 64
  %v1543 = vpop.permute.xlu0 %1542
  %v1545 = vsel %vm625, %v1543, %v1451
  %v1546 = vsel %vm625, %v1543, 0.0
  %s1547 = scalar_lea.vmem [#allocation4], 24
  %1548 = vst.msk [vmem:[%s1547] sm:$0xff] %vm98, %v1546
  %s1549 = scalar_lea.vmem [#allocation4], 32
  %1550 = vst.msk [vmem:[%s1549] sm:$0xff] %vm340, %v1546
  %v1551 = vld [vmem:[%s541] sm:$0xff]
  %v1552 = vld [vmem:[%s541 + $0x8] sm:$0xff]
  %v1553 = vld [vmem:[%s538] sm:$0xff]
  %v1554 = vld [vmem:[%s538 + $0x8] sm:$0xff]
  %v1555 = vsel %vm246, %v1551, %v1553
  %v1556 = vsel %vm247, %v1552, %v1554
  %v1558 = vsel %vm206, %v1545, 0
  %1560 = vmatpush.msra.mxu0 0.0
  %1561 = vmatpush.msra.mxu0 0.0
  %1562 = vmatpush.msra.mxu0 0.0
  %1563 = vmatpush.msra.mxu0 0.0
  %1564 = vmatpush.msra.mxu0 0.0
  %1565 = vmatpush.msra.mxu0 0.0
  %1566 = vmatpush.msra.mxu0 0.0
  %1567 = vmatpush.msra.mxu0 0.0
  %1568 = vmatpush.msra.mxu0 %v1177
  %1569 = vmatpush.msra.mxu0 %v1175
  %1570 = vmatpush.msra.mxu0 %v1173
  %1571 = vmatpush.msra.mxu0 %v1171
  %1572 = vmatpush.msra.mxu0 %v1169
  %1573 = vmatpush.msra.mxu0 %v1167
  %1574 = vmatpush.msra.mxu0 %v1165
  %1575 = vmatpush.msra.mxu0 %v1163
  %1576 = vmatmul.f32.gmra.mxu0 %v1558
  %v1577 = vpop.f32.mrf.mxu0
  %v1578 = vadd.f32 0.0, %v1577
  %1579 = vdwg.mxu0
  %1580 = vmatpush.msra.mxu0 0.0
  %1581 = vmatpush.msra.mxu0 0.0
  %1582 = vmatpush.msra.mxu0 0.0
  %1583 = vmatpush.msra.mxu0 0.0
  %1584 = vmatpush.msra.mxu0 0.0
  %1585 = vmatpush.msra.mxu0 0.0
  %1586 = vmatpush.msra.mxu0 0.0
  %1587 = vmatpush.msra.mxu0 0.0
  %1588 = vmatpush.msra.mxu0 %v1178
  %1589 = vmatpush.msra.mxu0 %v1176
  %1590 = vmatpush.msra.mxu0 %v1174
  %1591 = vmatpush.msra.mxu0 %v1172
  %1592 = vmatpush.msra.mxu0 %v1170
  %1593 = vmatpush.msra.mxu0 %v1168
  %1594 = vmatpush.msra.mxu0 %v1166
  %1595 = vmatpush.msra.mxu0 %v1164
  %1596 = vmatmul.f32.gmra.mxu0 %v1558
  %v1597 = vpop.f32.mrf.mxu0
  %v1598 = vadd.f32 0.0, %v1597
  %1599 = vdwg.mxu0
  %v1600 = vadd.f32 %v1555, %v1578
  %v1601 = vxor.u32 %v1600, 2147483648
  %v1602 = vmul.f32 %v1601, 1.442695
  %v1603 = vpow.pop %v1602
  %v1604 = vadd.f32 %v1603, 1.0
  %v1605 = vrcp.pop %v1604
  %v1606 = vmul.f32 %v1604, %v1605
  %v1607 = vsub.f32 1.0, %v1606
  %v1608 = vmul.f32 %v1605, %v1607
  %v1609 = vadd.f32 %v1605, %v1608
  %vm1610 = vweird.f32 %v1604
  %vm1611 = vweird.f32 %v1605
  %vm1612 = vmor %vm1610, %vm1611
  %v1613 = vsel %vm1612, %v1605, %v1609
  %v1614 = vand.u32 2147483647, %v1604
  %vm1615 = vcmp.eq.f32.partialorder %v1614, 8.507059e+37
  %v1616 = vand.u32 %v1604, 2147483648
  %v1617 = vor.u32 1.1754944e-38, %v1616
  %v1618 = vsel %vm1615, %v1617, %v1613
  %v1619 = vmul.f32 1.0, %v1618
  %v1620 = vadd.f32 %v1598, %v1247
  %v1621 = vmul.f32 %v1619, %v1620
  %v1622 = vadd.f32 %v1556, %v1621
  %v1623 = vtanh.pop %v1622
  %v1624 = vsub.f32 1.0, %v1619
  %1626 = vrot.lane.b32.xlu0 %v1623, 64
  %v1627 = vpop.permute.xlu0 %1626
  %v1629 = vmul.f32 %v1624, %v1627
  %1630 = vrot.lane.b32.xlu0 %v1545, 64
  %v1631 = vpop.permute.xlu0 %1630
  %v1633 = vmul.f32 %v1619, %v1631
  %v1634 = vadd.f32 %v1629, %v1633
  %1636 = vrot.lane.b32.xlu0 %v1634, 64
  %v1637 = vpop.permute.xlu0 %1636
  %v1639 = vsel %vm721, %v1637, %v1545
  %v1640 = vsel %vm721, %v1637, 0.0
  %1641 = vst.msk [vmem:[%s1549] sm:$0xff] %vm98, %v1640
  %1642 = vst.msk [vmem:[%s1547] sm:$0xff] %vm340, %v1640
  %v1643 = vld [vmem:[%s443] sm:$0xff]
  %v1644 = vld [vmem:[%s443 + $0x8] sm:$0xff]
  %v1645 = vld [vmem:[%s440] sm:$0xff]
  %v1646 = vld [vmem:[%s440 + $0x8] sm:$0xff]
  %v1647 = vsel %vm246, %v1643, %v1645
  %v1648 = vsel %vm247, %v1644, %v1646
  %v1650 = vsel %vm206, %v1639, 0
  %1652 = vmatpush.msra.mxu0 0.0
  %1653 = vmatpush.msra.mxu0 0.0
  %1654 = vmatpush.msra.mxu0 0.0
  %1655 = vmatpush.msra.mxu0 0.0
  %1656 = vmatpush.msra.mxu0 0.0
  %1657 = vmatpush.msra.mxu0 0.0
  %1658 = vmatpush.msra.mxu0 0.0
  %1659 = vmatpush.msra.mxu0 0.0
  %1660 = vmatpush.msra.mxu0 %v1177
  %1661 = vmatpush.msra.mxu0 %v1175
  %1662 = vmatpush.msra.mxu0 %v1173
  %1663 = vmatpush.msra.mxu0 %v1171
  %1664 = vmatpush.msra.mxu0 %v1169
  %1665 = vmatpush.msra.mxu0 %v1167
  %1666 = vmatpush.msra.mxu0 %v1165
  %1667 = vmatpush.msra.mxu0 %v1163
  %1668 = vmatmul.f32.gmra.mxu0 %v1650
  %v1669 = vpop.f32.mrf.mxu0
  %v1670 = vadd.f32 0.0, %v1669
  %1671 = vdwg.mxu0
  %1672 = vmatpush.msra.mxu0 0.0
  %1673 = vmatpush.msra.mxu0 0.0
  %1674 = vmatpush.msra.mxu0 0.0
  %1675 = vmatpush.msra.mxu0 0.0
  %1676 = vmatpush.msra.mxu0 0.0
  %1677 = vmatpush.msra.mxu0 0.0
  %1678 = vmatpush.msra.mxu0 0.0
  %1679 = vmatpush.msra.mxu0 0.0
  %1680 = vmatpush.msra.mxu0 %v1178
  %1681 = vmatpush.msra.mxu0 %v1176
  %1682 = vmatpush.msra.mxu0 %v1174
  %1683 = vmatpush.msra.mxu0 %v1172
  %1684 = vmatpush.msra.mxu0 %v1170
  %1685 = vmatpush.msra.mxu0 %v1168
  %1686 = vmatpush.msra.mxu0 %v1166
  %1687 = vmatpush.msra.mxu0 %v1164
  %1688 = vmatmul.f32.gmra.mxu0 %v1650
  %v1689 = vpop.f32.mrf.mxu0
  %v1690 = vadd.f32 0.0, %v1689
  %1691 = vdwg.mxu0
  %v1692 = vadd.f32 %v1647, %v1670
  %v1693 = vxor.u32 %v1692, 2147483648
  %v1694 = vmul.f32 %v1693, 1.442695
  %v1695 = vpow.pop %v1694
  %v1696 = vadd.f32 %v1695, 1.0
  %v1697 = vrcp.pop %v1696
  %v1698 = vmul.f32 %v1696, %v1697
  %v1699 = vsub.f32 1.0, %v1698
  %v1700 = vmul.f32 %v1697, %v1699
  %v1701 = vadd.f32 %v1697, %v1700
  %vm1702 = vweird.f32 %v1696
  %vm1703 = vweird.f32 %v1697
  %vm1704 = vmor %vm1702, %vm1703
  %v1705 = vsel %vm1704, %v1697, %v1701
  %v1706 = vand.u32 2147483647, %v1696
  %vm1707 = vcmp.eq.f32.partialorder %v1706, 8.507059e+37
  %v1708 = vand.u32 %v1696, 2147483648
  %v1709 = vor.u32 1.1754944e-38, %v1708
  %v1710 = vsel %vm1707, %v1709, %v1705
  %v1711 = vmul.f32 1.0, %v1710
  %v1712 = vadd.f32 %v1690, %v1247
  %v1713 = vmul.f32 %v1711, %v1712
  %v1714 = vadd.f32 %v1648, %v1713
  %v1715 = vtanh.pop %v1714
  %v1716 = vsub.f32 1.0, %v1711
  %1718 = vrot.lane.b32.xlu0 %v1715, 64
  %v1719 = vpop.permute.xlu0 %1718
  %v1721 = vmul.f32 %v1716, %v1719
  %1722 = vrot.lane.b32.xlu0 %v1639, 64
  %v1723 = vpop.permute.xlu0 %1722
  %v1725 = vmul.f32 %v1711, %v1723
  %v1726 = vadd.f32 %v1721, %v1725
  %1728 = vrot.lane.b32.xlu0 %v1726, 64
  %v1729 = vpop.permute.xlu0 %1728
  %v1731 = vsel %vm815, %v1729, %v1639
  %v1732 = vsel %vm815, %v1729, 0.0
  %1733 = vst.msk [vmem:[%s1455] sm:$0xff] %vm98, %v1732
  %1734 = vst.msk [vmem:[%s1453] sm:$0xff] %vm340, %v1732
  %v1735 = vld [vmem:[%s345] sm:$0xff]
  %v1736 = vld [vmem:[%s345 + $0x8] sm:$0xff]
  %v1737 = vld [vmem:[%s342] sm:$0xff]
  %v1738 = vld [vmem:[%s342 + $0x8] sm:$0xff]
  %v1739 = vsel %vm246, %v1735, %v1737
  %v1740 = vsel %vm247, %v1736, %v1738
  %v1742 = vsel %vm206, %v1731, 0
  %1744 = vmatpush.msra.mxu0 0.0
  %1745 = vmatpush.msra.mxu0 0.0
  %1746 = vmatpush.msra.mxu0 0.0
  %1747 = vmatpush.msra.mxu0 0.0
  %1748 = vmatpush.msra.mxu0 0.0
  %1749 = vmatpush.msra.mxu0 0.0
  %1750 = vmatpush.msra.mxu0 0.0
  %1751 = vmatpush.msra.mxu0 0.0
  %1752 = vmatpush.msra.mxu0 %v1177
  %1753 = vmatpush.msra.mxu0 %v1175
  %1754 = vmatpush.msra.mxu0 %v1173
  %1755 = vmatpush.msra.mxu0 %v1171
  %1756 = vmatpush.msra.mxu0 %v1169
  %1757 = vmatpush.msra.mxu0 %v1167
  %1758 = vmatpush.msra.mxu0 %v1165
  %1759 = vmatpush.msra.mxu0 %v1163
  %1760 = vmatmul.f32.gmra.mxu0 %v1742
  %v1761 = vpop.f32.mrf.mxu0
  %v1762 = vadd.f32 0.0, %v1761
  %1763 = vdwg.mxu0
  %1764 = vmatpush.msra.mxu0 0.0
  %1765 = vmatpush.msra.mxu0 0.0
  %1766 = vmatpush.msra.mxu0 0.0
  %1767 = vmatpush.msra.mxu0 0.0
  %1768 = vmatpush.msra.mxu0 0.0
  %1769 = vmatpush.msra.mxu0 0.0
  %1770 = vmatpush.msra.mxu0 0.0
  %1771 = vmatpush.msra.mxu0 0.0
  %1772 = vmatpush.msra.mxu0 %v1178
  %1773 = vmatpush.msra.mxu0 %v1176
  %1774 = vmatpush.msra.mxu0 %v1174
  %1775 = vmatpush.msra.mxu0 %v1172
  %1776 = vmatpush.msra.mxu0 %v1170
  %1777 = vmatpush.msra.mxu0 %v1168
  %1778 = vmatpush.msra.mxu0 %v1166
  %1779 = vmatpush.msra.mxu0 %v1164
  %1780 = vmatmul.f32.gmra.mxu0 %v1742
  %v1781 = vpop.f32.mrf.mxu0
  %v1782 = vadd.f32 0.0, %v1781
  %1783 = vdwg.mxu0
  %v1784 = vadd.f32 %v1739, %v1762
  %v1785 = vxor.u32 %v1784, 2147483648
  %v1786 = vmul.f32 %v1785, 1.442695
  %v1787 = vpow.pop %v1786
  %v1788 = vadd.f32 %v1787, 1.0
  %v1789 = vrcp.pop %v1788
  %v1790 = vmul.f32 %v1788, %v1789
  %v1791 = vsub.f32 1.0, %v1790
  %v1792 = vmul.f32 %v1789, %v1791
  %v1793 = vadd.f32 %v1789, %v1792
  %vm1794 = vweird.f32 %v1788
  %vm1795 = vweird.f32 %v1789
  %vm1796 = vmor %vm1794, %vm1795
  %v1797 = vsel %vm1796, %v1789, %v1793
  %v1798 = vand.u32 2147483647, %v1788
  %vm1799 = vcmp.eq.f32.partialorder %v1798, 8.507059e+37
  %v1800 = vand.u32 %v1788, 2147483648
  %v1801 = vor.u32 1.1754944e-38, %v1800
  %v1802 = vsel %vm1799, %v1801, %v1797
  %v1803 = vmul.f32 1.0, %v1802
  %v1804 = vadd.f32 %v1782, %v1247
  %v1805 = vmul.f32 %v1803, %v1804
  %v1806 = vadd.f32 %v1740, %v1805
  %v1807 = vtanh.pop %v1806
  %v1808 = vsub.f32 1.0, %v1803
  %1810 = vrot.lane.b32.xlu0 %v1807, 64
  %v1811 = vpop.permute.xlu0 %1810
  %v1813 = vmul.f32 %v1808, %v1811
  %1814 = vrot.lane.b32.xlu0 %v1731, 64
  %v1815 = vpop.permute.xlu0 %1814
  %v1817 = vmul.f32 %v1803, %v1815
  %v1818 = vadd.f32 %v1813, %v1817
  %1820 = vrot.lane.b32.xlu0 %v1818, 64
  %v1821 = vpop.permute.xlu0 %1820
  %v1823 = vsel %vm909, %v1821, %v1731
  %v1824 = vsel %vm909, %v1821, 0.0
  %1825 = vst.msk [vmem:[%s1361] sm:$0xff] %vm98, %v1824
  %1826 = vst.msk [vmem:[%s1359] sm:$0xff] %vm340, %v1824
  %v1827 = vld [vmem:[%s241] sm:$0xff]
  %v1828 = vld [vmem:[%s241 + $0x8] sm:$0xff]
  %v1829 = vld [vmem:[#allocation2] sm:$0xff]
  %v1830 = vld [vmem:[#allocation2 + $0x8] sm:$0xff]
  %v1831 = vsel %vm246, %v1827, %v1829
  %v1832 = vsel %vm247, %v1828, %v1830
  %v1834 = vsel %vm206, %v1823, 0
  %1836 = vmatpush.msra.mxu0 0.0
  %1837 = vmatpush.msra.mxu0 0.0
  %1838 = vmatpush.msra.mxu0 0.0
  %1839 = vmatpush.msra.mxu0 0.0
  %1840 = vmatpush.msra.mxu0 0.0
  %1841 = vmatpush.msra.mxu0 0.0
  %1842 = vmatpush.msra.mxu0 0.0
  %1843 = vmatpush.msra.mxu0 0.0
  %1844 = vmatpush.msra.mxu0 %v1177
  %1845 = vmatpush.msra.mxu0 %v1175
  %1846 = vmatpush.msra.mxu0 %v1173
  %1847 = vmatpush.msra.mxu0 %v1171
  %1848 = vmatpush.msra.mxu0 %v1169
  %1849 = vmatpush.msra.mxu0 %v1167
  %1850 = vmatpush.msra.mxu0 %v1165
  %1851 = vmatpush.msra.mxu0 %v1163
  %1852 = vmatmul.f32.gmra.mxu0 %v1834
  %v1853 = vpop.f32.mrf.mxu0
  %v1854 = vadd.f32 0.0, %v1853
  %1855 = vdwg.mxu0
  %1856 = vmatpush.msra.mxu0 0.0
  %1857 = vmatpush.msra.mxu0 0.0
  %1858 = vmatpush.msra.mxu0 0.0
  %1859 = vmatpush.msra.mxu0 0.0
  %1860 = vmatpush.msra.mxu0 0.0
  %1861 = vmatpush.msra.mxu0 0.0
  %1862 = vmatpush.msra.mxu0 0.0
  %1863 = vmatpush.msra.mxu0 0.0
  %1864 = vmatpush.msra.mxu0 %v1178
  %1865 = vmatpush.msra.mxu0 %v1176
  %1866 = vmatpush.msra.mxu0 %v1174
  %1867 = vmatpush.msra.mxu0 %v1172
  %1868 = vmatpush.msra.mxu0 %v1170
  %1869 = vmatpush.msra.mxu0 %v1168
  %1870 = vmatpush.msra.mxu0 %v1166
  %1871 = vmatpush.msra.mxu0 %v1164
  %1872 = vmatmul.f32.gmra.mxu0 %v1834
  %v1873 = vpop.f32.mrf.mxu0
  %v1874 = vadd.f32 0.0, %v1873
  %1875 = vdwg.mxu0
  %v1876 = vadd.f32 %v1831, %v1854
  %v1877 = vxor.u32 %v1876, 2147483648
  %v1878 = vmul.f32 %v1877, 1.442695
  %v1879 = vpow.pop %v1878
  %v1880 = vadd.f32 %v1879, 1.0
  %v1881 = vrcp.pop %v1880
  %v1882 = vmul.f32 %v1880, %v1881
  %v1883 = vsub.f32 1.0, %v1882
  %v1884 = vmul.f32 %v1881, %v1883
  %v1885 = vadd.f32 %v1881, %v1884
  %vm1886 = vweird.f32 %v1880
  %vm1887 = vweird.f32 %v1881
  %vm1888 = vmor %vm1886, %vm1887
  %v1889 = vsel %vm1888, %v1881, %v1885
  %v1890 = vand.u32 2147483647, %v1880
  %vm1891 = vcmp.eq.f32.partialorder %v1890, 8.507059e+37
  %v1892 = vand.u32 %v1880, 2147483648
  %v1893 = vor.u32 1.1754944e-38, %v1892
  %v1894 = vsel %vm1891, %v1893, %v1889
  %v1895 = vmul.f32 1.0, %v1894
  %v1896 = vadd.f32 %v1874, %v1247
  %v1897 = vmul.f32 %v1895, %v1896
  %v1898 = vadd.f32 %v1832, %v1897
  %v1899 = vtanh.pop %v1898
  %v1900 = vsub.f32 1.0, %v1895
  %1902 = vrot.lane.b32.xlu0 %v1899, 64
  %v1903 = vpop.permute.xlu0 %1902
  %v1905 = vmul.f32 %v1900, %v1903
  %1906 = vrot.lane.b32.xlu0 %v1823, 64
  %v1907 = vpop.permute.xlu0 %1906
  %v1909 = vmul.f32 %v1895, %v1907
  %v1910 = vadd.f32 %v1905, %v1909
  %1912 = vrot.lane.b32.xlu0 %v1910, 64
  %v1913 = vpop.permute.xlu0 %1912
  %v1915 = vsel %vm1003, %v1913, 0.0
  %1916 = vst.msk [vmem:[%s1267] sm:$0xff] %vm98, %v1915
  %1917 = vst.msk [vmem:[#allocation4] sm:$0xff] %vm340, %v1915
  %v1918 = vld [vmem:[#allocation4] sm:$0xff]
  %v1919 = vld [vmem:[#allocation4 + $0x8] sm:$0xff]
  %v1920 = vld [vmem:[#allocation4 + $0x10] sm:$0xff]
  %v1921 = vld [vmem:[#allocation4 + $0x18] sm:$0xff]
  %v1922 = vld [vmem:[#allocation4 + $0x20] sm:$0xff]
  %v1923 = vld [vmem:[#allocation4 + $0x28] sm:$0xff]
  %v1924 = vld [vmem:[#allocation4 + $0x30] sm:$0xff]
  %v1925 = vld [vmem:[#allocation4 + $0x38] sm:$0xff]
  %v1926 = vld [vmem:[%s10] sm:$0x1]
  %v1928 = vperm.slane %v1926, 0
  %v1930 = vmul.f32 %v1918, %v1928
  %v1931 = vmul.f32 %v1919, %v1928
  %v1932 = vmul.f32 %v1920, %v1928
  %v1933 = vmul.f32 %v1921, %v1928
  %v1934 = vmul.f32 %v1922, %v1928
  %v1935 = vmul.f32 %v1923, %v1928
  %v1936 = vmul.f32 %v1924, %v1928
  %v1937 = vmul.f32 %v1925, %v1928
  %v1938 = vsel %vm206, %v1930, 0.0
  %1939 = vadd.xlane.f32.xlu0 %v1938
  %v1940 = vpop.xlane.xlu0 %1939
  %v1941 = vsel %vm206, %v1931, 0.0
  %1942 = vadd.xlane.f32.xlu0 %v1941
  %v1943 = vpop.xlane.xlu0 %1942
  %v1944 = vsel %vm206, %v1932, 0.0
  %1945 = vadd.xlane.f32.xlu0 %v1944
  %v1946 = vpop.xlane.xlu0 %1945
  %v1947 = vsel %vm206, %v1933, 0.0
  %1948 = vadd.xlane.f32.xlu0 %v1947
  %v1949 = vpop.xlane.xlu0 %1948
  %v1950 = vsel %vm206, %v1934, 0.0
  %1951 = vadd.xlane.f32.xlu0 %v1950
  %v1952 = vpop.xlane.xlu0 %1951
  %v1953 = vsel %vm206, %v1935, 0.0
  %1954 = vadd.xlane.f32.xlu0 %v1953
  %v1955 = vpop.xlane.xlu0 %1954
  %v1956 = vsel %vm206, %v1936, 0.0
  %1957 = vadd.xlane.f32.xlu0 %v1956
  %v1958 = vpop.xlane.xlu0 %1957
  %v1959 = vsel %vm206, %v1937, 0.0
  %1960 = vadd.xlane.f32.xlu0 %v1959
  %v1961 = vpop.xlane.xlu0 %1960
  %v1962 = vmax.f32 %v1940, %v1952
  %v1963 = vmax.f32 %v1943, %v1955
  %v1964 = vmax.f32 %v1946, %v1958
  %v1965 = vmax.f32 %v1949, %v1961
  %v1966 = vmax.f32 %v1962, %v1963
  %v1967 = vmax.f32 %v1964, %v1965
  %v1968 = vmax.f32 %v1966, %v1967
  %v1969 = vsub.f32 %v1940, %v1968
  %v1970 = vsub.f32 %v1943, %v1968
  %v1971 = vsub.f32 %v1946, %v1968
  %v1972 = vsub.f32 %v1949, %v1968
  %v1973 = vsub.f32 %v1952, %v1968
  %v1974 = vsub.f32 %v1955, %v1968
  %v1975 = vsub.f32 %v1958, %v1968
  %v1976 = vsub.f32 %v1961, %v1968
  %v1977 = vmul.f32 %v1969, 1.442695
  %v1978 = vpow.pop %v1977
  %v1979 = vmul.f32 %v1970, 1.442695
  %v1980 = vpow.pop %v1979
  %v1981 = vmul.f32 %v1971, 1.442695
  %v1982 = vpow.pop %v1981
  %v1983 = vmul.f32 %v1972, 1.442695
  %v1984 = vpow.pop %v1983
  %v1985 = vmul.f32 %v1973, 1.442695
  %v1986 = vpow.pop %v1985
  %v1987 = vmul.f32 %v1974, 1.442695
  %v1988 = vpow.pop %v1987
  %v1989 = vmul.f32 %v1975, 1.442695
  %v1990 = vpow.pop %v1989
  %v1991 = vmul.f32 %v1976, 1.442695
  %v1992 = vpow.pop %v1991
  %v1993 = vadd.f32 %v1978, %v1980
  %v1994 = vadd.f32 %v1993, %v1982
  %v1995 = vadd.f32 %v1994, %v1984
  %v1996 = vadd.f32 %v1995, %v1986
  %v1997 = vadd.f32 %v1996, %v1988
  %v1998 = vadd.f32 %v1997, %v1990
  %v1999 = vadd.f32 %v1998, %v1992
  %v2000 = vrcp.pop %v1999
  %v2001 = vmul.f32 %v1999, %v2000
  %v2002 = vsub.f32 1.0, %v2001
  %v2003 = vmul.f32 %v2000, %v2002
  %v2004 = vadd.f32 %v2000, %v2003
  %vm2005 = vweird.f32 %v1999
  %vm2006 = vweird.f32 %v2000
  %vm2007 = vmor %vm2005, %vm2006
  %v2008 = vsel %vm2007, %v2000, %v2004
  %v2009 = vand.u32 2147483647, %v1999
  %vm2010 = vcmp.eq.f32.partialorder %v2009, 8.507059e+37
  %v2011 = vand.u32 %v1999, 2147483648
  %v2012 = vor.u32 1.1754944e-38, %v2011
  %v2013 = vsel %vm2010, %v2012, %v2008
  %v2014 = vmul.f32 %v1978, %v2013
  %v2015 = vmul.f32 %v1980, %v2013
  %v2016 = vmul.f32 %v1982, %v2013
  %v2017 = vmul.f32 %v1984, %v2013
  %v2018 = vmul.f32 %v1986, %v2013
  %v2019 = vmul.f32 %v1988, %v2013
  %v2020 = vmul.f32 %v1990, %v2013
  %v2021 = vmul.f32 %v1992, %v2013
  %v2022 = vmul.f32 %v1918, %v2014
  %v2023 = vmul.f32 %v1919, %v2015
  %v2024 = vmul.f32 %v1920, %v2016
  %v2025 = vmul.f32 %v1921, %v2017
  %v2026 = vmul.f32 %v1922, %v2018
  %v2027 = vmul.f32 %v1923, %v2019
  %v2028 = vmul.f32 %v1924, %v2020
  %v2029 = vmul.f32 %v1925, %v2021
  %v2030 = vsel %vm206, %v2022, 0.0
  %v2031 = vsel %vm206, %v2023, 0.0
  %v2032 = vadd.f32 %v2030, %v2031
  %v2033 = vsel %vm206, %v2024, 0.0
  %v2034 = vadd.f32 %v2032, %v2033
  %v2035 = vsel %vm206, %v2025, 0.0
  %v2036 = vadd.f32 %v2034, %v2035
  %v2037 = vsel %vm206, %v2026, 0.0
  %v2038 = vadd.f32 %v2036, %v2037
  %v2039 = vsel %vm206, %v2027, 0.0
  %v2040 = vadd.f32 %v2038, %v2039
  %v2041 = vsel %vm206, %v2028, 0.0
  %v2042 = vadd.f32 %v2040, %v2041
  %v2043 = vsel %vm206, %v2029, 0.0
  %v2044 = vadd.f32 %v2042, %v2043
  %v2045 = vld [vmem:[%s11] sm:$0xff]
  %v2046 = vld [vmem:[%s11 + $0x8] sm:$0xff]
  %v2047 = vld [vmem:[%s11 + $0x10] sm:$0xff]
  %v2048 = vld [vmem:[%s11 + $0x18] sm:$0xff]
  %v2049 = vld [vmem:[%s11 + $0x20] sm:$0xff]
  %v2050 = vld [vmem:[%s11 + $0x28] sm:$0xff]
  %v2051 = vld [vmem:[%s11 + $0x30] sm:$0xff]
  %v2052 = vld [vmem:[%s11 + $0x38] sm:$0xff]
  %s2053 = sld [smem:[#allocation5]]
  %v2054 = vstv %s2053
  %v2056 = vsel %vm206, %v2044, 0
  %2058 = vmatpush.msra.mxu0 0.0
  %2059 = vmatpush.msra.mxu0 0.0
  %2060 = vmatpush.msra.mxu0 0.0
  %2061 = vmatpush.msra.mxu0 0.0
  %2062 = vmatpush.msra.mxu0 0.0
  %2063 = vmatpush.msra.mxu0 0.0
  %2064 = vmatpush.msra.mxu0 0.0
  %2065 = vmatpush.msra.mxu0 0.0
  %2066 = vmatpush.msra.mxu0 %v2052
  %2067 = vmatpush.msra.mxu0 %v2051
  %2068 = vmatpush.msra.mxu0 %v2050
  %2069 = vmatpush.msra.mxu0 %v2049
  %2070 = vmatpush.msra.mxu0 %v2048
  %2071 = vmatpush.msra.mxu0 %v2047
  %2072 = vmatpush.msra.mxu0 %v2046
  %2073 = vmatpush.msra.mxu0 %v2045
  %2074 = vmatmul.f32.gmra.mxu0 %v2056
  %v2075 = vpop.f32.mrf.mxu0
  %v2076 = vadd.f32 %v2054, %v2075
  %2077 = vdwg.mxu0
  %vm2078 = vcmask 7168
  %2079 = vst.msk [vmem:[%s13] sm:$0xff] %vm2078, %v2076
  // Predicated region
  $region54: #{gru_attention_forward.1} parent=0 // pred_check
    _
  $region55: #{gru_attention_forward.1} parent=0 // pred_check_branch
    %2081 = sbr.rel (0) target = $region57
  $region56: #{gru_attention_forward.1} parent=0 // pred_region
    _
  $region57: #{gru_attention_forward.1} parent=0 // pred_fallthru
    _
  // Predicated region
  $region58: #{gru_attention_forward.1} parent=0 // pred_check
    _
  $region59: #{gru_attention_forward.1} parent=0 // pred_check_branch
    %2083 = sbr.rel (0) target = $region61
  $region60: #{gru_attention_forward.1} parent=0 // pred_region
    _
  $region61: #{gru_attention_forward.1} parent=0 // pred_fallthru
    _

</llo_original>
